<compile_context>
chip_gen: v7x
topology: tpu7x:2x2x1
jax: 0.10.0
libtpu: 0.0.40
codegen_flags: <defaults>
</compile_context>

<pallas_src>
import jax
import jax.numpy as jnp
from jax import lax
from jax.experimental import pallas as pl
from jax.experimental.pallas import tpu as pltpu

BN_EPS = 1e-5


def _round_up(x, m):
    return (x + m - 1) // m * m


def _make_double_conv_kernel(N, H, W, Cin, Cin_p, Cout):
    Hp, Wp = H + 2, W + 2
    L = N * Hp * Wp                      # flattened padded spatial frame
    Lp = _round_up(L, 128)               # lane-dense (full-vreg) frame length
    halo = Wp + 1                        # taps reach at most +-(Wp+1) lanes
    lead = _round_up(halo, 128)          # vreg-aligned halo region on each side
    slabw = lead + Lp + lead             # extended activation slab width
    t0 = lead - halo                     # slab lane offset of tap base 0
    inv_count = 1.0 / float(N * H * W)
    # static lane offsets of the nine 3x3 taps (tap index t = kh*3 + kw)
    bases = tuple(kh * Wp + kw for kh in range(3) for kw in range(3))

    def conv3x3(tap_load, w_ref, C):
        # 9 tap-accumulating MXU matmuls; bf16 operands, f32 accumulation in vregs.
        acc = None
        for t, b in enumerate(bases):
            a = tap_load(t0 + b)                              # (C, Lp) bf16
            wt = w_ref[:, t * C:(t + 1) * C]                  # (Cout, C) bf16
            p = jnp.dot(wt, a, preferred_element_type=jnp.float32)
            acc = p if acc is None else acc + p
        return acc                                            # (Cout, Lp) f32

    def bn_relu(y, mask, g, be, mask_result):
        # Training-mode BatchNorm2d (biased batch stats) + ReLU, affine folded
        # into one y*scale + shift pass.  All statistics/normalization in f32.
        # TODO(synk): use shifted/Welford variance when tiling to large activations.
        ym = y * mask
        s1 = jnp.sum(ym, axis=1, keepdims=True)               # (Cout, 1)
        s2 = jnp.sum(ym * ym, axis=1, keepdims=True)          # (Cout, 1)
        mean = s1 * inv_count
        var = jnp.maximum(s2 * inv_count - mean * mean, 0.0)
        scale = g * lax.rsqrt(var + BN_EPS)
        shift = be - mean * scale
        z = y * scale + shift
        if mask_result:                                       # keep conv2 padding at 0
            z = z * mask
        return jnp.maximum(z, 0.0)

    def kernel(xe_ref, w1_ref, w2_ref, bn_ref, out_ref, h1_ref):
        # Validity mask rides in the (zero-weight) padded input-channel row Cin.
        mask = xe_ref[Cin:Cin + 1, lead:lead + Lp].astype(jnp.float32)   # (1, Lp)

        # Zero ONLY the halo lanes of the conv2 scratch slab (interior is written below).
        h1_ref[:, :lead] = jnp.zeros((Cout, lead), h1_ref.dtype)
        h1_ref[:, lead + Lp:] = jnp.zeros((Cout, lead), h1_ref.dtype)

        # ---- conv1 (9 tap matmuls) -> BN1 -> ReLU, masked so conv2 sees zero padding ----
        y1 = conv3x3(lambda o: xe_ref[:, o:o + Lp], w1_ref, Cin_p)
        h1 = bn_relu(y1, mask, bn_ref[:, 0:1], bn_ref[:, 1:2], True)
        h1_ref[:, lead:lead + Lp] = h1.astype(h1_ref.dtype)

        # ---- conv2 (taps read straight from the scratch slab) -> BN2 -> ReLU ----
        y2 = conv3x3(lambda o: h1_ref[:, o:o + Lp], w2_ref, Cout)
        out_ref[...] = bn_relu(y2, mask, bn_ref[:, 2:3], bn_ref[:, 3:4], False)

    return kernel, L, Lp, lead, slabw


def double_conv_pallas(x_nchw, params):
    N, Cin, H, W = x_nchw.shape
    Cout = params["w1"].shape[0]
    Hp, Wp = H + 2, W + 2
    Cin_p = _round_up(Cin + 1, 8)        # +1 guarantees a spare sublane row for the mask

    kernel, L, Lp, lead, slabw = _make_double_conv_kernel(N, H, W, Cin, Cin_p, Cout)

    # Activations: channel-major, spatially zero-padded, flattened onto the lane
    # axis, placed at vreg-aligned offset `lead` inside a (Cin_p, slabw) bf16 slab.
    xt = jnp.transpose(x_nchw, (1, 0, 2, 3))                       # (Cin, N, H, W)
    xp = jnp.pad(xt, ((0, 0), (0, 0), (1, 1), (1, 1)))             # (Cin, N, Hp, Wp)
    xflat = xp.reshape(Cin, L)
    # Validity mask (1.0 inside each H x W interior) stuffed as channel row Cin.
    # The conv weight columns for padded channels are zero, so it never reaches the sum.
    m2 = jnp.zeros((Hp, Wp), x_nchw.dtype).at[1:H + 1, 1:W + 1].set(1.0)
    mflat = jnp.tile(m2.reshape(-1), N).reshape(1, L)
    slab = jnp.concatenate(
        [xflat, mflat, jnp.zeros((Cin_p - Cin - 1, L), x_nchw.dtype)], axis=0)
    xe = jnp.pad(slab, ((0, 0), (lead, slabw - lead - L))).astype(jnp.bfloat16)

    # Conv weights -> (Cout, 9*C), tap-major column blocks matching the in-kernel tap
    # order, cast to bf16 for the MXU.  Conv biases b1/b2 are intentionally dropped:
    # BatchNorm's mean subtraction cancels a per-channel constant bias exactly.
    w1p = jnp.pad(params["w1"], ((0, 0), (0, Cin_p - Cin), (0, 0), (0, 0)))
    w1m = jnp.transpose(w1p, (0, 2, 3, 1)).reshape(Cout, 9 * Cin_p).astype(jnp.bfloat16)
    w2m = jnp.transpose(params["w2"], (0, 2, 3, 1)).reshape(Cout, 9 * Cout).astype(jnp.bfloat16)

    # BN affine params packed into ONE (Cout, 4) f32 input: [g1, be1, g2, be2].
    bnp = jnp.stack([params["g1"], params["be1"], params["g2"], params["be2"]],
                    axis=1).astype(jnp.float32)

    # Derive the VMEM budget from the actual buffer sizes (no hard-coded 32 MiB).
    buf_bytes = (xe.size * xe.dtype.itemsize
                 + w1m.size * w1m.dtype.itemsize + w2m.size * w2m.dtype.itemsize
                 + bnp.size * bnp.dtype.itemsize
                 + Cout * Lp * 4                 # f32 output
                 + Cout * slabw * 2)             # bf16 h1 scratch slab
    vmem_limit = int(min(96 * 2**20, max(8 * 2**20, 4 * buf_bytes)))

    vmem = pl.BlockSpec(memory_space=pltpu.MemorySpace.VMEM)
    out_flat = pl.pallas_call(
        kernel,
        out_shape=jax.ShapeDtypeStruct((Cout, Lp), jnp.float32),
        in_specs=[vmem] * 4,
        out_specs=vmem,
        scratch_shapes=[pltpu.VMEM((Cout, slabw), jnp.bfloat16)],
        compiler_params=pltpu.CompilerParams(vmem_limit_bytes=vmem_limit),
    )(xe, w1m, w2m, bnp)

    # Lane-dense (Cout, Lp) kernel output -> crop padding, return NCHW.
    out = out_flat[:, :L].reshape(Cout, N, Hp, Wp)[:, :, 1:H + 1, 1:W + 1]
    return jnp.transpose(out, (1, 0, 2, 3))


# ----- pure-JAX reference (includes the conv biases; f32) -----
def _conv_bn_relu_ref(x, w, b, g, be):
    y = lax.conv_general_dilated(
        x, w, window_strides=(1, 1), padding=((1, 1), (1, 1)),
        dimension_numbers=("NCHW", "OIHW", "NCHW"))
    y = y + b[None, :, None, None]
    mean = jnp.mean(y, axis=(0, 2, 3), keepdims=True)
    var = jnp.mean((y - mean) ** 2, axis=(0, 2, 3), keepdims=True)
    y = (y - mean) * lax.rsqrt(var + BN_EPS)
    y = y * g[None, :, None, None] + be[None, :, None, None]
    return jnp.maximum(y, 0.0)


def double_conv_ref(x, p):
    h = _conv_bn_relu_ref(x, p["w1"], p["b1"], p["g1"], p["be1"])
    return _conv_bn_relu_ref(h, p["w2"], p["b2"], p["g2"], p["be2"])


if __name__ == "__main__":
    in_ch, out_ch = 4, 8
    N, H, W = 2, 16, 16

    key = jax.random.PRNGKey(0)
    ks = jax.random.split(key, 9)
    params = {
        "w1": 0.1 * jax.random.normal(ks[0], (out_ch, in_ch, 3, 3), jnp.float32),
        "b1": 0.1 * jax.random.normal(ks[1], (out_ch,), jnp.float32),
        "g1": 1.0 + 0.1 * jax.random.normal(ks[2], (out_ch,), jnp.float32),
        "be1": 0.05 * jax.random.normal(ks[3], (out_ch,), jnp.float32),
        "w2": 0.1 * jax.random.normal(ks[4], (out_ch, out_ch, 3, 3), jnp.float32),
        "b2": 0.1 * jax.random.normal(ks[5], (out_ch,), jnp.float32),
        "g2": 1.0 + 0.1 * jax.random.normal(ks[6], (out_ch,), jnp.float32),
        "be2": 0.05 * jax.random.normal(ks[7], (out_ch,), jnp.float32),
    }
    x = jax.random.normal(ks[8], (N, in_ch, H, W), jnp.float32)

    out = jax.block_until_ready(double_conv_pallas(x, params))
    ref = jax.block_until_ready(double_conv_ref(x, params))

    assert out.shape == (N, out_ch, H, W)
    err = float(jnp.max(jnp.abs(out - ref)))
    # Tolerance reflects bf16 MXU operands (per perf review); f32 operands /
    # precision=HIGHEST would recover ~1e-3 agreement at 3x MXU cost.
    assert jnp.allclose(out, ref, atol=2e-2, rtol=2e-2), err
    print("KERNEL_OK")
</pallas_src>

<mosaic_0001>
module attributes {stable_mosaic.version = 11 : i64} {
  func.func @kernel(%arg0: memref<8x1024xbf16, #tpu.memory_space<vmem>>, %arg1: memref<8x72xbf16, #tpu.memory_space<vmem>>, %arg2: memref<8x72xbf16, #tpu.memory_space<vmem>>, %arg3: memref<8x4xf32, #tpu.memory_space<vmem>>, %arg4: memref<8x768xf32, #tpu.memory_space<vmem>>, %arg5: memref<8x1024xbf16, #tpu.memory_space<vmem>>) attributes {dimension_semantics = [], scalar_prefetch = 0 : i64, scratch_operands = 1 : i64, tpu.core_type = #tpu.core_type<tc>} {
    %c4 = arith.constant 4 : index
    %c128 = arith.constant 128 : index
    %0 = vector.load %arg0[%c4, %c128] : memref<8x1024xbf16, #tpu.memory_space<vmem>>, vector<1x768xbf16>
    %1 = arith.extf %0 : vector<1x768xbf16> to vector<1x768xf32>
    %cst = arith.constant 0.000000e+00 : bf16
    %2 = vector.broadcast %cst : bf16 to vector<8x128xbf16>
    %c0 = arith.constant 0 : index
    %c0_0 = arith.constant 0 : index
    %3 = vector.load %arg5[%c0, %c0_0] : memref<8x1024xbf16, #tpu.memory_space<vmem>>, vector<8x128xbf16>
    tpu.vector_store %arg5[%c0, %c0_0], %2 {strides = array<i32>} : memref<8x1024xbf16, #tpu.memory_space<vmem>>, vector<8x128xbf16>,
    %cst_1 = arith.constant 0.000000e+00 : bf16
    %4 = vector.broadcast %cst_1 : bf16 to vector<8x128xbf16>
    %c0_2 = arith.constant 0 : index
    %c896 = arith.constant 896 : index
    %5 = vector.load %arg5[%c0_2, %c896] : memref<8x1024xbf16, #tpu.memory_space<vmem>>, vector<8x128xbf16>
    tpu.vector_store %arg5[%c0_2, %c896], %4 {strides = array<i32>} : memref<8x1024xbf16, #tpu.memory_space<vmem>>, vector<8x128xbf16>,
    %c0_3 = arith.constant 0 : index
    %c109 = arith.constant 109 : index
    %6 = vector.load %arg0[%c0_3, %c109] : memref<8x1024xbf16, #tpu.memory_space<vmem>>, vector<8x768xbf16>
    %c0_4 = arith.constant 0 : index
    %c0_5 = arith.constant 0 : index
    %7 = vector.load %arg1[%c0_4, %c0_5] : memref<8x72xbf16, #tpu.memory_space<vmem>>, vector<8x8xbf16>
    %cst_6 = arith.constant dense<0.000000e+00> : vector<8x768xf32>
    %8 = tpu.matmul %7, %6, %cst_6 {dimension_numbers = #tpu.dot_dimension_numbers<[1], [0], [0], [1], [0, 0, 1, 1], [], []>} : vector<8x8xbf16>, vector<8x768xbf16>, vector<8x768xf32> -> vector<8x768xf32>
    %c0_7 = arith.constant 0 : index
    %c110 = arith.constant 110 : index
    %9 = vector.load %arg0[%c0_7, %c110] : memref<8x1024xbf16, #tpu.memory_space<vmem>>, vector<8x768xbf16>
    %c0_8 = arith.constant 0 : index
    %c8 = arith.constant 8 : index
    %10 = vector.load %arg1[%c0_8, %c8] : memref<8x72xbf16, #tpu.memory_space<vmem>>, vector<8x8xbf16>
    %cst_9 = arith.constant dense<0.000000e+00> : vector<8x768xf32>
    %11 = tpu.matmul %10, %9, %cst_9 {dimension_numbers = #tpu.dot_dimension_numbers<[1], [0], [0], [1], [0, 0, 1, 1], [], []>} : vector<8x8xbf16>, vector<8x768xbf16>, vector<8x768xf32> -> vector<8x768xf32>
    %12 = arith.addf %8, %11 : vector<8x768xf32>
    %c0_10 = arith.constant 0 : index
    %c111 = arith.constant 111 : index
    %13 = vector.load %arg0[%c0_10, %c111] : memref<8x1024xbf16, #tpu.memory_space<vmem>>, vector<8x768xbf16>
    %c0_11 = arith.constant 0 : index
    %c16 = arith.constant 16 : index
    %14 = vector.load %arg1[%c0_11, %c16] : memref<8x72xbf16, #tpu.memory_space<vmem>>, vector<8x8xbf16>
    %cst_12 = arith.constant dense<0.000000e+00> : vector<8x768xf32>
    %15 = tpu.matmul %14, %13, %cst_12 {dimension_numbers = #tpu.dot_dimension_numbers<[1], [0], [0], [1], [0, 0, 1, 1], [], []>} : vector<8x8xbf16>, vector<8x768xbf16>, vector<8x768xf32> -> vector<8x768xf32>
    %16 = arith.addf %12, %15 : vector<8x768xf32>
    %c0_13 = arith.constant 0 : index
    %c127 = arith.constant 127 : index
    %17 = vector.load %arg0[%c0_13, %c127] : memref<8x1024xbf16, #tpu.memory_space<vmem>>, vector<8x768xbf16>
    %c0_14 = arith.constant 0 : index
    %c24 = arith.constant 24 : index
    %18 = vector.load %arg1[%c0_14, %c24] : memref<8x72xbf16, #tpu.memory_space<vmem>>, vector<8x8xbf16>
    %cst_15 = arith.constant dense<0.000000e+00> : vector<8x768xf32>
    %19 = tpu.matmul %18, %17, %cst_15 {dimension_numbers = #tpu.dot_dimension_numbers<[1], [0], [0], [1], [0, 0, 1, 1], [], []>} : vector<8x8xbf16>, vector<8x768xbf16>, vector<8x768xf32> -> vector<8x768xf32>
    %20 = arith.addf %16, %19 : vector<8x768xf32>
    %c0_16 = arith.constant 0 : index
    %c128_17 = arith.constant 128 : index
    %21 = vector.load %arg0[%c0_16, %c128_17] : memref<8x1024xbf16, #tpu.memory_space<vmem>>, vector<8x768xbf16>
    %c0_18 = arith.constant 0 : index
    %c32 = arith.constant 32 : index
    %22 = vector.load %arg1[%c0_18, %c32] : memref<8x72xbf16, #tpu.memory_space<vmem>>, vector<8x8xbf16>
    %cst_19 = arith.constant dense<0.000000e+00> : vector<8x768xf32>
    %23 = tpu.matmul %22, %21, %cst_19 {dimension_numbers = #tpu.dot_dimension_numbers<[1], [0], [0], [1], [0, 0, 1, 1], [], []>} : vector<8x8xbf16>, vector<8x768xbf16>, vector<8x768xf32> -> vector<8x768xf32>
    %24 = arith.addf %20, %23 : vector<8x768xf32>
    %c0_20 = arith.constant 0 : index
    %c129 = arith.constant 129 : index
    %25 = vector.load %arg0[%c0_20, %c129] : memref<8x1024xbf16, #tpu.memory_space<vmem>>, vector<8x768xbf16>
    %c0_21 = arith.constant 0 : index
    %c40 = arith.constant 40 : index
    %26 = vector.load %arg1[%c0_21, %c40] : memref<8x72xbf16, #tpu.memory_space<vmem>>, vector<8x8xbf16>
    %cst_22 = arith.constant dense<0.000000e+00> : vector<8x768xf32>
    %27 = tpu.matmul %26, %25, %cst_22 {dimension_numbers = #tpu.dot_dimension_numbers<[1], [0], [0], [1], [0, 0, 1, 1], [], []>} : vector<8x8xbf16>, vector<8x768xbf16>, vector<8x768xf32> -> vector<8x768xf32>
    %28 = arith.addf %24, %27 : vector<8x768xf32>
    %c0_23 = arith.constant 0 : index
    %c145 = arith.constant 145 : index
    %29 = vector.load %arg0[%c0_23, %c145] : memref<8x1024xbf16, #tpu.memory_space<vmem>>, vector<8x768xbf16>
    %c0_24 = arith.constant 0 : index
    %c48 = arith.constant 48 : index
    %30 = vector.load %arg1[%c0_24, %c48] : memref<8x72xbf16, #tpu.memory_space<vmem>>, vector<8x8xbf16>
    %cst_25 = arith.constant dense<0.000000e+00> : vector<8x768xf32>
    %31 = tpu.matmul %30, %29, %cst_25 {dimension_numbers = #tpu.dot_dimension_numbers<[1], [0], [0], [1], [0, 0, 1, 1], [], []>} : vector<8x8xbf16>, vector<8x768xbf16>, vector<8x768xf32> -> vector<8x768xf32>
    %32 = arith.addf %28, %31 : vector<8x768xf32>
    %c0_26 = arith.constant 0 : index
    %c146 = arith.constant 146 : index
    %33 = vector.load %arg0[%c0_26, %c146] : memref<8x1024xbf16, #tpu.memory_space<vmem>>, vector<8x768xbf16>
    %c0_27 = arith.constant 0 : index
    %c56 = arith.constant 56 : index
    %34 = vector.load %arg1[%c0_27, %c56] : memref<8x72xbf16, #tpu.memory_space<vmem>>, vector<8x8xbf16>
    %cst_28 = arith.constant dense<0.000000e+00> : vector<8x768xf32>
    %35 = tpu.matmul %34, %33, %cst_28 {dimension_numbers = #tpu.dot_dimension_numbers<[1], [0], [0], [1], [0, 0, 1, 1], [], []>} : vector<8x8xbf16>, vector<8x768xbf16>, vector<8x768xf32> -> vector<8x768xf32>
    %36 = arith.addf %32, %35 : vector<8x768xf32>
    %c0_29 = arith.constant 0 : index
    %c147 = arith.constant 147 : index
    %37 = vector.load %arg0[%c0_29, %c147] : memref<8x1024xbf16, #tpu.memory_space<vmem>>, vector<8x768xbf16>
    %c0_30 = arith.constant 0 : index
    %c64 = arith.constant 64 : index
    %38 = vector.load %arg1[%c0_30, %c64] : memref<8x72xbf16, #tpu.memory_space<vmem>>, vector<8x8xbf16>
    %cst_31 = arith.constant dense<0.000000e+00> : vector<8x768xf32>
    %39 = tpu.matmul %38, %37, %cst_31 {dimension_numbers = #tpu.dot_dimension_numbers<[1], [0], [0], [1], [0, 0, 1, 1], [], []>} : vector<8x8xbf16>, vector<8x768xbf16>, vector<8x768xf32> -> vector<8x768xf32>
    %40 = arith.addf %36, %39 : vector<8x768xf32>
    %c0_32 = arith.constant 0 : index
    %c0_33 = arith.constant 0 : index
    %41 = vector.load %arg3[%c0_32, %c0_33] : memref<8x4xf32, #tpu.memory_space<vmem>>, vector<8x1xf32>
    %c0_34 = arith.constant 0 : index
    %c1 = arith.constant 1 : index
    %42 = vector.load %arg3[%c0_34, %c1] : memref<8x4xf32, #tpu.memory_space<vmem>>, vector<8x1xf32>
    %43 = vector.broadcast %1 : vector<1x768xf32> to vector<8x768xf32>
    %44 = arith.mulf %40, %43 : vector<8x768xf32>
    %cst_35 = arith.constant dense<0.000000e+00> : vector<8xf32>
    %45 = vector.multi_reduction <add>, %44, %cst_35 [1] : vector<8x768xf32> to vector<8xf32>
    %46 = vector.shape_cast %45 : vector<8xf32> to vector<8x1xf32>
    %47 = arith.mulf %44, %44 : vector<8x768xf32>
    %cst_36 = arith.constant dense<0.000000e+00> : vector<8xf32>
    %48 = vector.multi_reduction <add>, %47, %cst_36 [1] : vector<8x768xf32> to vector<8xf32>
    %49 = vector.shape_cast %48 : vector<8xf32> to vector<8x1xf32>
    %cst_37 = arith.constant 0.001953125 : f32
    %50 = vector.broadcast %cst_37 : f32 to vector<8x1xf32>
    %51 = arith.mulf %46, %50 : vector<8x1xf32>
    %cst_38 = arith.constant 0.001953125 : f32
    %52 = vector.broadcast %cst_38 : f32 to vector<8x1xf32>
    %53 = arith.mulf %49, %52 : vector<8x1xf32>
    %54 = arith.mulf %51, %51 : vector<8x1xf32>
    %55 = arith.subf %53, %54 : vector<8x1xf32>
    %cst_39 = arith.constant 0.000000e+00 : f32
    %56 = vector.broadcast %cst_39 : f32 to vector<8x1xf32>
    %57 = arith.maximumf %55, %56 : vector<8x1xf32>
    %cst_40 = arith.constant 9.99999974E-6 : f32
    %58 = vector.broadcast %cst_40 : f32 to vector<8x1xf32>
    %59 = arith.addf %57, %58 : vector<8x1xf32>
    %60 = math.rsqrt %59 : vector<8x1xf32>
    %61 = arith.mulf %41, %60 : vector<8x1xf32>
    %62 = arith.mulf %51, %61 : vector<8x1xf32>
    %63 = arith.subf %42, %62 : vector<8x1xf32>
    %64 = vector.broadcast %61 : vector<8x1xf32> to vector<8x768xf32>
    %65 = arith.mulf %40, %64 : vector<8x768xf32>
    %66 = vector.broadcast %63 : vector<8x1xf32> to vector<8x768xf32>
    %67 = arith.addf %65, %66 : vector<8x768xf32>
    %68 = vector.broadcast %1 : vector<1x768xf32> to vector<8x768xf32>
    %69 = arith.mulf %67, %68 : vector<8x768xf32>
    %cst_41 = arith.constant 0.000000e+00 : f32
    %70 = vector.broadcast %cst_41 : f32 to vector<8x768xf32>
    %71 = arith.maximumf %69, %70 : vector<8x768xf32>
    %72 = arith.truncf %71 : vector<8x768xf32> to vector<8x768xbf16>
    %c0_42 = arith.constant 0 : index
    %c128_43 = arith.constant 128 : index
    %73 = vector.load %arg5[%c0_42, %c128_43] : memref<8x1024xbf16, #tpu.memory_space<vmem>>, vector<8x768xbf16>
    tpu.vector_store %arg5[%c0_42, %c128_43], %72 {strides = array<i32>} : memref<8x1024xbf16, #tpu.memory_space<vmem>>, vector<8x768xbf16>,
    %c0_44 = arith.constant 0 : index
    %c109_45 = arith.constant 109 : index
    %74 = vector.load %arg5[%c0_44, %c109_45] : memref<8x1024xbf16, #tpu.memory_space<vmem>>, vector<8x768xbf16>
    %c0_46 = arith.constant 0 : index
    %c0_47 = arith.constant 0 : index
    %75 = vector.load %arg2[%c0_46, %c0_47] : memref<8x72xbf16, #tpu.memory_space<vmem>>, vector<8x8xbf16>
    %cst_48 = arith.constant dense<0.000000e+00> : vector<8x768xf32>
    %76 = tpu.matmul %75, %74, %cst_48 {dimension_numbers = #tpu.dot_dimension_numbers<[1], [0], [0], [1], [0, 0, 1, 1], [], []>} : vector<8x8xbf16>, vector<8x768xbf16>, vector<8x768xf32> -> vector<8x768xf32>
    %c0_49 = arith.constant 0 : index
    %c110_50 = arith.constant 110 : index
    %77 = vector.load %arg5[%c0_49, %c110_50] : memref<8x1024xbf16, #tpu.memory_space<vmem>>, vector<8x768xbf16>
    %c0_51 = arith.constant 0 : index
    %c8_52 = arith.constant 8 : index
    %78 = vector.load %arg2[%c0_51, %c8_52] : memref<8x72xbf16, #tpu.memory_space<vmem>>, vector<8x8xbf16>
    %cst_53 = arith.constant dense<0.000000e+00> : vector<8x768xf32>
    %79 = tpu.matmul %78, %77, %cst_53 {dimension_numbers = #tpu.dot_dimension_numbers<[1], [0], [0], [1], [0, 0, 1, 1], [], []>} : vector<8x8xbf16>, vector<8x768xbf16>, vector<8x768xf32> -> vector<8x768xf32>
    %80 = arith.addf %76, %79 : vector<8x768xf32>
    %c0_54 = arith.constant 0 : index
    %c111_55 = arith.constant 111 : index
    %81 = vector.load %arg5[%c0_54, %c111_55] : memref<8x1024xbf16, #tpu.memory_space<vmem>>, vector<8x768xbf16>
    %c0_56 = arith.constant 0 : index
    %c16_57 = arith.constant 16 : index
    %82 = vector.load %arg2[%c0_56, %c16_57] : memref<8x72xbf16, #tpu.memory_space<vmem>>, vector<8x8xbf16>
    %cst_58 = arith.constant dense<0.000000e+00> : vector<8x768xf32>
    %83 = tpu.matmul %82, %81, %cst_58 {dimension_numbers = #tpu.dot_dimension_numbers<[1], [0], [0], [1], [0, 0, 1, 1], [], []>} : vector<8x8xbf16>, vector<8x768xbf16>, vector<8x768xf32> -> vector<8x768xf32>
    %84 = arith.addf %80, %83 : vector<8x768xf32>
    %c0_59 = arith.constant 0 : index
    %c127_60 = arith.constant 127 : index
    %85 = vector.load %arg5[%c0_59, %c127_60] : memref<8x1024xbf16, #tpu.memory_space<vmem>>, vector<8x768xbf16>
    %c0_61 = arith.constant 0 : index
    %c24_62 = arith.constant 24 : index
    %86 = vector.load %arg2[%c0_61, %c24_62] : memref<8x72xbf16, #tpu.memory_space<vmem>>, vector<8x8xbf16>
    %cst_63 = arith.constant dense<0.000000e+00> : vector<8x768xf32>
    %87 = tpu.matmul %86, %85, %cst_63 {dimension_numbers = #tpu.dot_dimension_numbers<[1], [0], [0], [1], [0, 0, 1, 1], [], []>} : vector<8x8xbf16>, vector<8x768xbf16>, vector<8x768xf32> -> vector<8x768xf32>
    %88 = arith.addf %84, %87 : vector<8x768xf32>
    %c0_64 = arith.constant 0 : index
    %c128_65 = arith.constant 128 : index
    %89 = vector.load %arg5[%c0_64, %c128_65] : memref<8x1024xbf16, #tpu.memory_space<vmem>>, vector<8x768xbf16>
    %c0_66 = arith.constant 0 : index
    %c32_67 = arith.constant 32 : index
    %90 = vector.load %arg2[%c0_66, %c32_67] : memref<8x72xbf16, #tpu.memory_space<vmem>>, vector<8x8xbf16>
    %cst_68 = arith.constant dense<0.000000e+00> : vector<8x768xf32>
    %91 = tpu.matmul %90, %89, %cst_68 {dimension_numbers = #tpu.dot_dimension_numbers<[1], [0], [0], [1], [0, 0, 1, 1], [], []>} : vector<8x8xbf16>, vector<8x768xbf16>, vector<8x768xf32> -> vector<8x768xf32>
    %92 = arith.addf %88, %91 : vector<8x768xf32>
    %c0_69 = arith.constant 0 : index
    %c129_70 = arith.constant 129 : index
    %93 = vector.load %arg5[%c0_69, %c129_70] : memref<8x1024xbf16, #tpu.memory_space<vmem>>, vector<8x768xbf16>
    %c0_71 = arith.constant 0 : index
    %c40_72 = arith.constant 40 : index
    %94 = vector.load %arg2[%c0_71, %c40_72] : memref<8x72xbf16, #tpu.memory_space<vmem>>, vector<8x8xbf16>
    %cst_73 = arith.constant dense<0.000000e+00> : vector<8x768xf32>
    %95 = tpu.matmul %94, %93, %cst_73 {dimension_numbers = #tpu.dot_dimension_numbers<[1], [0], [0], [1], [0, 0, 1, 1], [], []>} : vector<8x8xbf16>, vector<8x768xbf16>, vector<8x768xf32> -> vector<8x768xf32>
    %96 = arith.addf %92, %95 : vector<8x768xf32>
    %c0_74 = arith.constant 0 : index
    %c145_75 = arith.constant 145 : index
    %97 = vector.load %arg5[%c0_74, %c145_75] : memref<8x1024xbf16, #tpu.memory_space<vmem>>, vector<8x768xbf16>
    %c0_76 = arith.constant 0 : index
    %c48_77 = arith.constant 48 : index
    %98 = vector.load %arg2[%c0_76, %c48_77] : memref<8x72xbf16, #tpu.memory_space<vmem>>, vector<8x8xbf16>
    %cst_78 = arith.constant dense<0.000000e+00> : vector<8x768xf32>
    %99 = tpu.matmul %98, %97, %cst_78 {dimension_numbers = #tpu.dot_dimension_numbers<[1], [0], [0], [1], [0, 0, 1, 1], [], []>} : vector<8x8xbf16>, vector<8x768xbf16>, vector<8x768xf32> -> vector<8x768xf32>
    %100 = arith.addf %96, %99 : vector<8x768xf32>
    %c0_79 = arith.constant 0 : index
    %c146_80 = arith.constant 146 : index
    %101 = vector.load %arg5[%c0_79, %c146_80] : memref<8x1024xbf16, #tpu.memory_space<vmem>>, vector<8x768xbf16>
    %c0_81 = arith.constant 0 : index
    %c56_82 = arith.constant 56 : index
    %102 = vector.load %arg2[%c0_81, %c56_82] : memref<8x72xbf16, #tpu.memory_space<vmem>>, vector<8x8xbf16>
    %cst_83 = arith.constant dense<0.000000e+00> : vector<8x768xf32>
    %103 = tpu.matmul %102, %101, %cst_83 {dimension_numbers = #tpu.dot_dimension_numbers<[1], [0], [0], [1], [0, 0, 1, 1], [], []>} : vector<8x8xbf16>, vector<8x768xbf16>, vector<8x768xf32> -> vector<8x768xf32>
    %104 = arith.addf %100, %103 : vector<8x768xf32>
    %c0_84 = arith.constant 0 : index
    %c147_85 = arith.constant 147 : index
    %105 = vector.load %arg5[%c0_84, %c147_85] : memref<8x1024xbf16, #tpu.memory_space<vmem>>, vector<8x768xbf16>
    %c0_86 = arith.constant 0 : index
    %c64_87 = arith.constant 64 : index
    %106 = vector.load %arg2[%c0_86, %c64_87] : memref<8x72xbf16, #tpu.memory_space<vmem>>, vector<8x8xbf16>
    %cst_88 = arith.constant dense<0.000000e+00> : vector<8x768xf32>
    %107 = tpu.matmul %106, %105, %cst_88 {dimension_numbers = #tpu.dot_dimension_numbers<[1], [0], [0], [1], [0, 0, 1, 1], [], []>} : vector<8x8xbf16>, vector<8x768xbf16>, vector<8x768xf32> -> vector<8x768xf32>
    %108 = arith.addf %104, %107 : vector<8x768xf32>
    %c0_89 = arith.constant 0 : index
    %c2 = arith.constant 2 : index
    %109 = vector.load %arg3[%c0_89, %c2] : memref<8x4xf32, #tpu.memory_space<vmem>>, vector<8x1xf32>
    %c0_90 = arith.constant 0 : index
    %c3 = arith.constant 3 : index
    %110 = vector.load %arg3[%c0_90, %c3] : memref<8x4xf32, #tpu.memory_space<vmem>>, vector<8x1xf32>
    %111 = vector.broadcast %1 : vector<1x768xf32> to vector<8x768xf32>
    %112 = arith.mulf %108, %111 : vector<8x768xf32>
    %cst_91 = arith.constant dense<0.000000e+00> : vector<8xf32>
    %113 = vector.multi_reduction <add>, %112, %cst_91 [1] : vector<8x768xf32> to vector<8xf32>
    %114 = vector.shape_cast %113 : vector<8xf32> to vector<8x1xf32>
    %115 = arith.mulf %112, %112 : vector<8x768xf32>
    %cst_92 = arith.constant dense<0.000000e+00> : vector<8xf32>
    %116 = vector.multi_reduction <add>, %115, %cst_92 [1] : vector<8x768xf32> to vector<8xf32>
    %117 = vector.shape_cast %116 : vector<8xf32> to vector<8x1xf32>
    %cst_93 = arith.constant 0.001953125 : f32
    %118 = vector.broadcast %cst_93 : f32 to vector<8x1xf32>
    %119 = arith.mulf %114, %118 : vector<8x1xf32>
    %cst_94 = arith.constant 0.001953125 : f32
    %120 = vector.broadcast %cst_94 : f32 to vector<8x1xf32>
    %121 = arith.mulf %117, %120 : vector<8x1xf32>
    %122 = arith.mulf %119, %119 : vector<8x1xf32>
    %123 = arith.subf %121, %122 : vector<8x1xf32>
    %cst_95 = arith.constant 0.000000e+00 : f32
    %124 = vector.broadcast %cst_95 : f32 to vector<8x1xf32>
    %125 = arith.maximumf %123, %124 : vector<8x1xf32>
    %cst_96 = arith.constant 9.99999974E-6 : f32
    %126 = vector.broadcast %cst_96 : f32 to vector<8x1xf32>
    %127 = arith.addf %125, %126 : vector<8x1xf32>
    %128 = math.rsqrt %127 : vector<8x1xf32>
    %129 = arith.mulf %109, %128 : vector<8x1xf32>
    %130 = arith.mulf %119, %129 : vector<8x1xf32>
    %131 = arith.subf %110, %130 : vector<8x1xf32>
    %132 = vector.broadcast %129 : vector<8x1xf32> to vector<8x768xf32>
    %133 = arith.mulf %108, %132 : vector<8x768xf32>
    %134 = vector.broadcast %131 : vector<8x1xf32> to vector<8x768xf32>
    %135 = arith.addf %133, %134 : vector<8x768xf32>
    %cst_97 = arith.constant 0.000000e+00 : f32
    %136 = vector.broadcast %cst_97 : f32 to vector<8x768xf32>
    %137 = arith.maximumf %135, %136 : vector<8x768xf32>
    %c0_98 = arith.constant 0 : index
    %c0_99 = arith.constant 0 : index
    %138 = vector.load %arg4[%c0_98, %c0_99] : memref<8x768xf32, #tpu.memory_space<vmem>>, vector<8x768xf32>
    tpu.vector_store %arg4[%c0_98, %c0_99], %137 {strides = array<i32>} : memref<8x768xf32, #tpu.memory_space<vmem>>, vector<8x768xf32>,
    return
  }
}

</mosaic_0001>

<llo_original>
// kernel: tpu_custom_call.1
$region0: #{tpu_custom_call.1}
  #allocation0 [shape = 'u32[]', space=smem, size = 0x4, offset = 0x4, fixed_abs, tag = 'smem constant byte address 0x4 - core index']
  #allocation1 [shape = 'u32[144,128]{1,0:T(1,128)}', space=vmem, size = 0x12000, scoped, tag = 'internal scratch']
  #allocation2 [shape = 'bf16[8,1024]{1,0:T(8,128)(2,1)}', space=vmem, size = 0x4000, scoped, tag = 'scratch operand']
  %s0 = inlined_call_operand.hbm [shape: bf16[8,1024], index: 0, kind: input, shape index: {}]
  %s1 = inlined_call_operand.vmem [shape: bf16[8,72], index: 1, kind: input, shape index: {}]
  %s2 = inlined_call_operand.vmem [shape: bf16[8,72], index: 2, kind: input, shape index: {}]
  %s3 = inlined_call_operand.vmem [shape: f32[8,4], index: 3, kind: input, shape index: {}]
  %s4 = inlined_call_operand.hbm [shape: f32[8,768], index: 4, kind: output, shape index: {}]
  %s5 = sld [smem:[#allocation0]]
  $region30: #{tpu_custom_call.1} parent=0
    _
  %s7 = ssub.s32 1, %s5
  %s8 = scalar_select 0, %s7, %s5
  $region1: #{tpu_custom_call.1} parent=0
    #allocation3 [shape = 'u8[16384]{0}', space=vmem, size = 0x4000, scoped, tag = 'input window, operand 0, single buffered']
    #allocation4 [shape = 's32[1]{0}', space=sflag, size = 0x4, scoped, tag = 'scoped memory for tpu_custom_call.1']
    #allocation5 [shape = 's32[1]{0}', space=sflag, size = 0x4, scoped, tag = 'scoped memory for tpu_custom_call.1']
    #allocation6 [shape = 'u8[24576]{0}', space=vmem, size = 0x6000, scoped, tag = 'output window, operand 0, single buffered']
    %9 = vsyncpa [#allocation4], 0
    %10 = vsyncpa [#allocation5], 0
    // Predicated region
    $region2: #{tpu_custom_call.1} parent=1 // pred_check
      _
    $region3: #{tpu_custom_call.1} parent=1 // pred_check_branch
      %12 = sbr.rel (0) target = $region5
    $region4: #{tpu_custom_call.1} parent=1 // pred_region
      %s14 = ssub.s32 512, 512
      %15 = vsyncadd [#allocation4], %s14
      %s17 = sshll.u32 [#allocation3], 4
      %s18 = int_to_ptr.vmem [resolvable:$true] %s17
      %20 = dma.hbm_to_vmem [thread:$0]  %s0, 512, %s18, [#allocation4]
    $region5: #{tpu_custom_call.1} parent=1 // pred_fallthru
      _
    // Predicated region
    $region6: #{tpu_custom_call.1} parent=1 // pred_check
      _
    $region7: #{tpu_custom_call.1} parent=1 // pred_check_branch
      %22 = sbr.rel (0) target = $region9
    $region8: #{tpu_custom_call.1} parent=1 // pred_region
      _
    $region9: #{tpu_custom_call.1} parent=1 // pred_fallthru
      _
    // Predicated region
    $region10: #{tpu_custom_call.1} parent=1 // pred_check
      _
    $region11: #{tpu_custom_call.1} parent=1 // pred_check_branch
      %24 = sbr.rel (0) target = $region13
    $region12: #{tpu_custom_call.1} parent=1 // pred_region
      _
    $region13: #{tpu_custom_call.1} parent=1 // pred_fallthru
      _
    // Predicated region
    $region14: #{tpu_custom_call.1} parent=1 // pred_check
      _
    $region15: #{tpu_custom_call.1} parent=1 // pred_check_branch
      %26 = sbr.rel (0) target = $region17
    $region16: #{tpu_custom_call.1} parent=1 // pred_region
      _
    $region17: #{tpu_custom_call.1} parent=1 // pred_fallthru
      _
    // Predicated region
    $region18: #{tpu_custom_call.1} parent=1 // pred_check
      _
    $region19: #{tpu_custom_call.1} parent=1 // pred_check_branch
      %28 = sbr.rel (0) target = $region21
    $region20: #{tpu_custom_call.1} parent=1 // pred_region
      %29 = dma.done [#allocation4], 512
    $region21: #{tpu_custom_call.1} parent=1 // pred_fallthru
      _
    %v31 = vld [vmem:[#allocation3 + $0x4] sm:$0x44]
    %v32 = vld [vmem:[#allocation3 + $0xc] sm:$0x44]
    %v33 = vld [vmem:[#allocation3 + $0x14] sm:$0x44]
    %v34 = vunpack.c.l.bf16 %v31
    %v35 = vunpack.c.h.bf16 %v31
    %v36 = vunpack.c.l.bf16 %v32
    %v37 = vunpack.c.h.bf16 %v32
    %v38 = vunpack.c.l.bf16 %v33
    %v39 = vunpack.c.h.bf16 %v33
    %40 = vst [vmem:[#allocation2] sm:$0xf] 0
    %41 = vst [vmem:[#allocation2 + $0x1c] sm:$0xf] 0
    %v42 = vld [vmem:[#allocation3] sm:$0xff]
    %v43 = vld [vmem:[#allocation3 + $0x8] sm:$0xff]
    %v44 = vld [vmem:[#allocation3 + $0x10] sm:$0xff]
    %v45 = vld [vmem:[#allocation3 + $0x18] sm:$0xf]
    %v46 = vld [vmem:[%s1] sm:$0xf]
    %v48 = vunpack.c.l.b16 %v46
    %v49 = vpack.c.b16 %v48, %v48
    %50 = vrot.lane.b32.xlu0 %v49, 120
    %v51 = vpop.permute.xlu0 %50
    %v56 = vunpack.c.l.b16 %v42
    %v57 = vunpack.c.h.b16 %v42
    %v58 = vunpack.c.l.b16 %v43
    %v59 = vunpack.c.h.b16 %v43
    %v60 = vunpack.c.l.b16 %v44
    %v61 = vunpack.c.h.b16 %v44
    %v62 = vunpack.c.l.b16 %v45
    %v63 = vpack.c.b16 %v56, %v56
    %v64 = vpack.c.b16 %v57, %v57
    %v65 = vpack.c.b16 %v58, %v58
    %v66 = vpack.c.b16 %v59, %v59
    %v67 = vpack.c.b16 %v60, %v60
    %v68 = vpack.c.b16 %v61, %v61
    %v69 = vpack.c.b16 %v62, %v62
    %70 = vrot.lane.b32.xlu0 %v63, 18
    %v71 = vpop.permute.xlu0 %70
    %72 = vrot.lane.b32.xlu0 %v64, 18
    %v73 = vpop.permute.xlu0 %72
    %74 = vrot.lane.b32.xlu0 %v65, 18
    %v75 = vpop.permute.xlu0 %74
    %76 = vrot.lane.b32.xlu0 %v66, 18
    %v77 = vpop.permute.xlu0 %76
    %78 = vrot.lane.b32.xlu0 %v67, 18
    %v79 = vpop.permute.xlu0 %78
    %80 = vrot.lane.b32.xlu0 %v68, 18
    %v81 = vpop.permute.xlu0 %80
    %82 = vrot.lane.b32.xlu0 %v69, 18
    %v83 = vpop.permute.xlu0 %82
    %vm84 = vcmask 146432
    %v85 = vsel %vm84, %v71, %v73
    %v86 = vsel %vm84, %v73, %v75
    %v87 = vsel %vm84, %v75, %v77
    %v88 = vsel %vm84, %v77, %v79
    %v89 = vsel %vm84, %v79, %v81
    %v90 = vsel %vm84, %v81, %v83
    %vm91 = vcmask 64512
    %v93 = vsel %vm91, %v51, 0
    %vm95 = vcmask 1043456
    %v97 = vsel %vm95, %v85, 0
    %v100 = vsel %vm95, %v86, 0
    %v103 = vsel %vm95, %v87, 0
    %v106 = vsel %vm95, %v88, 0
    %v109 = vsel %vm95, %v89, 0
    %v112 = vsel %vm95, %v90, 0
    %114 = vmatprep.subr.bf16.mxu0 %v100
    %115 = vmatpush1.bf16.msra.mxu0 %v97
    %116 = vmatprep.subr.bf16.mxu0 0
    %117 = vmatpush1.bf16.msra.mxu0 0
    %118 = vmatprep.subr.bf16.mxu0 0
    %119 = vmatpush1.bf16.msra.mxu0 0
    %120 = vmatprep.subr.bf16.mxu0 0
    %121 = vmatpush1.bf16.msra.mxu0 0
    %122 = vmatprep.subr.bf16.mxu0 0
    %123 = vmatpush1.bf16.msra.mxu0 0
    %124 = vmatprep.subr.bf16.mxu0 0
    %125 = vmatpush1.bf16.msra.mxu0 0
    %126 = vmatprep.subr.bf16.mxu0 0
    %127 = vmatpush1.bf16.msra.mxu0 0
    %128 = vmatprep.subr.bf16.mxu0 0
    %129 = vmatpush1.bf16.msra.mxu0 0
    %130 = vmatprep.subr.bf16.mxu0 0
    %131 = vmatpush1.bf16.msra.mxu0 0
    %132 = vmatprep.subr.bf16.mxu0 0
    %133 = vmatpush1.bf16.msra.mxu0 0
    %134 = vmatprep.subr.bf16.mxu0 0
    %135 = vmatpush1.bf16.msra.mxu0 0
    %136 = vmatprep.subr.bf16.mxu0 0
    %137 = vmatpush1.bf16.msra.mxu0 0
    %138 = vmatprep.subr.bf16.mxu0 0
    %139 = vmatpush1.bf16.msra.mxu0 0
    %140 = vmatprep.subr.bf16.mxu0 0
    %141 = vmatpush1.bf16.msra.mxu0 0
    %142 = vmatprep.subr.bf16.mxu0 0
    %143 = vmatpush1.bf16.msra.mxu0 0
    %144 = vmatprep.subr.bf16.mxu0 0
    %145 = vmatpush1.bf16.msra.mxu0 0
    %146 = vmatprep.mubr.bf16.mxu0 0
    %147 = vmatmul.mubr.bf16.gmra.mrb[0].mxu0 %v93
    %v148 = vpop.f32.mrb[0].mxu0
    %v149 = vadd.f32 0.0, %v148
    %v150 = vpop.f32.mrb[0].mxu0
    %v151 = vadd.f32 0.0, %v150
    %v152 = vpop.f32.mrb[0].mxu0
    %v153 = vpop.f32.mrb[0].mxu0
    %154 = vdwg.mxu0
    %155 = vmatprep.subr.bf16.mxu0 %v106
    %156 = vmatpush1.bf16.msra.mxu0 %v103
    %157 = vmatprep.subr.bf16.mxu0 0
    %158 = vmatpush1.bf16.msra.mxu0 0
    %159 = vmatprep.subr.bf16.mxu0 0
    %160 = vmatpush1.bf16.msra.mxu0 0
    %161 = vmatprep.subr.bf16.mxu0 0
    %162 = vmatpush1.bf16.msra.mxu0 0
    %163 = vmatprep.subr.bf16.mxu0 0
    %164 = vmatpush1.bf16.msra.mxu0 0
    %165 = vmatprep.subr.bf16.mxu0 0
    %166 = vmatpush1.bf16.msra.mxu0 0
    %167 = vmatprep.subr.bf16.mxu0 0
    %168 = vmatpush1.bf16.msra.mxu0 0
    %169 = vmatprep.subr.bf16.mxu0 0
    %170 = vmatpush1.bf16.msra.mxu0 0
    %171 = vmatprep.subr.bf16.mxu0 0
    %172 = vmatpush1.bf16.msra.mxu0 0
    %173 = vmatprep.subr.bf16.mxu0 0
    %174 = vmatpush1.bf16.msra.mxu0 0
    %175 = vmatprep.subr.bf16.mxu0 0
    %176 = vmatpush1.bf16.msra.mxu0 0
    %177 = vmatprep.subr.bf16.mxu0 0
    %178 = vmatpush1.bf16.msra.mxu0 0
    %179 = vmatprep.subr.bf16.mxu0 0
    %180 = vmatpush1.bf16.msra.mxu0 0
    %181 = vmatprep.subr.bf16.mxu0 0
    %182 = vmatpush1.bf16.msra.mxu0 0
    %183 = vmatprep.subr.bf16.mxu0 0
    %184 = vmatpush1.bf16.msra.mxu0 0
    %185 = vmatprep.subr.bf16.mxu0 0
    %186 = vmatpush1.bf16.msra.mxu0 0
    %187 = vmatprep.mubr.bf16.mxu0 0
    %188 = vmatmul.mubr.bf16.gmra.mrb[0].mxu0 %v93
    %v189 = vpop.f32.mrb[0].mxu0
    %v190 = vadd.f32 0.0, %v189
    %v191 = vpop.f32.mrb[0].mxu0
    %v192 = vadd.f32 0.0, %v191
    %v193 = vpop.f32.mrb[0].mxu0
    %v194 = vpop.f32.mrb[0].mxu0
    %195 = vdwg.mxu0
    %196 = vmatprep.subr.bf16.mxu0 %v112
    %197 = vmatpush1.bf16.msra.mxu0 %v109
    %198 = vmatprep.subr.bf16.mxu0 0
    %199 = vmatpush1.bf16.msra.mxu0 0
    %200 = vmatprep.subr.bf16.mxu0 0
    %201 = vmatpush1.bf16.msra.mxu0 0
    %202 = vmatprep.subr.bf16.mxu0 0
    %203 = vmatpush1.bf16.msra.mxu0 0
    %204 = vmatprep.subr.bf16.mxu0 0
    %205 = vmatpush1.bf16.msra.mxu0 0
    %206 = vmatprep.subr.bf16.mxu0 0
    %207 = vmatpush1.bf16.msra.mxu0 0
    %208 = vmatprep.subr.bf16.mxu0 0
    %209 = vmatpush1.bf16.msra.mxu0 0
    %210 = vmatprep.subr.bf16.mxu0 0
    %211 = vmatpush1.bf16.msra.mxu0 0
    %212 = vmatprep.subr.bf16.mxu0 0
    %213 = vmatpush1.bf16.msra.mxu0 0
    %214 = vmatprep.subr.bf16.mxu0 0
    %215 = vmatpush1.bf16.msra.mxu0 0
    %216 = vmatprep.subr.bf16.mxu0 0
    %217 = vmatpush1.bf16.msra.mxu0 0
    %218 = vmatprep.subr.bf16.mxu0 0
    %219 = vmatpush1.bf16.msra.mxu0 0
    %220 = vmatprep.subr.bf16.mxu0 0
    %221 = vmatpush1.bf16.msra.mxu0 0
    %222 = vmatprep.subr.bf16.mxu0 0
    %223 = vmatpush1.bf16.msra.mxu0 0
    %224 = vmatprep.subr.bf16.mxu0 0
    %225 = vmatpush1.bf16.msra.mxu0 0
    %226 = vmatprep.subr.bf16.mxu0 0
    %227 = vmatpush1.bf16.msra.mxu0 0
    %228 = vmatprep.mubr.bf16.mxu0 0
    %229 = vmatmul.mubr.bf16.gmra.mrb[0].mxu0 %v93
    %v230 = vpop.f32.mrb[0].mxu0
    %v231 = vadd.f32 0.0, %v230
    %v232 = vpop.f32.mrb[0].mxu0
    %v233 = vadd.f32 0.0, %v232
    %v234 = vpop.f32.mrb[0].mxu0
    %v235 = vpop.f32.mrb[0].mxu0
    %236 = vdwg.mxu0
    %237 = vrot.lane.b32.xlu0 %v63, 19
    %v238 = vpop.permute.xlu0 %237
    %239 = vrot.lane.b32.xlu0 %v64, 19
    %v240 = vpop.permute.xlu0 %239
    %241 = vrot.lane.b32.xlu0 %v65, 19
    %v242 = vpop.permute.xlu0 %241
    %243 = vrot.lane.b32.xlu0 %v66, 19
    %v244 = vpop.permute.xlu0 %243
    %245 = vrot.lane.b32.xlu0 %v67, 19
    %v246 = vpop.permute.xlu0 %245
    %247 = vrot.lane.b32.xlu0 %v68, 19
    %v248 = vpop.permute.xlu0 %247
    %249 = vrot.lane.b32.xlu0 %v69, 19
    %v250 = vpop.permute.xlu0 %249
    %vm251 = vcmask 154624
    %v252 = vsel %vm251, %v238, %v240
    %v253 = vsel %vm251, %v240, %v242
    %v254 = vsel %vm251, %v242, %v244
    %v255 = vsel %vm251, %v244, %v246
    %v256 = vsel %vm251, %v246, %v248
    %v257 = vsel %vm251, %v248, %v250
    %v259 = vsel %vm91, %v46, 0
    %v262 = vsel %vm95, %v252, 0
    %v265 = vsel %vm95, %v253, 0
    %v268 = vsel %vm95, %v254, 0
    %v271 = vsel %vm95, %v255, 0
    %v274 = vsel %vm95, %v256, 0
    %v277 = vsel %vm95, %v257, 0
    %279 = vmatprep.subr.bf16.mxu0 %v265
    %280 = vmatpush1.bf16.msra.mxu0 %v262
    %281 = vmatprep.subr.bf16.mxu0 0
    %282 = vmatpush1.bf16.msra.mxu0 0
    %283 = vmatprep.subr.bf16.mxu0 0
    %284 = vmatpush1.bf16.msra.mxu0 0
    %285 = vmatprep.subr.bf16.mxu0 0
    %286 = vmatpush1.bf16.msra.mxu0 0
    %287 = vmatprep.subr.bf16.mxu0 0
    %288 = vmatpush1.bf16.msra.mxu0 0
    %289 = vmatprep.subr.bf16.mxu0 0
    %290 = vmatpush1.bf16.msra.mxu0 0
    %291 = vmatprep.subr.bf16.mxu0 0
    %292 = vmatpush1.bf16.msra.mxu0 0
    %293 = vmatprep.subr.bf16.mxu0 0
    %294 = vmatpush1.bf16.msra.mxu0 0
    %295 = vmatprep.subr.bf16.mxu0 0
    %296 = vmatpush1.bf16.msra.mxu0 0
    %297 = vmatprep.subr.bf16.mxu0 0
    %298 = vmatpush1.bf16.msra.mxu0 0
    %299 = vmatprep.subr.bf16.mxu0 0
    %300 = vmatpush1.bf16.msra.mxu0 0
    %301 = vmatprep.subr.bf16.mxu0 0
    %302 = vmatpush1.bf16.msra.mxu0 0
    %303 = vmatprep.subr.bf16.mxu0 0
    %304 = vmatpush1.bf16.msra.mxu0 0
    %305 = vmatprep.subr.bf16.mxu0 0
    %306 = vmatpush1.bf16.msra.mxu0 0
    %307 = vmatprep.subr.bf16.mxu0 0
    %308 = vmatpush1.bf16.msra.mxu0 0
    %309 = vmatprep.subr.bf16.mxu0 0
    %310 = vmatpush1.bf16.msra.mxu0 0
    %311 = vmatprep.mubr.bf16.mxu0 0
    %312 = vmatmul.mubr.bf16.gmra.mrb[0].mxu0 %v259
    %v313 = vpop.f32.mrb[0].mxu0
    %v314 = vadd.f32 %v149, %v313
    %v315 = vpop.f32.mrb[0].mxu0
    %v316 = vadd.f32 %v151, %v315
    %v317 = vpop.f32.mrb[0].mxu0
    %v318 = vpop.f32.mrb[0].mxu0
    %319 = vdwg.mxu0
    %320 = vmatprep.subr.bf16.mxu0 %v271
    %321 = vmatpush1.bf16.msra.mxu0 %v268
    %322 = vmatprep.subr.bf16.mxu0 0
    %323 = vmatpush1.bf16.msra.mxu0 0
    %324 = vmatprep.subr.bf16.mxu0 0
    %325 = vmatpush1.bf16.msra.mxu0 0
    %326 = vmatprep.subr.bf16.mxu0 0
    %327 = vmatpush1.bf16.msra.mxu0 0
    %328 = vmatprep.subr.bf16.mxu0 0
    %329 = vmatpush1.bf16.msra.mxu0 0
    %330 = vmatprep.subr.bf16.mxu0 0
    %331 = vmatpush1.bf16.msra.mxu0 0
    %332 = vmatprep.subr.bf16.mxu0 0
    %333 = vmatpush1.bf16.msra.mxu0 0
    %334 = vmatprep.subr.bf16.mxu0 0
    %335 = vmatpush1.bf16.msra.mxu0 0
    %336 = vmatprep.subr.bf16.mxu0 0
    %337 = vmatpush1.bf16.msra.mxu0 0
    %338 = vmatprep.subr.bf16.mxu0 0
    %339 = vmatpush1.bf16.msra.mxu0 0
    %340 = vmatprep.subr.bf16.mxu0 0
    %341 = vmatpush1.bf16.msra.mxu0 0
    %342 = vmatprep.subr.bf16.mxu0 0
    %343 = vmatpush1.bf16.msra.mxu0 0
    %344 = vmatprep.subr.bf16.mxu0 0
    %345 = vmatpush1.bf16.msra.mxu0 0
    %346 = vmatprep.subr.bf16.mxu0 0
    %347 = vmatpush1.bf16.msra.mxu0 0
    %348 = vmatprep.subr.bf16.mxu0 0
    %349 = vmatpush1.bf16.msra.mxu0 0
    %350 = vmatprep.subr.bf16.mxu0 0
    %351 = vmatpush1.bf16.msra.mxu0 0
    %352 = vmatprep.mubr.bf16.mxu0 0
    %353 = vmatmul.mubr.bf16.gmra.mrb[0].mxu0 %v259
    %v354 = vpop.f32.mrb[0].mxu0
    %v355 = vadd.f32 %v190, %v354
    %v356 = vpop.f32.mrb[0].mxu0
    %v357 = vadd.f32 %v192, %v356
    %v358 = vpop.f32.mrb[0].mxu0
    %v359 = vpop.f32.mrb[0].mxu0
    %360 = vdwg.mxu0
    %361 = vmatprep.subr.bf16.mxu0 %v277
    %362 = vmatpush1.bf16.msra.mxu0 %v274
    %363 = vmatprep.subr.bf16.mxu0 0
    %364 = vmatpush1.bf16.msra.mxu0 0
    %365 = vmatprep.subr.bf16.mxu0 0
    %366 = vmatpush1.bf16.msra.mxu0 0
    %367 = vmatprep.subr.bf16.mxu0 0
    %368 = vmatpush1.bf16.msra.mxu0 0
    %369 = vmatprep.subr.bf16.mxu0 0
    %370 = vmatpush1.bf16.msra.mxu0 0
    %371 = vmatprep.subr.bf16.mxu0 0
    %372 = vmatpush1.bf16.msra.mxu0 0
    %373 = vmatprep.subr.bf16.mxu0 0
    %374 = vmatpush1.bf16.msra.mxu0 0
    %375 = vmatprep.subr.bf16.mxu0 0
    %376 = vmatpush1.bf16.msra.mxu0 0
    %377 = vmatprep.subr.bf16.mxu0 0
    %378 = vmatpush1.bf16.msra.mxu0 0
    %379 = vmatprep.subr.bf16.mxu0 0
    %380 = vmatpush1.bf16.msra.mxu0 0
    %381 = vmatprep.subr.bf16.mxu0 0
    %382 = vmatpush1.bf16.msra.mxu0 0
    %383 = vmatprep.subr.bf16.mxu0 0
    %384 = vmatpush1.bf16.msra.mxu0 0
    %385 = vmatprep.subr.bf16.mxu0 0
    %386 = vmatpush1.bf16.msra.mxu0 0
    %387 = vmatprep.subr.bf16.mxu0 0
    %388 = vmatpush1.bf16.msra.mxu0 0
    %389 = vmatprep.subr.bf16.mxu0 0
    %390 = vmatpush1.bf16.msra.mxu0 0
    %391 = vmatprep.subr.bf16.mxu0 0
    %392 = vmatpush1.bf16.msra.mxu0 0
    %393 = vmatprep.mubr.bf16.mxu0 0
    %394 = vmatmul.mubr.bf16.gmra.mrb[0].mxu0 %v259
    %v395 = vpop.f32.mrb[0].mxu0
    %v396 = vadd.f32 %v231, %v395
    %v397 = vpop.f32.mrb[0].mxu0
    %v398 = vadd.f32 %v233, %v397
    %v399 = vpop.f32.mrb[0].mxu0
    %v400 = vpop.f32.mrb[0].mxu0
    %401 = vdwg.mxu0
    %402 = vrot.lane.b32.xlu0 %v49, 112
    %v403 = vpop.permute.xlu0 %402
    %404 = vrot.lane.b32.xlu0 %v63, 17
    %v405 = vpop.permute.xlu0 %404
    %406 = vrot.lane.b32.xlu0 %v64, 17
    %v407 = vpop.permute.xlu0 %406
    %408 = vrot.lane.b32.xlu0 %v65, 17
    %v409 = vpop.permute.xlu0 %408
    %410 = vrot.lane.b32.xlu0 %v66, 17
    %v411 = vpop.permute.xlu0 %410
    %412 = vrot.lane.b32.xlu0 %v67, 17
    %v413 = vpop.permute.xlu0 %412
    %414 = vrot.lane.b32.xlu0 %v68, 17
    %v415 = vpop.permute.xlu0 %414
    %416 = vrot.lane.b32.xlu0 %v69, 17
    %v417 = vpop.permute.xlu0 %416
    %vm418 = vcmask 138240
    %v419 = vsel %vm418, %v405, %v407
    %v420 = vsel %vm418, %v407, %v409
    %v421 = vsel %vm418, %v409, %v411
    %v422 = vsel %vm418, %v411, %v413
    %v423 = vsel %vm418, %v413, %v415
    %v424 = vsel %vm418, %v415, %v417
    %v426 = vsel %vm91, %v403, 0
    %v429 = vsel %vm95, %v419, 0
    %v432 = vsel %vm95, %v420, 0
    %v435 = vsel %vm95, %v421, 0
    %v438 = vsel %vm95, %v422, 0
    %v441 = vsel %vm95, %v423, 0
    %v444 = vsel %vm95, %v424, 0
    %446 = vmatprep.subr.bf16.mxu0 %v432
    %447 = vmatpush1.bf16.msra.mxu0 %v429
    %448 = vmatprep.subr.bf16.mxu0 0
    %449 = vmatpush1.bf16.msra.mxu0 0
    %450 = vmatprep.subr.bf16.mxu0 0
    %451 = vmatpush1.bf16.msra.mxu0 0
    %452 = vmatprep.subr.bf16.mxu0 0
    %453 = vmatpush1.bf16.msra.mxu0 0
    %454 = vmatprep.subr.bf16.mxu0 0
    %455 = vmatpush1.bf16.msra.mxu0 0
    %456 = vmatprep.subr.bf16.mxu0 0
    %457 = vmatpush1.bf16.msra.mxu0 0
    %458 = vmatprep.subr.bf16.mxu0 0
    %459 = vmatpush1.bf16.msra.mxu0 0
    %460 = vmatprep.subr.bf16.mxu0 0
    %461 = vmatpush1.bf16.msra.mxu0 0
    %462 = vmatprep.subr.bf16.mxu0 0
    %463 = vmatpush1.bf16.msra.mxu0 0
    %464 = vmatprep.subr.bf16.mxu0 0
    %465 = vmatpush1.bf16.msra.mxu0 0
    %466 = vmatprep.subr.bf16.mxu0 0
    %467 = vmatpush1.bf16.msra.mxu0 0
    %468 = vmatprep.subr.bf16.mxu0 0
    %469 = vmatpush1.bf16.msra.mxu0 0
    %470 = vmatprep.subr.bf16.mxu0 0
    %471 = vmatpush1.bf16.msra.mxu0 0
    %472 = vmatprep.subr.bf16.mxu0 0
    %473 = vmatpush1.bf16.msra.mxu0 0
    %474 = vmatprep.subr.bf16.mxu0 0
    %475 = vmatpush1.bf16.msra.mxu0 0
    %476 = vmatprep.subr.bf16.mxu0 0
    %477 = vmatpush1.bf16.msra.mxu0 0
    %478 = vmatprep.mubr.bf16.mxu0 0
    %479 = vmatmul.mubr.bf16.gmra.mrb[0].mxu0 %v426
    %v480 = vpop.f32.mrb[0].mxu0
    %v481 = vadd.f32 0.0, %v480
    %v482 = vpop.f32.mrb[0].mxu0
    %v483 = vadd.f32 0.0, %v482
    %v484 = vpop.f32.mrb[0].mxu0
    %v485 = vpop.f32.mrb[0].mxu0
    %486 = vdwg.mxu0
    %487 = vmatprep.subr.bf16.mxu0 %v438
    %488 = vmatpush1.bf16.msra.mxu0 %v435
    %489 = vmatprep.subr.bf16.mxu0 0
    %490 = vmatpush1.bf16.msra.mxu0 0
    %491 = vmatprep.subr.bf16.mxu0 0
    %492 = vmatpush1.bf16.msra.mxu0 0
    %493 = vmatprep.subr.bf16.mxu0 0
    %494 = vmatpush1.bf16.msra.mxu0 0
    %495 = vmatprep.subr.bf16.mxu0 0
    %496 = vmatpush1.bf16.msra.mxu0 0
    %497 = vmatprep.subr.bf16.mxu0 0
    %498 = vmatpush1.bf16.msra.mxu0 0
    %499 = vmatprep.subr.bf16.mxu0 0
    %500 = vmatpush1.bf16.msra.mxu0 0
    %501 = vmatprep.subr.bf16.mxu0 0
    %502 = vmatpush1.bf16.msra.mxu0 0
    %503 = vmatprep.subr.bf16.mxu0 0
    %504 = vmatpush1.bf16.msra.mxu0 0
    %505 = vmatprep.subr.bf16.mxu0 0
    %506 = vmatpush1.bf16.msra.mxu0 0
    %507 = vmatprep.subr.bf16.mxu0 0
    %508 = vmatpush1.bf16.msra.mxu0 0
    %509 = vmatprep.subr.bf16.mxu0 0
    %510 = vmatpush1.bf16.msra.mxu0 0
    %511 = vmatprep.subr.bf16.mxu0 0
    %512 = vmatpush1.bf16.msra.mxu0 0
    %513 = vmatprep.subr.bf16.mxu0 0
    %514 = vmatpush1.bf16.msra.mxu0 0
    %515 = vmatprep.subr.bf16.mxu0 0
    %516 = vmatpush1.bf16.msra.mxu0 0
    %517 = vmatprep.subr.bf16.mxu0 0
    %518 = vmatpush1.bf16.msra.mxu0 0
    %519 = vmatprep.mubr.bf16.mxu0 0
    %520 = vmatmul.mubr.bf16.gmra.mrb[0].mxu0 %v426
    %v521 = vpop.f32.mrb[0].mxu0
    %v522 = vadd.f32 0.0, %v521
    %v523 = vpop.f32.mrb[0].mxu0
    %v524 = vadd.f32 0.0, %v523
    %v525 = vpop.f32.mrb[0].mxu0
    %v526 = vpop.f32.mrb[0].mxu0
    %527 = vdwg.mxu0
    %528 = vmatprep.subr.bf16.mxu0 %v444
    %529 = vmatpush1.bf16.msra.mxu0 %v441
    %530 = vmatprep.subr.bf16.mxu0 0
    %531 = vmatpush1.bf16.msra.mxu0 0
    %532 = vmatprep.subr.bf16.mxu0 0
    %533 = vmatpush1.bf16.msra.mxu0 0
    %534 = vmatprep.subr.bf16.mxu0 0
    %535 = vmatpush1.bf16.msra.mxu0 0
    %536 = vmatprep.subr.bf16.mxu0 0
    %537 = vmatpush1.bf16.msra.mxu0 0
    %538 = vmatprep.subr.bf16.mxu0 0
    %539 = vmatpush1.bf16.msra.mxu0 0
    %540 = vmatprep.subr.bf16.mxu0 0
    %541 = vmatpush1.bf16.msra.mxu0 0
    %542 = vmatprep.subr.bf16.mxu0 0
    %543 = vmatpush1.bf16.msra.mxu0 0
    %544 = vmatprep.subr.bf16.mxu0 0
    %545 = vmatpush1.bf16.msra.mxu0 0
    %546 = vmatprep.subr.bf16.mxu0 0
    %547 = vmatpush1.bf16.msra.mxu0 0
    %548 = vmatprep.subr.bf16.mxu0 0
    %549 = vmatpush1.bf16.msra.mxu0 0
    %550 = vmatprep.subr.bf16.mxu0 0
    %551 = vmatpush1.bf16.msra.mxu0 0
    %552 = vmatprep.subr.bf16.mxu0 0
    %553 = vmatpush1.bf16.msra.mxu0 0
    %554 = vmatprep.subr.bf16.mxu0 0
    %555 = vmatpush1.bf16.msra.mxu0 0
    %556 = vmatprep.subr.bf16.mxu0 0
    %557 = vmatpush1.bf16.msra.mxu0 0
    %558 = vmatprep.subr.bf16.mxu0 0
    %559 = vmatpush1.bf16.msra.mxu0 0
    %560 = vmatprep.mubr.bf16.mxu0 0
    %561 = vmatmul.mubr.bf16.gmra.mrb[0].mxu0 %v426
    %v562 = vpop.f32.mrb[0].mxu0
    %v563 = vadd.f32 0.0, %v562
    %v564 = vpop.f32.mrb[0].mxu0
    %v565 = vadd.f32 0.0, %v564
    %v566 = vpop.f32.mrb[0].mxu0
    %v567 = vpop.f32.mrb[0].mxu0
    %568 = vdwg.mxu0
    %v569 = vadd.f32 %v314, %v481
    %v570 = vadd.f32 %v316, %v483
    %v571 = vadd.f32 %v355, %v522
    %v572 = vadd.f32 %v357, %v524
    %v573 = vadd.f32 %v396, %v563
    %v574 = vadd.f32 %v398, %v565
    %575 = vrot.lane.b32.xlu0 %v49, 104
    %v576 = vpop.permute.xlu0 %575
    %577 = vrot.lane.b32.xlu0 %v63, 1
    %v578 = vpop.permute.xlu0 %577
    %579 = vrot.lane.b32.xlu0 %v64, 1
    %v580 = vpop.permute.xlu0 %579
    %581 = vrot.lane.b32.xlu0 %v65, 1
    %v582 = vpop.permute.xlu0 %581
    %583 = vrot.lane.b32.xlu0 %v66, 1
    %v584 = vpop.permute.xlu0 %583
    %585 = vrot.lane.b32.xlu0 %v67, 1
    %v586 = vpop.permute.xlu0 %585
    %587 = vrot.lane.b32.xlu0 %v68, 1
    %v588 = vpop.permute.xlu0 %587
    %589 = vrot.lane.b32.xlu0 %v69, 1
    %v590 = vpop.permute.xlu0 %589
    %vm591 = vcmask 7168
    %v592 = vsel %vm591, %v578, %v580
    %v593 = vsel %vm591, %v580, %v582
    %v594 = vsel %vm591, %v582, %v584
    %v595 = vsel %vm591, %v584, %v586
    %v596 = vsel %vm591, %v586, %v588
    %v597 = vsel %vm591, %v588, %v590
    %v599 = vsel %vm91, %v576, 0
    %v602 = vsel %vm95, %v592, 0
    %v605 = vsel %vm95, %v593, 0
    %v608 = vsel %vm95, %v594, 0
    %v611 = vsel %vm95, %v595, 0
    %v614 = vsel %vm95, %v596, 0
    %v617 = vsel %vm95, %v597, 0
    %619 = vmatprep.subr.bf16.mxu0 %v605
    %620 = vmatpush1.bf16.msra.mxu0 %v602
    %621 = vmatprep.subr.bf16.mxu0 0
    %622 = vmatpush1.bf16.msra.mxu0 0
    %623 = vmatprep.subr.bf16.mxu0 0
    %624 = vmatpush1.bf16.msra.mxu0 0
    %625 = vmatprep.subr.bf16.mxu0 0
    %626 = vmatpush1.bf16.msra.mxu0 0
    %627 = vmatprep.subr.bf16.mxu0 0
    %628 = vmatpush1.bf16.msra.mxu0 0
    %629 = vmatprep.subr.bf16.mxu0 0
    %630 = vmatpush1.bf16.msra.mxu0 0
    %631 = vmatprep.subr.bf16.mxu0 0
    %632 = vmatpush1.bf16.msra.mxu0 0
    %633 = vmatprep.subr.bf16.mxu0 0
    %634 = vmatpush1.bf16.msra.mxu0 0
    %635 = vmatprep.subr.bf16.mxu0 0
    %636 = vmatpush1.bf16.msra.mxu0 0
    %637 = vmatprep.subr.bf16.mxu0 0
    %638 = vmatpush1.bf16.msra.mxu0 0
    %639 = vmatprep.subr.bf16.mxu0 0
    %640 = vmatpush1.bf16.msra.mxu0 0
    %641 = vmatprep.subr.bf16.mxu0 0
    %642 = vmatpush1.bf16.msra.mxu0 0
    %643 = vmatprep.subr.bf16.mxu0 0
    %644 = vmatpush1.bf16.msra.mxu0 0
    %645 = vmatprep.subr.bf16.mxu0 0
    %646 = vmatpush1.bf16.msra.mxu0 0
    %647 = vmatprep.subr.bf16.mxu0 0
    %648 = vmatpush1.bf16.msra.mxu0 0
    %649 = vmatprep.subr.bf16.mxu0 0
    %650 = vmatpush1.bf16.msra.mxu0 0
    %651 = vmatprep.mubr.bf16.mxu0 0
    %652 = vmatmul.mubr.bf16.gmra.mrb[0].mxu0 %v599
    %v653 = vpop.f32.mrb[0].mxu0
    %v654 = vadd.f32 0.0, %v653
    %v655 = vpop.f32.mrb[0].mxu0
    %v656 = vadd.f32 0.0, %v655
    %v657 = vpop.f32.mrb[0].mxu0
    %v658 = vpop.f32.mrb[0].mxu0
    %659 = vdwg.mxu0
    %660 = vmatprep.subr.bf16.mxu0 %v611
    %661 = vmatpush1.bf16.msra.mxu0 %v608
    %662 = vmatprep.subr.bf16.mxu0 0
    %663 = vmatpush1.bf16.msra.mxu0 0
    %664 = vmatprep.subr.bf16.mxu0 0
    %665 = vmatpush1.bf16.msra.mxu0 0
    %666 = vmatprep.subr.bf16.mxu0 0
    %667 = vmatpush1.bf16.msra.mxu0 0
    %668 = vmatprep.subr.bf16.mxu0 0
    %669 = vmatpush1.bf16.msra.mxu0 0
    %670 = vmatprep.subr.bf16.mxu0 0
    %671 = vmatpush1.bf16.msra.mxu0 0
    %672 = vmatprep.subr.bf16.mxu0 0
    %673 = vmatpush1.bf16.msra.mxu0 0
    %674 = vmatprep.subr.bf16.mxu0 0
    %675 = vmatpush1.bf16.msra.mxu0 0
    %676 = vmatprep.subr.bf16.mxu0 0
    %677 = vmatpush1.bf16.msra.mxu0 0
    %678 = vmatprep.subr.bf16.mxu0 0
    %679 = vmatpush1.bf16.msra.mxu0 0
    %680 = vmatprep.subr.bf16.mxu0 0
    %681 = vmatpush1.bf16.msra.mxu0 0
    %682 = vmatprep.subr.bf16.mxu0 0
    %683 = vmatpush1.bf16.msra.mxu0 0
    %684 = vmatprep.subr.bf16.mxu0 0
    %685 = vmatpush1.bf16.msra.mxu0 0
    %686 = vmatprep.subr.bf16.mxu0 0
    %687 = vmatpush1.bf16.msra.mxu0 0
    %688 = vmatprep.subr.bf16.mxu0 0
    %689 = vmatpush1.bf16.msra.mxu0 0
    %690 = vmatprep.subr.bf16.mxu0 0
    %691 = vmatpush1.bf16.msra.mxu0 0
    %692 = vmatprep.mubr.bf16.mxu0 0
    %693 = vmatmul.mubr.bf16.gmra.mrb[0].mxu0 %v599
    %v694 = vpop.f32.mrb[0].mxu0
    %v695 = vadd.f32 0.0, %v694
    %v696 = vpop.f32.mrb[0].mxu0
    %v697 = vadd.f32 0.0, %v696
    %v698 = vpop.f32.mrb[0].mxu0
    %v699 = vpop.f32.mrb[0].mxu0
    %700 = vdwg.mxu0
    %701 = vmatprep.subr.bf16.mxu0 %v617
    %702 = vmatpush1.bf16.msra.mxu0 %v614
    %703 = vmatprep.subr.bf16.mxu0 0
    %704 = vmatpush1.bf16.msra.mxu0 0
    %705 = vmatprep.subr.bf16.mxu0 0
    %706 = vmatpush1.bf16.msra.mxu0 0
    %707 = vmatprep.subr.bf16.mxu0 0
    %708 = vmatpush1.bf16.msra.mxu0 0
    %709 = vmatprep.subr.bf16.mxu0 0
    %710 = vmatpush1.bf16.msra.mxu0 0
    %711 = vmatprep.subr.bf16.mxu0 0
    %712 = vmatpush1.bf16.msra.mxu0 0
    %713 = vmatprep.subr.bf16.mxu0 0
    %714 = vmatpush1.bf16.msra.mxu0 0
    %715 = vmatprep.subr.bf16.mxu0 0
    %716 = vmatpush1.bf16.msra.mxu0 0
    %717 = vmatprep.subr.bf16.mxu0 0
    %718 = vmatpush1.bf16.msra.mxu0 0
    %719 = vmatprep.subr.bf16.mxu0 0
    %720 = vmatpush1.bf16.msra.mxu0 0
    %721 = vmatprep.subr.bf16.mxu0 0
    %722 = vmatpush1.bf16.msra.mxu0 0
    %723 = vmatprep.subr.bf16.mxu0 0
    %724 = vmatpush1.bf16.msra.mxu0 0
    %725 = vmatprep.subr.bf16.mxu0 0
    %726 = vmatpush1.bf16.msra.mxu0 0
    %727 = vmatprep.subr.bf16.mxu0 0
    %728 = vmatpush1.bf16.msra.mxu0 0
    %729 = vmatprep.subr.bf16.mxu0 0
    %730 = vmatpush1.bf16.msra.mxu0 0
    %731 = vmatprep.subr.bf16.mxu0 0
    %732 = vmatpush1.bf16.msra.mxu0 0
    %733 = vmatprep.mubr.bf16.mxu0 0
    %734 = vmatmul.mubr.bf16.gmra.mrb[0].mxu0 %v599
    %v735 = vpop.f32.mrb[0].mxu0
    %v736 = vadd.f32 0.0, %v735
    %v737 = vpop.f32.mrb[0].mxu0
    %v738 = vadd.f32 0.0, %v737
    %v739 = vpop.f32.mrb[0].mxu0
    %v740 = vpop.f32.mrb[0].mxu0
    %741 = vdwg.mxu0
    %v742 = vadd.f32 %v569, %v654
    %v743 = vadd.f32 %v570, %v656
    %v744 = vadd.f32 %v571, %v695
    %v745 = vadd.f32 %v572, %v697
    %v746 = vadd.f32 %v573, %v736
    %v747 = vadd.f32 %v574, %v738
    %v748 = vld [vmem:[#allocation3 + $0x4] sm:$0xff]
    %v749 = vld [vmem:[#allocation3 + $0xc] sm:$0xff]
    %v750 = vld [vmem:[#allocation3 + $0x14] sm:$0xff]
    %751 = vrot.lane.b32.xlu0 %v49, 96
    %v752 = vpop.permute.xlu0 %751
    %v756 = vunpack.c.l.b16 %v748
    %v757 = vunpack.c.h.b16 %v748
    %v758 = vunpack.c.l.b16 %v749
    %v759 = vunpack.c.h.b16 %v749
    %v760 = vunpack.c.l.b16 %v750
    %v761 = vunpack.c.h.b16 %v750
    %v762 = vpack.c.b16 %v756, %v756
    %v763 = vpack.c.b16 %v757, %v757
    %v764 = vpack.c.b16 %v758, %v758
    %v765 = vpack.c.b16 %v759, %v759
    %v766 = vpack.c.b16 %v760, %v760
    %v767 = vpack.c.b16 %v761, %v761
    %v769 = vsel %vm91, %v752, 0
    %v772 = vsel %vm95, %v762, 0
    %v775 = vsel %vm95, %v763, 0
    %v778 = vsel %vm95, %v764, 0
    %v781 = vsel %vm95, %v765, 0
    %v784 = vsel %vm95, %v766, 0
    %v787 = vsel %vm95, %v767, 0
    %789 = vmatprep.subr.bf16.mxu0 %v775
    %790 = vmatpush1.bf16.msra.mxu0 %v772
    %791 = vmatprep.subr.bf16.mxu0 0
    %792 = vmatpush1.bf16.msra.mxu0 0
    %793 = vmatprep.subr.bf16.mxu0 0
    %794 = vmatpush1.bf16.msra.mxu0 0
    %795 = vmatprep.subr.bf16.mxu0 0
    %796 = vmatpush1.bf16.msra.mxu0 0
    %797 = vmatprep.subr.bf16.mxu0 0
    %798 = vmatpush1.bf16.msra.mxu0 0
    %799 = vmatprep.subr.bf16.mxu0 0
    %800 = vmatpush1.bf16.msra.mxu0 0
    %801 = vmatprep.subr.bf16.mxu0 0
    %802 = vmatpush1.bf16.msra.mxu0 0
    %803 = vmatprep.subr.bf16.mxu0 0
    %804 = vmatpush1.bf16.msra.mxu0 0
    %805 = vmatprep.subr.bf16.mxu0 0
    %806 = vmatpush1.bf16.msra.mxu0 0
    %807 = vmatprep.subr.bf16.mxu0 0
    %808 = vmatpush1.bf16.msra.mxu0 0
    %809 = vmatprep.subr.bf16.mxu0 0
    %810 = vmatpush1.bf16.msra.mxu0 0
    %811 = vmatprep.subr.bf16.mxu0 0
    %812 = vmatpush1.bf16.msra.mxu0 0
    %813 = vmatprep.subr.bf16.mxu0 0
    %814 = vmatpush1.bf16.msra.mxu0 0
    %815 = vmatprep.subr.bf16.mxu0 0
    %816 = vmatpush1.bf16.msra.mxu0 0
    %817 = vmatprep.subr.bf16.mxu0 0
    %818 = vmatpush1.bf16.msra.mxu0 0
    %819 = vmatprep.subr.bf16.mxu0 0
    %820 = vmatpush1.bf16.msra.mxu0 0
    %821 = vmatprep.mubr.bf16.mxu0 0
    %822 = vmatmul.mubr.bf16.gmra.mrb[0].mxu0 %v769
    %v823 = vpop.f32.mrb[0].mxu0
    %v824 = vadd.f32 0.0, %v823
    %v825 = vpop.f32.mrb[0].mxu0
    %v826 = vadd.f32 0.0, %v825
    %v827 = vpop.f32.mrb[0].mxu0
    %v828 = vpop.f32.mrb[0].mxu0
    %829 = vdwg.mxu0
    %830 = vmatprep.subr.bf16.mxu0 %v781
    %831 = vmatpush1.bf16.msra.mxu0 %v778
    %832 = vmatprep.subr.bf16.mxu0 0
    %833 = vmatpush1.bf16.msra.mxu0 0
    %834 = vmatprep.subr.bf16.mxu0 0
    %835 = vmatpush1.bf16.msra.mxu0 0
    %836 = vmatprep.subr.bf16.mxu0 0
    %837 = vmatpush1.bf16.msra.mxu0 0
    %838 = vmatprep.subr.bf16.mxu0 0
    %839 = vmatpush1.bf16.msra.mxu0 0
    %840 = vmatprep.subr.bf16.mxu0 0
    %841 = vmatpush1.bf16.msra.mxu0 0
    %842 = vmatprep.subr.bf16.mxu0 0
    %843 = vmatpush1.bf16.msra.mxu0 0
    %844 = vmatprep.subr.bf16.mxu0 0
    %845 = vmatpush1.bf16.msra.mxu0 0
    %846 = vmatprep.subr.bf16.mxu0 0
    %847 = vmatpush1.bf16.msra.mxu0 0
    %848 = vmatprep.subr.bf16.mxu0 0
    %849 = vmatpush1.bf16.msra.mxu0 0
    %850 = vmatprep.subr.bf16.mxu0 0
    %851 = vmatpush1.bf16.msra.mxu0 0
    %852 = vmatprep.subr.bf16.mxu0 0
    %853 = vmatpush1.bf16.msra.mxu0 0
    %854 = vmatprep.subr.bf16.mxu0 0
    %855 = vmatpush1.bf16.msra.mxu0 0
    %856 = vmatprep.subr.bf16.mxu0 0
    %857 = vmatpush1.bf16.msra.mxu0 0
    %858 = vmatprep.subr.bf16.mxu0 0
    %859 = vmatpush1.bf16.msra.mxu0 0
    %860 = vmatprep.subr.bf16.mxu0 0
    %861 = vmatpush1.bf16.msra.mxu0 0
    %862 = vmatprep.mubr.bf16.mxu0 0
    %863 = vmatmul.mubr.bf16.gmra.mrb[0].mxu0 %v769
    %v864 = vpop.f32.mrb[0].mxu0
    %v865 = vadd.f32 0.0, %v864
    %v866 = vpop.f32.mrb[0].mxu0
    %v867 = vadd.f32 0.0, %v866
    %v868 = vpop.f32.mrb[0].mxu0
    %v869 = vpop.f32.mrb[0].mxu0
    %870 = vdwg.mxu0
    %871 = vmatprep.subr.bf16.mxu0 %v787
    %872 = vmatpush1.bf16.msra.mxu0 %v784
    %873 = vmatprep.subr.bf16.mxu0 0
    %874 = vmatpush1.bf16.msra.mxu0 0
    %875 = vmatprep.subr.bf16.mxu0 0
    %876 = vmatpush1.bf16.msra.mxu0 0
    %877 = vmatprep.subr.bf16.mxu0 0
    %878 = vmatpush1.bf16.msra.mxu0 0
    %879 = vmatprep.subr.bf16.mxu0 0
    %880 = vmatpush1.bf16.msra.mxu0 0
    %881 = vmatprep.subr.bf16.mxu0 0
    %882 = vmatpush1.bf16.msra.mxu0 0
    %883 = vmatprep.subr.bf16.mxu0 0
    %884 = vmatpush1.bf16.msra.mxu0 0
    %885 = vmatprep.subr.bf16.mxu0 0
    %886 = vmatpush1.bf16.msra.mxu0 0
    %887 = vmatprep.subr.bf16.mxu0 0
    %888 = vmatpush1.bf16.msra.mxu0 0
    %889 = vmatprep.subr.bf16.mxu0 0
    %890 = vmatpush1.bf16.msra.mxu0 0
    %891 = vmatprep.subr.bf16.mxu0 0
    %892 = vmatpush1.bf16.msra.mxu0 0
    %893 = vmatprep.subr.bf16.mxu0 0
    %894 = vmatpush1.bf16.msra.mxu0 0
    %895 = vmatprep.subr.bf16.mxu0 0
    %896 = vmatpush1.bf16.msra.mxu0 0
    %897 = vmatprep.subr.bf16.mxu0 0
    %898 = vmatpush1.bf16.msra.mxu0 0
    %899 = vmatprep.subr.bf16.mxu0 0
    %900 = vmatpush1.bf16.msra.mxu0 0
    %901 = vmatprep.subr.bf16.mxu0 0
    %902 = vmatpush1.bf16.msra.mxu0 0
    %903 = vmatprep.mubr.bf16.mxu0 0
    %904 = vmatmul.mubr.bf16.gmra.mrb[0].mxu0 %v769
    %v905 = vpop.f32.mrb[0].mxu0
    %v906 = vadd.f32 0.0, %v905
    %v907 = vpop.f32.mrb[0].mxu0
    %v908 = vadd.f32 0.0, %v907
    %v909 = vpop.f32.mrb[0].mxu0
    %v910 = vpop.f32.mrb[0].mxu0
    %911 = vdwg.mxu0
    %v912 = vadd.f32 %v742, %v824
    %v913 = vadd.f32 %v743, %v826
    %v914 = vadd.f32 %v744, %v865
    %v915 = vadd.f32 %v745, %v867
    %v916 = vadd.f32 %v746, %v906
    %v917 = vadd.f32 %v747, %v908
    %v918 = vld [vmem:[#allocation3 + $0x4] sm:$0xff]
    %v919 = vld [vmem:[#allocation3 + $0xc] sm:$0xff]
    %v920 = vld [vmem:[#allocation3 + $0x14] sm:$0xff]
    %v921 = vld [vmem:[#allocation3 + $0x1c] sm:$0xf]
    %922 = vrot.lane.b32.xlu0 %v49, 88
    %v923 = vpop.permute.xlu0 %922
    %v928 = vunpack.c.l.b16 %v918
    %v929 = vunpack.c.h.b16 %v918
    %v930 = vunpack.c.l.b16 %v919
    %v931 = vunpack.c.h.b16 %v919
    %v932 = vunpack.c.l.b16 %v920
    %v933 = vunpack.c.h.b16 %v920
    %v934 = vunpack.c.l.b16 %v921
    %v935 = vpack.c.b16 %v928, %v928
    %v936 = vpack.c.b16 %v929, %v929
    %v937 = vpack.c.b16 %v930, %v930
    %v938 = vpack.c.b16 %v931, %v931
    %v939 = vpack.c.b16 %v932, %v932
    %v940 = vpack.c.b16 %v933, %v933
    %v941 = vpack.c.b16 %v934, %v934
    %942 = vrot.lane.b32.xlu0 %v935, 127
    %v943 = vpop.permute.xlu0 %942
    %944 = vrot.lane.b32.xlu0 %v936, 127
    %v945 = vpop.permute.xlu0 %944
    %946 = vrot.lane.b32.xlu0 %v937, 127
    %v947 = vpop.permute.xlu0 %946
    %948 = vrot.lane.b32.xlu0 %v938, 127
    %v949 = vpop.permute.xlu0 %948
    %950 = vrot.lane.b32.xlu0 %v939, 127
    %v951 = vpop.permute.xlu0 %950
    %952 = vrot.lane.b32.xlu0 %v940, 127
    %v953 = vpop.permute.xlu0 %952
    %954 = vrot.lane.b32.xlu0 %v941, 127
    %v955 = vpop.permute.xlu0 %954
    %vm956 = vcmask 1039360
    %v957 = vsel %vm956, %v943, %v945
    %v958 = vsel %vm956, %v945, %v947
    %v959 = vsel %vm956, %v947, %v949
    %v960 = vsel %vm956, %v949, %v951
    %v961 = vsel %vm956, %v951, %v953
    %v962 = vsel %vm956, %v953, %v955
    %v964 = vsel %vm91, %v923, 0
    %v967 = vsel %vm95, %v957, 0
    %v970 = vsel %vm95, %v958, 0
    %v973 = vsel %vm95, %v959, 0
    %v976 = vsel %vm95, %v960, 0
    %v979 = vsel %vm95, %v961, 0
    %v982 = vsel %vm95, %v962, 0
    %984 = vmatprep.subr.bf16.mxu0 %v970
    %985 = vmatpush1.bf16.msra.mxu0 %v967
    %986 = vmatprep.subr.bf16.mxu0 0
    %987 = vmatpush1.bf16.msra.mxu0 0
    %988 = vmatprep.subr.bf16.mxu0 0
    %989 = vmatpush1.bf16.msra.mxu0 0
    %990 = vmatprep.subr.bf16.mxu0 0
    %991 = vmatpush1.bf16.msra.mxu0 0
    %992 = vmatprep.subr.bf16.mxu0 0
    %993 = vmatpush1.bf16.msra.mxu0 0
    %994 = vmatprep.subr.bf16.mxu0 0
    %995 = vmatpush1.bf16.msra.mxu0 0
    %996 = vmatprep.subr.bf16.mxu0 0
    %997 = vmatpush1.bf16.msra.mxu0 0
    %998 = vmatprep.subr.bf16.mxu0 0
    %999 = vmatpush1.bf16.msra.mxu0 0
    %1000 = vmatprep.subr.bf16.mxu0 0
    %1001 = vmatpush1.bf16.msra.mxu0 0
    %1002 = vmatprep.subr.bf16.mxu0 0
    %1003 = vmatpush1.bf16.msra.mxu0 0
    %1004 = vmatprep.subr.bf16.mxu0 0
    %1005 = vmatpush1.bf16.msra.mxu0 0
    %1006 = vmatprep.subr.bf16.mxu0 0
    %1007 = vmatpush1.bf16.msra.mxu0 0
    %1008 = vmatprep.subr.bf16.mxu0 0
    %1009 = vmatpush1.bf16.msra.mxu0 0
    %1010 = vmatprep.subr.bf16.mxu0 0
    %1011 = vmatpush1.bf16.msra.mxu0 0
    %1012 = vmatprep.subr.bf16.mxu0 0
    %1013 = vmatpush1.bf16.msra.mxu0 0
    %1014 = vmatprep.subr.bf16.mxu0 0
    %1015 = vmatpush1.bf16.msra.mxu0 0
    %1016 = vmatprep.mubr.bf16.mxu0 0
    %1017 = vmatmul.mubr.bf16.gmra.mrb[0].mxu0 %v964
    %v1018 = vpop.f32.mrb[0].mxu0
    %v1019 = vadd.f32 0.0, %v1018
    %v1020 = vpop.f32.mrb[0].mxu0
    %v1021 = vadd.f32 0.0, %v1020
    %v1022 = vpop.f32.mrb[0].mxu0
    %v1023 = vpop.f32.mrb[0].mxu0
    %1024 = vdwg.mxu0
    %1025 = vmatprep.subr.bf16.mxu0 %v976
    %1026 = vmatpush1.bf16.msra.mxu0 %v973
    %1027 = vmatprep.subr.bf16.mxu0 0
    %1028 = vmatpush1.bf16.msra.mxu0 0
    %1029 = vmatprep.subr.bf16.mxu0 0
    %1030 = vmatpush1.bf16.msra.mxu0 0
    %1031 = vmatprep.subr.bf16.mxu0 0
    %1032 = vmatpush1.bf16.msra.mxu0 0
    %1033 = vmatprep.subr.bf16.mxu0 0
    %1034 = vmatpush1.bf16.msra.mxu0 0
    %1035 = vmatprep.subr.bf16.mxu0 0
    %1036 = vmatpush1.bf16.msra.mxu0 0
    %1037 = vmatprep.subr.bf16.mxu0 0
    %1038 = vmatpush1.bf16.msra.mxu0 0
    %1039 = vmatprep.subr.bf16.mxu0 0
    %1040 = vmatpush1.bf16.msra.mxu0 0
    %1041 = vmatprep.subr.bf16.mxu0 0
    %1042 = vmatpush1.bf16.msra.mxu0 0
    %1043 = vmatprep.subr.bf16.mxu0 0
    %1044 = vmatpush1.bf16.msra.mxu0 0
    %1045 = vmatprep.subr.bf16.mxu0 0
    %1046 = vmatpush1.bf16.msra.mxu0 0
    %1047 = vmatprep.subr.bf16.mxu0 0
    %1048 = vmatpush1.bf16.msra.mxu0 0
    %1049 = vmatprep.subr.bf16.mxu0 0
    %1050 = vmatpush1.bf16.msra.mxu0 0
    %1051 = vmatprep.subr.bf16.mxu0 0
    %1052 = vmatpush1.bf16.msra.mxu0 0
    %1053 = vmatprep.subr.bf16.mxu0 0
    %1054 = vmatpush1.bf16.msra.mxu0 0
    %1055 = vmatprep.subr.bf16.mxu0 0
    %1056 = vmatpush1.bf16.msra.mxu0 0
    %1057 = vmatprep.mubr.bf16.mxu0 0
    %1058 = vmatmul.mubr.bf16.gmra.mrb[0].mxu0 %v964
    %v1059 = vpop.f32.mrb[0].mxu0
    %v1060 = vadd.f32 0.0, %v1059
    %v1061 = vpop.f32.mrb[0].mxu0
    %v1062 = vadd.f32 0.0, %v1061
    %v1063 = vpop.f32.mrb[0].mxu0
    %v1064 = vpop.f32.mrb[0].mxu0
    %1065 = vdwg.mxu0
    %1066 = vmatprep.subr.bf16.mxu0 %v982
    %1067 = vmatpush1.bf16.msra.mxu0 %v979
    %1068 = vmatprep.subr.bf16.mxu0 0
    %1069 = vmatpush1.bf16.msra.mxu0 0
    %1070 = vmatprep.subr.bf16.mxu0 0
    %1071 = vmatpush1.bf16.msra.mxu0 0
    %1072 = vmatprep.subr.bf16.mxu0 0
    %1073 = vmatpush1.bf16.msra.mxu0 0
    %1074 = vmatprep.subr.bf16.mxu0 0
    %1075 = vmatpush1.bf16.msra.mxu0 0
    %1076 = vmatprep.subr.bf16.mxu0 0
    %1077 = vmatpush1.bf16.msra.mxu0 0
    %1078 = vmatprep.subr.bf16.mxu0 0
    %1079 = vmatpush1.bf16.msra.mxu0 0
    %1080 = vmatprep.subr.bf16.mxu0 0
    %1081 = vmatpush1.bf16.msra.mxu0 0
    %1082 = vmatprep.subr.bf16.mxu0 0
    %1083 = vmatpush1.bf16.msra.mxu0 0
    %1084 = vmatprep.subr.bf16.mxu0 0
    %1085 = vmatpush1.bf16.msra.mxu0 0
    %1086 = vmatprep.subr.bf16.mxu0 0
    %1087 = vmatpush1.bf16.msra.mxu0 0
    %1088 = vmatprep.subr.bf16.mxu0 0
    %1089 = vmatpush1.bf16.msra.mxu0 0
    %1090 = vmatprep.subr.bf16.mxu0 0
    %1091 = vmatpush1.bf16.msra.mxu0 0
    %1092 = vmatprep.subr.bf16.mxu0 0
    %1093 = vmatpush1.bf16.msra.mxu0 0
    %1094 = vmatprep.subr.bf16.mxu0 0
    %1095 = vmatpush1.bf16.msra.mxu0 0
    %1096 = vmatprep.subr.bf16.mxu0 0
    %1097 = vmatpush1.bf16.msra.mxu0 0
    %1098 = vmatprep.mubr.bf16.mxu0 0
    %1099 = vmatmul.mubr.bf16.gmra.mrb[0].mxu0 %v964
    %v1100 = vpop.f32.mrb[0].mxu0
    %v1101 = vadd.f32 0.0, %v1100
    %v1102 = vpop.f32.mrb[0].mxu0
    %v1103 = vadd.f32 0.0, %v1102
    %v1104 = vpop.f32.mrb[0].mxu0
    %v1105 = vpop.f32.mrb[0].mxu0
    %1106 = vdwg.mxu0
    %v1107 = vadd.f32 %v912, %v1019
    %v1108 = vadd.f32 %v913, %v1021
    %v1109 = vadd.f32 %v914, %v1060
    %v1110 = vadd.f32 %v915, %v1062
    %v1111 = vadd.f32 %v916, %v1101
    %v1112 = vadd.f32 %v917, %v1103
    %1113 = vrot.lane.b32.xlu0 %v49, 80
    %v1114 = vpop.permute.xlu0 %1113
    %1115 = vrot.lane.b32.xlu0 %v935, 111
    %v1116 = vpop.permute.xlu0 %1115
    %1117 = vrot.lane.b32.xlu0 %v936, 111
    %v1118 = vpop.permute.xlu0 %1117
    %1119 = vrot.lane.b32.xlu0 %v937, 111
    %v1120 = vpop.permute.xlu0 %1119
    %1121 = vrot.lane.b32.xlu0 %v938, 111
    %v1122 = vpop.permute.xlu0 %1121
    %1123 = vrot.lane.b32.xlu0 %v939, 111
    %v1124 = vpop.permute.xlu0 %1123
    %1125 = vrot.lane.b32.xlu0 %v940, 111
    %v1126 = vpop.permute.xlu0 %1125
    %1127 = vrot.lane.b32.xlu0 %v941, 111
    %v1128 = vpop.permute.xlu0 %1127
    %vm1129 = vcmask 908288
    %v1130 = vsel %vm1129, %v1116, %v1118
    %v1131 = vsel %vm1129, %v1118, %v1120
    %v1132 = vsel %vm1129, %v1120, %v1122
    %v1133 = vsel %vm1129, %v1122, %v1124
    %v1134 = vsel %vm1129, %v1124, %v1126
    %v1135 = vsel %vm1129, %v1126, %v1128
    %v1137 = vsel %vm91, %v1114, 0
    %v1140 = vsel %vm95, %v1130, 0
    %v1143 = vsel %vm95, %v1131, 0
    %v1146 = vsel %vm95, %v1132, 0
    %v1149 = vsel %vm95, %v1133, 0
    %v1152 = vsel %vm95, %v1134, 0
    %v1155 = vsel %vm95, %v1135, 0
    %1157 = vmatprep.subr.bf16.mxu0 %v1143
    %1158 = vmatpush1.bf16.msra.mxu0 %v1140
    %1159 = vmatprep.subr.bf16.mxu0 0
    %1160 = vmatpush1.bf16.msra.mxu0 0
    %1161 = vmatprep.subr.bf16.mxu0 0
    %1162 = vmatpush1.bf16.msra.mxu0 0
    %1163 = vmatprep.subr.bf16.mxu0 0
    %1164 = vmatpush1.bf16.msra.mxu0 0
    %1165 = vmatprep.subr.bf16.mxu0 0
    %1166 = vmatpush1.bf16.msra.mxu0 0
    %1167 = vmatprep.subr.bf16.mxu0 0
    %1168 = vmatpush1.bf16.msra.mxu0 0
    %1169 = vmatprep.subr.bf16.mxu0 0
    %1170 = vmatpush1.bf16.msra.mxu0 0
    %1171 = vmatprep.subr.bf16.mxu0 0
    %1172 = vmatpush1.bf16.msra.mxu0 0
    %1173 = vmatprep.subr.bf16.mxu0 0
    %1174 = vmatpush1.bf16.msra.mxu0 0
    %1175 = vmatprep.subr.bf16.mxu0 0
    %1176 = vmatpush1.bf16.msra.mxu0 0
    %1177 = vmatprep.subr.bf16.mxu0 0
    %1178 = vmatpush1.bf16.msra.mxu0 0
    %1179 = vmatprep.subr.bf16.mxu0 0
    %1180 = vmatpush1.bf16.msra.mxu0 0
    %1181 = vmatprep.subr.bf16.mxu0 0
    %1182 = vmatpush1.bf16.msra.mxu0 0
    %1183 = vmatprep.subr.bf16.mxu0 0
    %1184 = vmatpush1.bf16.msra.mxu0 0
    %1185 = vmatprep.subr.bf16.mxu0 0
    %1186 = vmatpush1.bf16.msra.mxu0 0
    %1187 = vmatprep.subr.bf16.mxu0 0
    %1188 = vmatpush1.bf16.msra.mxu0 0
    %1189 = vmatprep.mubr.bf16.mxu0 0
    %1190 = vmatmul.mubr.bf16.gmra.mrb[0].mxu0 %v1137
    %v1191 = vpop.f32.mrb[0].mxu0
    %v1192 = vadd.f32 0.0, %v1191
    %v1193 = vpop.f32.mrb[0].mxu0
    %v1194 = vadd.f32 0.0, %v1193
    %v1195 = vpop.f32.mrb[0].mxu0
    %v1196 = vpop.f32.mrb[0].mxu0
    %1197 = vdwg.mxu0
    %1198 = vmatprep.subr.bf16.mxu0 %v1149
    %1199 = vmatpush1.bf16.msra.mxu0 %v1146
    %1200 = vmatprep.subr.bf16.mxu0 0
    %1201 = vmatpush1.bf16.msra.mxu0 0
    %1202 = vmatprep.subr.bf16.mxu0 0
    %1203 = vmatpush1.bf16.msra.mxu0 0
    %1204 = vmatprep.subr.bf16.mxu0 0
    %1205 = vmatpush1.bf16.msra.mxu0 0
    %1206 = vmatprep.subr.bf16.mxu0 0
    %1207 = vmatpush1.bf16.msra.mxu0 0
    %1208 = vmatprep.subr.bf16.mxu0 0
    %1209 = vmatpush1.bf16.msra.mxu0 0
    %1210 = vmatprep.subr.bf16.mxu0 0
    %1211 = vmatpush1.bf16.msra.mxu0 0
    %1212 = vmatprep.subr.bf16.mxu0 0
    %1213 = vmatpush1.bf16.msra.mxu0 0
    %1214 = vmatprep.subr.bf16.mxu0 0
    %1215 = vmatpush1.bf16.msra.mxu0 0
    %1216 = vmatprep.subr.bf16.mxu0 0
    %1217 = vmatpush1.bf16.msra.mxu0 0
    %1218 = vmatprep.subr.bf16.mxu0 0
    %1219 = vmatpush1.bf16.msra.mxu0 0
    %1220 = vmatprep.subr.bf16.mxu0 0
    %1221 = vmatpush1.bf16.msra.mxu0 0
    %1222 = vmatprep.subr.bf16.mxu0 0
    %1223 = vmatpush1.bf16.msra.mxu0 0
    %1224 = vmatprep.subr.bf16.mxu0 0
    %1225 = vmatpush1.bf16.msra.mxu0 0
    %1226 = vmatprep.subr.bf16.mxu0 0
    %1227 = vmatpush1.bf16.msra.mxu0 0
    %1228 = vmatprep.subr.bf16.mxu0 0
    %1229 = vmatpush1.bf16.msra.mxu0 0
    %1230 = vmatprep.mubr.bf16.mxu0 0
    %1231 = vmatmul.mubr.bf16.gmra.mrb[0].mxu0 %v1137
    %v1232 = vpop.f32.mrb[0].mxu0
    %v1233 = vadd.f32 0.0, %v1232
    %v1234 = vpop.f32.mrb[0].mxu0
    %v1235 = vadd.f32 0.0, %v1234
    %v1236 = vpop.f32.mrb[0].mxu0
    %v1237 = vpop.f32.mrb[0].mxu0
    %1238 = vdwg.mxu0
    %1239 = vmatprep.subr.bf16.mxu0 %v1155
    %1240 = vmatpush1.bf16.msra.mxu0 %v1152
    %1241 = vmatprep.subr.bf16.mxu0 0
    %1242 = vmatpush1.bf16.msra.mxu0 0
    %1243 = vmatprep.subr.bf16.mxu0 0
    %1244 = vmatpush1.bf16.msra.mxu0 0
    %1245 = vmatprep.subr.bf16.mxu0 0
    %1246 = vmatpush1.bf16.msra.mxu0 0
    %1247 = vmatprep.subr.bf16.mxu0 0
    %1248 = vmatpush1.bf16.msra.mxu0 0
    %1249 = vmatprep.subr.bf16.mxu0 0
    %1250 = vmatpush1.bf16.msra.mxu0 0
    %1251 = vmatprep.subr.bf16.mxu0 0
    %1252 = vmatpush1.bf16.msra.mxu0 0
    %1253 = vmatprep.subr.bf16.mxu0 0
    %1254 = vmatpush1.bf16.msra.mxu0 0
    %1255 = vmatprep.subr.bf16.mxu0 0
    %1256 = vmatpush1.bf16.msra.mxu0 0
    %1257 = vmatprep.subr.bf16.mxu0 0
    %1258 = vmatpush1.bf16.msra.mxu0 0
    %1259 = vmatprep.subr.bf16.mxu0 0
    %1260 = vmatpush1.bf16.msra.mxu0 0
    %1261 = vmatprep.subr.bf16.mxu0 0
    %1262 = vmatpush1.bf16.msra.mxu0 0
    %1263 = vmatprep.subr.bf16.mxu0 0
    %1264 = vmatpush1.bf16.msra.mxu0 0
    %1265 = vmatprep.subr.bf16.mxu0 0
    %1266 = vmatpush1.bf16.msra.mxu0 0
    %1267 = vmatprep.subr.bf16.mxu0 0
    %1268 = vmatpush1.bf16.msra.mxu0 0
    %1269 = vmatprep.subr.bf16.mxu0 0
    %1270 = vmatpush1.bf16.msra.mxu0 0
    %1271 = vmatprep.mubr.bf16.mxu0 0
    %1272 = vmatmul.mubr.bf16.gmra.mrb[0].mxu0 %v1137
    %v1273 = vpop.f32.mrb[0].mxu0
    %v1274 = vadd.f32 0.0, %v1273
    %v1275 = vpop.f32.mrb[0].mxu0
    %v1276 = vadd.f32 0.0, %v1275
    %v1277 = vpop.f32.mrb[0].mxu0
    %v1278 = vpop.f32.mrb[0].mxu0
    %1279 = vdwg.mxu0
    %v1280 = vadd.f32 %v1107, %v1192
    %v1281 = vadd.f32 %v1108, %v1194
    %v1282 = vadd.f32 %v1109, %v1233
    %v1283 = vadd.f32 %v1110, %v1235
    %v1284 = vadd.f32 %v1111, %v1274
    %v1285 = vadd.f32 %v1112, %v1276
    %1286 = vrot.lane.b32.xlu0 %v49, 72
    %v1287 = vpop.permute.xlu0 %1286
    %1288 = vrot.lane.b32.xlu0 %v935, 110
    %v1289 = vpop.permute.xlu0 %1288
    %1290 = vrot.lane.b32.xlu0 %v936, 110
    %v1291 = vpop.permute.xlu0 %1290
    %1292 = vrot.lane.b32.xlu0 %v937, 110
    %v1293 = vpop.permute.xlu0 %1292
    %1294 = vrot.lane.b32.xlu0 %v938, 110
    %v1295 = vpop.permute.xlu0 %1294
    %1296 = vrot.lane.b32.xlu0 %v939, 110
    %v1297 = vpop.permute.xlu0 %1296
    %1298 = vrot.lane.b32.xlu0 %v940, 110
    %v1299 = vpop.permute.xlu0 %1298
    %1300 = vrot.lane.b32.xlu0 %v941, 110
    %v1301 = vpop.permute.xlu0 %1300
    %vm1302 = vcmask 900096
    %v1303 = vsel %vm1302, %v1289, %v1291
    %v1304 = vsel %vm1302, %v1291, %v1293
    %v1305 = vsel %vm1302, %v1293, %v1295
    %v1306 = vsel %vm1302, %v1295, %v1297
    %v1307 = vsel %vm1302, %v1297, %v1299
    %v1308 = vsel %vm1302, %v1299, %v1301
    %v1310 = vsel %vm91, %v1287, 0
    %v1313 = vsel %vm95, %v1303, 0
    %v1316 = vsel %vm95, %v1304, 0
    %v1319 = vsel %vm95, %v1305, 0
    %v1322 = vsel %vm95, %v1306, 0
    %v1325 = vsel %vm95, %v1307, 0
    %v1328 = vsel %vm95, %v1308, 0
    %1330 = vmatprep.subr.bf16.mxu0 %v1316
    %1331 = vmatpush1.bf16.msra.mxu0 %v1313
    %1332 = vmatprep.subr.bf16.mxu0 0
    %1333 = vmatpush1.bf16.msra.mxu0 0
    %1334 = vmatprep.subr.bf16.mxu0 0
    %1335 = vmatpush1.bf16.msra.mxu0 0
    %1336 = vmatprep.subr.bf16.mxu0 0
    %1337 = vmatpush1.bf16.msra.mxu0 0
    %1338 = vmatprep.subr.bf16.mxu0 0
    %1339 = vmatpush1.bf16.msra.mxu0 0
    %1340 = vmatprep.subr.bf16.mxu0 0
    %1341 = vmatpush1.bf16.msra.mxu0 0
    %1342 = vmatprep.subr.bf16.mxu0 0
    %1343 = vmatpush1.bf16.msra.mxu0 0
    %1344 = vmatprep.subr.bf16.mxu0 0
    %1345 = vmatpush1.bf16.msra.mxu0 0
    %1346 = vmatprep.subr.bf16.mxu0 0
    %1347 = vmatpush1.bf16.msra.mxu0 0
    %1348 = vmatprep.subr.bf16.mxu0 0
    %1349 = vmatpush1.bf16.msra.mxu0 0
    %1350 = vmatprep.subr.bf16.mxu0 0
    %1351 = vmatpush1.bf16.msra.mxu0 0
    %1352 = vmatprep.subr.bf16.mxu0 0
    %1353 = vmatpush1.bf16.msra.mxu0 0
    %1354 = vmatprep.subr.bf16.mxu0 0
    %1355 = vmatpush1.bf16.msra.mxu0 0
    %1356 = vmatprep.subr.bf16.mxu0 0
    %1357 = vmatpush1.bf16.msra.mxu0 0
    %1358 = vmatprep.subr.bf16.mxu0 0
    %1359 = vmatpush1.bf16.msra.mxu0 0
    %1360 = vmatprep.subr.bf16.mxu0 0
    %1361 = vmatpush1.bf16.msra.mxu0 0
    %1362 = vmatprep.mubr.bf16.mxu0 0
    %1363 = vmatmul.mubr.bf16.gmra.mrb[0].mxu0 %v1310
    %v1364 = vpop.f32.mrb[0].mxu0
    %v1365 = vadd.f32 0.0, %v1364
    %v1366 = vpop.f32.mrb[0].mxu0
    %v1367 = vadd.f32 0.0, %v1366
    %v1368 = vpop.f32.mrb[0].mxu0
    %v1369 = vpop.f32.mrb[0].mxu0
    %1370 = vdwg.mxu0
    %1371 = vmatprep.subr.bf16.mxu0 %v1322
    %1372 = vmatpush1.bf16.msra.mxu0 %v1319
    %1373 = vmatprep.subr.bf16.mxu0 0
    %1374 = vmatpush1.bf16.msra.mxu0 0
    %1375 = vmatprep.subr.bf16.mxu0 0
    %1376 = vmatpush1.bf16.msra.mxu0 0
    %1377 = vmatprep.subr.bf16.mxu0 0
    %1378 = vmatpush1.bf16.msra.mxu0 0
    %1379 = vmatprep.subr.bf16.mxu0 0
    %1380 = vmatpush1.bf16.msra.mxu0 0
    %1381 = vmatprep.subr.bf16.mxu0 0
    %1382 = vmatpush1.bf16.msra.mxu0 0
    %1383 = vmatprep.subr.bf16.mxu0 0
    %1384 = vmatpush1.bf16.msra.mxu0 0
    %1385 = vmatprep.subr.bf16.mxu0 0
    %1386 = vmatpush1.bf16.msra.mxu0 0
    %1387 = vmatprep.subr.bf16.mxu0 0
    %1388 = vmatpush1.bf16.msra.mxu0 0
    %1389 = vmatprep.subr.bf16.mxu0 0
    %1390 = vmatpush1.bf16.msra.mxu0 0
    %1391 = vmatprep.subr.bf16.mxu0 0
    %1392 = vmatpush1.bf16.msra.mxu0 0
    %1393 = vmatprep.subr.bf16.mxu0 0
    %1394 = vmatpush1.bf16.msra.mxu0 0
    %1395 = vmatprep.subr.bf16.mxu0 0
    %1396 = vmatpush1.bf16.msra.mxu0 0
    %1397 = vmatprep.subr.bf16.mxu0 0
    %1398 = vmatpush1.bf16.msra.mxu0 0
    %1399 = vmatprep.subr.bf16.mxu0 0
    %1400 = vmatpush1.bf16.msra.mxu0 0
    %1401 = vmatprep.subr.bf16.mxu0 0
    %1402 = vmatpush1.bf16.msra.mxu0 0
    %1403 = vmatprep.mubr.bf16.mxu0 0
    %1404 = vmatmul.mubr.bf16.gmra.mrb[0].mxu0 %v1310
    %v1405 = vpop.f32.mrb[0].mxu0
    %v1406 = vadd.f32 0.0, %v1405
    %v1407 = vpop.f32.mrb[0].mxu0
    %v1408 = vadd.f32 0.0, %v1407
    %v1409 = vpop.f32.mrb[0].mxu0
    %v1410 = vpop.f32.mrb[0].mxu0
    %1411 = vdwg.mxu0
    %1412 = vmatprep.subr.bf16.mxu0 %v1328
    %1413 = vmatpush1.bf16.msra.mxu0 %v1325
    %1414 = vmatprep.subr.bf16.mxu0 0
    %1415 = vmatpush1.bf16.msra.mxu0 0
    %1416 = vmatprep.subr.bf16.mxu0 0
    %1417 = vmatpush1.bf16.msra.mxu0 0
    %1418 = vmatprep.subr.bf16.mxu0 0
    %1419 = vmatpush1.bf16.msra.mxu0 0
    %1420 = vmatprep.subr.bf16.mxu0 0
    %1421 = vmatpush1.bf16.msra.mxu0 0
    %1422 = vmatprep.subr.bf16.mxu0 0
    %1423 = vmatpush1.bf16.msra.mxu0 0
    %1424 = vmatprep.subr.bf16.mxu0 0
    %1425 = vmatpush1.bf16.msra.mxu0 0
    %1426 = vmatprep.subr.bf16.mxu0 0
    %1427 = vmatpush1.bf16.msra.mxu0 0
    %1428 = vmatprep.subr.bf16.mxu0 0
    %1429 = vmatpush1.bf16.msra.mxu0 0
    %1430 = vmatprep.subr.bf16.mxu0 0
    %1431 = vmatpush1.bf16.msra.mxu0 0
    %1432 = vmatprep.subr.bf16.mxu0 0
    %1433 = vmatpush1.bf16.msra.mxu0 0
    %1434 = vmatprep.subr.bf16.mxu0 0
    %1435 = vmatpush1.bf16.msra.mxu0 0
    %1436 = vmatprep.subr.bf16.mxu0 0
    %1437 = vmatpush1.bf16.msra.mxu0 0
    %1438 = vmatprep.subr.bf16.mxu0 0
    %1439 = vmatpush1.bf16.msra.mxu0 0
    %1440 = vmatprep.subr.bf16.mxu0 0
    %1441 = vmatpush1.bf16.msra.mxu0 0
    %1442 = vmatprep.subr.bf16.mxu0 0
    %1443 = vmatpush1.bf16.msra.mxu0 0
    %1444 = vmatprep.mubr.bf16.mxu0 0
    %1445 = vmatmul.mubr.bf16.gmra.mrb[0].mxu0 %v1310
    %v1446 = vpop.f32.mrb[0].mxu0
    %v1447 = vadd.f32 0.0, %v1446
    %v1448 = vpop.f32.mrb[0].mxu0
    %v1449 = vadd.f32 0.0, %v1448
    %v1450 = vpop.f32.mrb[0].mxu0
    %v1451 = vpop.f32.mrb[0].mxu0
    %1452 = vdwg.mxu0
    %v1453 = vadd.f32 %v1280, %v1365
    %v1454 = vadd.f32 %v1281, %v1367
    %v1455 = vadd.f32 %v1282, %v1406
    %v1456 = vadd.f32 %v1283, %v1408
    %v1457 = vadd.f32 %v1284, %v1447
    %v1458 = vadd.f32 %v1285, %v1449
    %1459 = vrot.lane.b32.xlu0 %v49, 64
    %v1460 = vpop.permute.xlu0 %1459
    %1461 = vrot.lane.b32.xlu0 %v935, 109
    %v1462 = vpop.permute.xlu0 %1461
    %1463 = vrot.lane.b32.xlu0 %v936, 109
    %v1464 = vpop.permute.xlu0 %1463
    %1465 = vrot.lane.b32.xlu0 %v937, 109
    %v1466 = vpop.permute.xlu0 %1465
    %1467 = vrot.lane.b32.xlu0 %v938, 109
    %v1468 = vpop.permute.xlu0 %1467
    %1469 = vrot.lane.b32.xlu0 %v939, 109
    %v1470 = vpop.permute.xlu0 %1469
    %1471 = vrot.lane.b32.xlu0 %v940, 109
    %v1472 = vpop.permute.xlu0 %1471
    %1473 = vrot.lane.b32.xlu0 %v941, 109
    %v1474 = vpop.permute.xlu0 %1473
    %vm1475 = vcmask 891904
    %v1476 = vsel %vm1475, %v1462, %v1464
    %v1477 = vsel %vm1475, %v1464, %v1466
    %v1478 = vsel %vm1475, %v1466, %v1468
    %v1479 = vsel %vm1475, %v1468, %v1470
    %v1480 = vsel %vm1475, %v1470, %v1472
    %v1481 = vsel %vm1475, %v1472, %v1474
    %v1483 = vsel %vm91, %v1460, 0
    %v1486 = vsel %vm95, %v1476, 0
    %v1489 = vsel %vm95, %v1477, 0
    %v1492 = vsel %vm95, %v1478, 0
    %v1495 = vsel %vm95, %v1479, 0
    %v1498 = vsel %vm95, %v1480, 0
    %v1501 = vsel %vm95, %v1481, 0
    %1503 = vmatprep.subr.bf16.mxu0 %v1489
    %1504 = vmatpush1.bf16.msra.mxu0 %v1486
    %1505 = vmatprep.subr.bf16.mxu0 0
    %1506 = vmatpush1.bf16.msra.mxu0 0
    %1507 = vmatprep.subr.bf16.mxu0 0
    %1508 = vmatpush1.bf16.msra.mxu0 0
    %1509 = vmatprep.subr.bf16.mxu0 0
    %1510 = vmatpush1.bf16.msra.mxu0 0
    %1511 = vmatprep.subr.bf16.mxu0 0
    %1512 = vmatpush1.bf16.msra.mxu0 0
    %1513 = vmatprep.subr.bf16.mxu0 0
    %1514 = vmatpush1.bf16.msra.mxu0 0
    %1515 = vmatprep.subr.bf16.mxu0 0
    %1516 = vmatpush1.bf16.msra.mxu0 0
    %1517 = vmatprep.subr.bf16.mxu0 0
    %1518 = vmatpush1.bf16.msra.mxu0 0
    %1519 = vmatprep.subr.bf16.mxu0 0
    %1520 = vmatpush1.bf16.msra.mxu0 0
    %1521 = vmatprep.subr.bf16.mxu0 0
    %1522 = vmatpush1.bf16.msra.mxu0 0
    %1523 = vmatprep.subr.bf16.mxu0 0
    %1524 = vmatpush1.bf16.msra.mxu0 0
    %1525 = vmatprep.subr.bf16.mxu0 0
    %1526 = vmatpush1.bf16.msra.mxu0 0
    %1527 = vmatprep.subr.bf16.mxu0 0
    %1528 = vmatpush1.bf16.msra.mxu0 0
    %1529 = vmatprep.subr.bf16.mxu0 0
    %1530 = vmatpush1.bf16.msra.mxu0 0
    %1531 = vmatprep.subr.bf16.mxu0 0
    %1532 = vmatpush1.bf16.msra.mxu0 0
    %1533 = vmatprep.subr.bf16.mxu0 0
    %1534 = vmatpush1.bf16.msra.mxu0 0
    %1535 = vmatprep.mubr.bf16.mxu0 0
    %1536 = vmatmul.mubr.bf16.gmra.mrb[0].mxu0 %v1483
    %v1537 = vpop.f32.mrb[0].mxu0
    %v1538 = vadd.f32 0.0, %v1537
    %v1539 = vpop.f32.mrb[0].mxu0
    %v1540 = vadd.f32 0.0, %v1539
    %v1541 = vpop.f32.mrb[0].mxu0
    %v1542 = vpop.f32.mrb[0].mxu0
    %1543 = vdwg.mxu0
    %1544 = vmatprep.subr.bf16.mxu0 %v1495
    %1545 = vmatpush1.bf16.msra.mxu0 %v1492
    %1546 = vmatprep.subr.bf16.mxu0 0
    %1547 = vmatpush1.bf16.msra.mxu0 0
    %1548 = vmatprep.subr.bf16.mxu0 0
    %1549 = vmatpush1.bf16.msra.mxu0 0
    %1550 = vmatprep.subr.bf16.mxu0 0
    %1551 = vmatpush1.bf16.msra.mxu0 0
    %1552 = vmatprep.subr.bf16.mxu0 0
    %1553 = vmatpush1.bf16.msra.mxu0 0
    %1554 = vmatprep.subr.bf16.mxu0 0
    %1555 = vmatpush1.bf16.msra.mxu0 0
    %1556 = vmatprep.subr.bf16.mxu0 0
    %1557 = vmatpush1.bf16.msra.mxu0 0
    %1558 = vmatprep.subr.bf16.mxu0 0
    %1559 = vmatpush1.bf16.msra.mxu0 0
    %1560 = vmatprep.subr.bf16.mxu0 0
    %1561 = vmatpush1.bf16.msra.mxu0 0
    %1562 = vmatprep.subr.bf16.mxu0 0
    %1563 = vmatpush1.bf16.msra.mxu0 0
    %1564 = vmatprep.subr.bf16.mxu0 0
    %1565 = vmatpush1.bf16.msra.mxu0 0
    %1566 = vmatprep.subr.bf16.mxu0 0
    %1567 = vmatpush1.bf16.msra.mxu0 0
    %1568 = vmatprep.subr.bf16.mxu0 0
    %1569 = vmatpush1.bf16.msra.mxu0 0
    %1570 = vmatprep.subr.bf16.mxu0 0
    %1571 = vmatpush1.bf16.msra.mxu0 0
    %1572 = vmatprep.subr.bf16.mxu0 0
    %1573 = vmatpush1.bf16.msra.mxu0 0
    %1574 = vmatprep.subr.bf16.mxu0 0
    %1575 = vmatpush1.bf16.msra.mxu0 0
    %1576 = vmatprep.mubr.bf16.mxu0 0
    %1577 = vmatmul.mubr.bf16.gmra.mrb[0].mxu0 %v1483
    %v1578 = vpop.f32.mrb[0].mxu0
    %v1579 = vadd.f32 0.0, %v1578
    %v1580 = vpop.f32.mrb[0].mxu0
    %v1581 = vadd.f32 0.0, %v1580
    %v1582 = vpop.f32.mrb[0].mxu0
    %v1583 = vpop.f32.mrb[0].mxu0
    %1584 = vdwg.mxu0
    %1585 = vmatprep.subr.bf16.mxu0 %v1501
    %1586 = vmatpush1.bf16.msra.mxu0 %v1498
    %1587 = vmatprep.subr.bf16.mxu0 0
    %1588 = vmatpush1.bf16.msra.mxu0 0
    %1589 = vmatprep.subr.bf16.mxu0 0
    %1590 = vmatpush1.bf16.msra.mxu0 0
    %1591 = vmatprep.subr.bf16.mxu0 0
    %1592 = vmatpush1.bf16.msra.mxu0 0
    %1593 = vmatprep.subr.bf16.mxu0 0
    %1594 = vmatpush1.bf16.msra.mxu0 0
    %1595 = vmatprep.subr.bf16.mxu0 0
    %1596 = vmatpush1.bf16.msra.mxu0 0
    %1597 = vmatprep.subr.bf16.mxu0 0
    %1598 = vmatpush1.bf16.msra.mxu0 0
    %1599 = vmatprep.subr.bf16.mxu0 0
    %1600 = vmatpush1.bf16.msra.mxu0 0
    %1601 = vmatprep.subr.bf16.mxu0 0
    %1602 = vmatpush1.bf16.msra.mxu0 0
    %1603 = vmatprep.subr.bf16.mxu0 0
    %1604 = vmatpush1.bf16.msra.mxu0 0
    %1605 = vmatprep.subr.bf16.mxu0 0
    %1606 = vmatpush1.bf16.msra.mxu0 0
    %1607 = vmatprep.subr.bf16.mxu0 0
    %1608 = vmatpush1.bf16.msra.mxu0 0
    %1609 = vmatprep.subr.bf16.mxu0 0
    %1610 = vmatpush1.bf16.msra.mxu0 0
    %1611 = vmatprep.subr.bf16.mxu0 0
    %1612 = vmatpush1.bf16.msra.mxu0 0
    %1613 = vmatprep.subr.bf16.mxu0 0
    %1614 = vmatpush1.bf16.msra.mxu0 0
    %1615 = vmatprep.subr.bf16.mxu0 0
    %1616 = vmatpush1.bf16.msra.mxu0 0
    %1617 = vmatprep.mubr.bf16.mxu0 0
    %1618 = vmatmul.mubr.bf16.gmra.mrb[0].mxu0 %v1483
    %v1619 = vpop.f32.mrb[0].mxu0
    %v1620 = vadd.f32 0.0, %v1619
    %v1621 = vpop.f32.mrb[0].mxu0
    %v1622 = vadd.f32 0.0, %v1621
    %v1623 = vpop.f32.mrb[0].mxu0
    %v1624 = vpop.f32.mrb[0].mxu0
    %1625 = vdwg.mxu0
    %v1626 = vadd.f32 %v1453, %v1538
    %v1627 = vadd.f32 %v1454, %v1540
    %v1628 = vadd.f32 %v1455, %v1579
    %v1629 = vadd.f32 %v1456, %v1581
    %v1630 = vadd.f32 %v1457, %v1620
    %v1631 = vadd.f32 %v1458, %v1622
    %v1632 = vld [vmem:[%s3] sm:$0xff]
    %v1633 = vlaneseq
    %v1634 = vshrl.u32 %v1633, 7
    %v1635 = vsub.s32 4, %v1634
    %v1636 = vrot.slane %v34, %v1635
    %v1637 = vlaneseq
    %v1638 = vshrl.u32 %v1637, 7
    %v1639 = vsub.s32 4, %v1638
    %v1640 = vrot.slane %v35, %v1639
    %v1641 = vlaneseq
    %v1642 = vshrl.u32 %v1641, 7
    %v1643 = vsub.s32 4, %v1642
    %v1644 = vrot.slane %v36, %v1643
    %v1645 = vlaneseq
    %v1646 = vshrl.u32 %v1645, 7
    %v1647 = vsub.s32 4, %v1646
    %v1648 = vrot.slane %v37, %v1647
    %v1649 = vlaneseq
    %v1650 = vshrl.u32 %v1649, 7
    %v1651 = vsub.s32 4, %v1650
    %v1652 = vrot.slane %v38, %v1651
    %v1653 = vlaneseq
    %v1654 = vshrl.u32 %v1653, 7
    %v1655 = vsub.s32 4, %v1654
    %v1656 = vrot.slane %v39, %v1655
    %v1657 = vmul.f32 %v1626, %v1636
    %v1658 = vmul.f32 %v1627, %v1640
    %v1659 = vmul.f32 %v1628, %v1644
    %v1660 = vmul.f32 %v1629, %v1648
    %v1661 = vmul.f32 %v1630, %v1652
    %v1662 = vmul.f32 %v1631, %v1656
    %v1663 = vadd.f32 %v1657, %v1658
    %v1664 = vadd.f32 %v1663, %v1659
    %v1665 = vadd.f32 %v1664, %v1660
    %v1666 = vadd.f32 %v1665, %v1661
    %v1667 = vadd.f32 %v1666, %v1662
    %1668 = vadd.xlane.f32.xlu0 %v1667
    %v1669 = vpop.xlane.xlu0 %1668
    %v1670 = vmul.f32 %v1657, %v1657
    %v1671 = vmul.f32 %v1658, %v1658
    %v1672 = vmul.f32 %v1659, %v1659
    %v1673 = vmul.f32 %v1660, %v1660
    %v1674 = vmul.f32 %v1661, %v1661
    %v1675 = vmul.f32 %v1662, %v1662
    %v1676 = vadd.f32 %v1670, %v1671
    %v1677 = vadd.f32 %v1676, %v1672
    %v1678 = vadd.f32 %v1677, %v1673
    %v1679 = vadd.f32 %v1678, %v1674
    %v1680 = vadd.f32 %v1679, %v1675
    %1681 = vadd.xlane.f32.xlu0 %v1680
    %v1682 = vpop.xlane.xlu0 %1681
    %v1683 = vmul.f32 %v1669, 0.001953125
    %v1684 = vmul.f32 %v1682, 0.001953125
    %v1685 = vmul.f32 %v1683, %v1683
    %v1686 = vsub.f32 %v1684, %v1685
    %v1687 = vmax.f32 %v1686, 0.0
    %v1688 = vadd.f32 %v1687, 1e-05
    %v1689 = vrsqrt.pop %v1688
    %v1690 = vmul.f32 %v1632, %v1689
    %v1691 = vmul.f32 %v1683, %v1690
    %1693 = vrot.lane.b32.xlu0 %v1691, 1
    %v1694 = vpop.permute.xlu0 %1693
    %v1696 = vsub.f32 %v1632, %v1694
    %1698 = vset.pattern.permute.xlu0 0
    %1699 = vperm.xlu0 %1698, %v1690
    %v1700 = vpop.permute.xlu0 %1699
    %v1702 = vmul.f32 %v1626, %v1700
    %v1703 = vmul.f32 %v1627, %v1700
    %v1704 = vmul.f32 %v1628, %v1700
    %v1705 = vmul.f32 %v1629, %v1700
    %v1706 = vmul.f32 %v1630, %v1700
    %v1707 = vmul.f32 %v1631, %v1700
    %1709 = vset.pattern.permute.xlu0 1
    %1710 = vperm.xlu0 %1709, %v1696
    %v1711 = vpop.permute.xlu0 %1710
    %v1713 = vadd.f32 %v1702, %v1711
    %v1714 = vadd.f32 %v1703, %v1711
    %v1715 = vadd.f32 %v1704, %v1711
    %v1716 = vadd.f32 %v1705, %v1711
    %v1717 = vadd.f32 %v1706, %v1711
    %v1718 = vadd.f32 %v1707, %v1711
    %v1719 = vmul.f32 %v1713, %v1636
    %v1720 = vmul.f32 %v1714, %v1640
    %v1721 = vmul.f32 %v1715, %v1644
    %v1722 = vmul.f32 %v1716, %v1648
    %v1723 = vmul.f32 %v1717, %v1652
    %v1724 = vmul.f32 %v1718, %v1656
    %v1725 = vmax.f32 %v1719, 0.0
    %v1726 = vmax.f32 %v1720, 0.0
    %v1727 = vmax.f32 %v1721, 0.0
    %v1728 = vmax.f32 %v1722, 0.0
    %v1729 = vmax.f32 %v1723, 0.0
    %v1730 = vmax.f32 %v1724, 0.0
    %v1731 = vpack.c.bf16 %v1725, %v1725
    %v1732 = vpack.c.bf16 %v1726, %v1726
    %v1733 = vpack.c.bf16 %v1727, %v1727
    %v1734 = vpack.c.bf16 %v1728, %v1728
    %v1735 = vpack.c.bf16 %v1729, %v1729
    %v1736 = vpack.c.bf16 %v1730, %v1730
    %v1743 = vunpack.c.l.b16 %v1731
    %v1744 = vunpack.c.l.b16 %v1732
    %v1745 = vunpack.c.l.b16 %v1733
    %v1746 = vunpack.c.l.b16 %v1734
    %v1747 = vunpack.c.l.b16 %v1735
    %v1748 = vunpack.c.l.b16 %v1736
    %v1749 = vpack.c.b16 %v1744, %v1743
    %v1750 = vpack.c.b16 %v1746, %v1745
    %v1751 = vpack.c.b16 %v1748, %v1747
    %1755 = vst [vmem:[#allocation2 + $0x4] sm:$0xff] %v1749
    %1756 = vst [vmem:[#allocation2 + $0xc] sm:$0xff] %v1750
    %1757 = vst [vmem:[#allocation2 + $0x14] sm:$0xff] %v1751
    %v1758 = vld [vmem:[#allocation2] sm:$0xff]
    %v1759 = vld [vmem:[#allocation2 + $0x8] sm:$0xff]
    %v1760 = vld [vmem:[#allocation2 + $0x10] sm:$0xff]
    %v1761 = vld [vmem:[#allocation2 + $0x18] sm:$0xf]
    %v1762 = vld [vmem:[%s2] sm:$0xf]
    %v1764 = vunpack.c.l.b16 %v1762
    %v1765 = vpack.c.b16 %v1764, %v1764
    %1766 = vrot.lane.b32.xlu0 %v1765, 120
    %v1767 = vpop.permute.xlu0 %1766
    %v1772 = vunpack.c.l.b16 %v1758
    %v1773 = vunpack.c.h.b16 %v1758
    %v1774 = vunpack.c.l.b16 %v1759
    %v1775 = vunpack.c.h.b16 %v1759
    %v1776 = vunpack.c.l.b16 %v1760
    %v1777 = vunpack.c.h.b16 %v1760
    %v1778 = vunpack.c.l.b16 %v1761
    %v1779 = vpack.c.b16 %v1772, %v1772
    %v1780 = vpack.c.b16 %v1773, %v1773
    %v1781 = vpack.c.b16 %v1774, %v1774
    %v1782 = vpack.c.b16 %v1775, %v1775
    %v1783 = vpack.c.b16 %v1776, %v1776
    %v1784 = vpack.c.b16 %v1777, %v1777
    %v1785 = vpack.c.b16 %v1778, %v1778
    %1786 = vrot.lane.b32.xlu0 %v1779, 18
    %v1787 = vpop.permute.xlu0 %1786
    %1788 = vrot.lane.b32.xlu0 %v1780, 18
    %v1789 = vpop.permute.xlu0 %1788
    %1790 = vrot.lane.b32.xlu0 %v1781, 18
    %v1791 = vpop.permute.xlu0 %1790
    %1792 = vrot.lane.b32.xlu0 %v1782, 18
    %v1793 = vpop.permute.xlu0 %1792
    %1794 = vrot.lane.b32.xlu0 %v1783, 18
    %v1795 = vpop.permute.xlu0 %1794
    %1796 = vrot.lane.b32.xlu0 %v1784, 18
    %v1797 = vpop.permute.xlu0 %1796
    %1798 = vrot.lane.b32.xlu0 %v1785, 18
    %v1799 = vpop.permute.xlu0 %1798
    %v1800 = vsel %vm84, %v1787, %v1789
    %v1801 = vsel %vm84, %v1789, %v1791
    %v1802 = vsel %vm84, %v1791, %v1793
    %v1803 = vsel %vm84, %v1793, %v1795
    %v1804 = vsel %vm84, %v1795, %v1797
    %v1805 = vsel %vm84, %v1797, %v1799
    %v1807 = vsel %vm91, %v1767, 0
    %v1810 = vsel %vm95, %v1800, 0
    %v1813 = vsel %vm95, %v1801, 0
    %v1816 = vsel %vm95, %v1802, 0
    %v1819 = vsel %vm95, %v1803, 0
    %v1822 = vsel %vm95, %v1804, 0
    %v1825 = vsel %vm95, %v1805, 0
    %1827 = vmatprep.subr.bf16.mxu0 %v1813
    %1828 = vmatpush1.bf16.msra.mxu0 %v1810
    %1829 = vmatprep.subr.bf16.mxu0 0
    %1830 = vmatpush1.bf16.msra.mxu0 0
    %1831 = vmatprep.subr.bf16.mxu0 0
    %1832 = vmatpush1.bf16.msra.mxu0 0
    %1833 = vmatprep.subr.bf16.mxu0 0
    %1834 = vmatpush1.bf16.msra.mxu0 0
    %1835 = vmatprep.subr.bf16.mxu0 0
    %1836 = vmatpush1.bf16.msra.mxu0 0
    %1837 = vmatprep.subr.bf16.mxu0 0
    %1838 = vmatpush1.bf16.msra.mxu0 0
    %1839 = vmatprep.subr.bf16.mxu0 0
    %1840 = vmatpush1.bf16.msra.mxu0 0
    %1841 = vmatprep.subr.bf16.mxu0 0
    %1842 = vmatpush1.bf16.msra.mxu0 0
    %1843 = vmatprep.subr.bf16.mxu0 0
    %1844 = vmatpush1.bf16.msra.mxu0 0
    %1845 = vmatprep.subr.bf16.mxu0 0
    %1846 = vmatpush1.bf16.msra.mxu0 0
    %1847 = vmatprep.subr.bf16.mxu0 0
    %1848 = vmatpush1.bf16.msra.mxu0 0
    %1849 = vmatprep.subr.bf16.mxu0 0
    %1850 = vmatpush1.bf16.msra.mxu0 0
    %1851 = vmatprep.subr.bf16.mxu0 0
    %1852 = vmatpush1.bf16.msra.mxu0 0
    %1853 = vmatprep.subr.bf16.mxu0 0
    %1854 = vmatpush1.bf16.msra.mxu0 0
    %1855 = vmatprep.subr.bf16.mxu0 0
    %1856 = vmatpush1.bf16.msra.mxu0 0
    %1857 = vmatprep.subr.bf16.mxu0 0
    %1858 = vmatpush1.bf16.msra.mxu0 0
    %1859 = vmatprep.mubr.bf16.mxu0 0
    %1860 = vmatmul.mubr.bf16.gmra.mrb[0].mxu0 %v1807
    %v1861 = vpop.f32.mrb[0].mxu0
    %v1862 = vadd.f32 0.0, %v1861
    %v1863 = vpop.f32.mrb[0].mxu0
    %v1864 = vadd.f32 0.0, %v1863
    %v1865 = vpop.f32.mrb[0].mxu0
    %v1866 = vpop.f32.mrb[0].mxu0
    %1867 = vdwg.mxu0
    %1868 = vmatprep.subr.bf16.mxu0 %v1819
    %1869 = vmatpush1.bf16.msra.mxu0 %v1816
    %1870 = vmatprep.subr.bf16.mxu0 0
    %1871 = vmatpush1.bf16.msra.mxu0 0
    %1872 = vmatprep.subr.bf16.mxu0 0
    %1873 = vmatpush1.bf16.msra.mxu0 0
    %1874 = vmatprep.subr.bf16.mxu0 0
    %1875 = vmatpush1.bf16.msra.mxu0 0
    %1876 = vmatprep.subr.bf16.mxu0 0
    %1877 = vmatpush1.bf16.msra.mxu0 0
    %1878 = vmatprep.subr.bf16.mxu0 0
    %1879 = vmatpush1.bf16.msra.mxu0 0
    %1880 = vmatprep.subr.bf16.mxu0 0
    %1881 = vmatpush1.bf16.msra.mxu0 0
    %1882 = vmatprep.subr.bf16.mxu0 0
    %1883 = vmatpush1.bf16.msra.mxu0 0
    %1884 = vmatprep.subr.bf16.mxu0 0
    %1885 = vmatpush1.bf16.msra.mxu0 0
    %1886 = vmatprep.subr.bf16.mxu0 0
    %1887 = vmatpush1.bf16.msra.mxu0 0
    %1888 = vmatprep.subr.bf16.mxu0 0
    %1889 = vmatpush1.bf16.msra.mxu0 0
    %1890 = vmatprep.subr.bf16.mxu0 0
    %1891 = vmatpush1.bf16.msra.mxu0 0
    %1892 = vmatprep.subr.bf16.mxu0 0
    %1893 = vmatpush1.bf16.msra.mxu0 0
    %1894 = vmatprep.subr.bf16.mxu0 0
    %1895 = vmatpush1.bf16.msra.mxu0 0
    %1896 = vmatprep.subr.bf16.mxu0 0
    %1897 = vmatpush1.bf16.msra.mxu0 0
    %1898 = vmatprep.subr.bf16.mxu0 0
    %1899 = vmatpush1.bf16.msra.mxu0 0
    %1900 = vmatprep.mubr.bf16.mxu0 0
    %1901 = vmatmul.mubr.bf16.gmra.mrb[0].mxu0 %v1807
    %v1902 = vpop.f32.mrb[0].mxu0
    %v1903 = vadd.f32 0.0, %v1902
    %v1904 = vpop.f32.mrb[0].mxu0
    %v1905 = vadd.f32 0.0, %v1904
    %v1906 = vpop.f32.mrb[0].mxu0
    %v1907 = vpop.f32.mrb[0].mxu0
    %1908 = vdwg.mxu0
    %1909 = vmatprep.subr.bf16.mxu0 %v1825
    %1910 = vmatpush1.bf16.msra.mxu0 %v1822
    %1911 = vmatprep.subr.bf16.mxu0 0
    %1912 = vmatpush1.bf16.msra.mxu0 0
    %1913 = vmatprep.subr.bf16.mxu0 0
    %1914 = vmatpush1.bf16.msra.mxu0 0
    %1915 = vmatprep.subr.bf16.mxu0 0
    %1916 = vmatpush1.bf16.msra.mxu0 0
    %1917 = vmatprep.subr.bf16.mxu0 0
    %1918 = vmatpush1.bf16.msra.mxu0 0
    %1919 = vmatprep.subr.bf16.mxu0 0
    %1920 = vmatpush1.bf16.msra.mxu0 0
    %1921 = vmatprep.subr.bf16.mxu0 0
    %1922 = vmatpush1.bf16.msra.mxu0 0
    %1923 = vmatprep.subr.bf16.mxu0 0
    %1924 = vmatpush1.bf16.msra.mxu0 0
    %1925 = vmatprep.subr.bf16.mxu0 0
    %1926 = vmatpush1.bf16.msra.mxu0 0
    %1927 = vmatprep.subr.bf16.mxu0 0
    %1928 = vmatpush1.bf16.msra.mxu0 0
    %1929 = vmatprep.subr.bf16.mxu0 0
    %1930 = vmatpush1.bf16.msra.mxu0 0
    %1931 = vmatprep.subr.bf16.mxu0 0
    %1932 = vmatpush1.bf16.msra.mxu0 0
    %1933 = vmatprep.subr.bf16.mxu0 0
    %1934 = vmatpush1.bf16.msra.mxu0 0
    %1935 = vmatprep.subr.bf16.mxu0 0
    %1936 = vmatpush1.bf16.msra.mxu0 0
    %1937 = vmatprep.subr.bf16.mxu0 0
    %1938 = vmatpush1.bf16.msra.mxu0 0
    %1939 = vmatprep.subr.bf16.mxu0 0
    %1940 = vmatpush1.bf16.msra.mxu0 0
    %1941 = vmatprep.mubr.bf16.mxu0 0
    %1942 = vmatmul.mubr.bf16.gmra.mrb[0].mxu0 %v1807
    %v1943 = vpop.f32.mrb[0].mxu0
    %v1944 = vadd.f32 0.0, %v1943
    %v1945 = vpop.f32.mrb[0].mxu0
    %v1946 = vadd.f32 0.0, %v1945
    %v1947 = vpop.f32.mrb[0].mxu0
    %v1948 = vpop.f32.mrb[0].mxu0
    %1949 = vdwg.mxu0
    %1950 = vrot.lane.b32.xlu0 %v1779, 19
    %v1951 = vpop.permute.xlu0 %1950
    %1952 = vrot.lane.b32.xlu0 %v1780, 19
    %v1953 = vpop.permute.xlu0 %1952
    %1954 = vrot.lane.b32.xlu0 %v1781, 19
    %v1955 = vpop.permute.xlu0 %1954
    %1956 = vrot.lane.b32.xlu0 %v1782, 19
    %v1957 = vpop.permute.xlu0 %1956
    %1958 = vrot.lane.b32.xlu0 %v1783, 19
    %v1959 = vpop.permute.xlu0 %1958
    %1960 = vrot.lane.b32.xlu0 %v1784, 19
    %v1961 = vpop.permute.xlu0 %1960
    %1962 = vrot.lane.b32.xlu0 %v1785, 19
    %v1963 = vpop.permute.xlu0 %1962
    %v1964 = vsel %vm251, %v1951, %v1953
    %v1965 = vsel %vm251, %v1953, %v1955
    %v1966 = vsel %vm251, %v1955, %v1957
    %v1967 = vsel %vm251, %v1957, %v1959
    %v1968 = vsel %vm251, %v1959, %v1961
    %v1969 = vsel %vm251, %v1961, %v1963
    %v1971 = vsel %vm91, %v1762, 0
    %v1974 = vsel %vm95, %v1964, 0
    %v1977 = vsel %vm95, %v1965, 0
    %v1980 = vsel %vm95, %v1966, 0
    %v1983 = vsel %vm95, %v1967, 0
    %v1986 = vsel %vm95, %v1968, 0
    %v1989 = vsel %vm95, %v1969, 0
    %1991 = vmatprep.subr.bf16.mxu0 %v1977
    %1992 = vmatpush1.bf16.msra.mxu0 %v1974
    %1993 = vmatprep.subr.bf16.mxu0 0
    %1994 = vmatpush1.bf16.msra.mxu0 0
    %1995 = vmatprep.subr.bf16.mxu0 0
    %1996 = vmatpush1.bf16.msra.mxu0 0
    %1997 = vmatprep.subr.bf16.mxu0 0
    %1998 = vmatpush1.bf16.msra.mxu0 0
    %1999 = vmatprep.subr.bf16.mxu0 0
    %2000 = vmatpush1.bf16.msra.mxu0 0
    %2001 = vmatprep.subr.bf16.mxu0 0
    %2002 = vmatpush1.bf16.msra.mxu0 0
    %2003 = vmatprep.subr.bf16.mxu0 0
    %2004 = vmatpush1.bf16.msra.mxu0 0
    %2005 = vmatprep.subr.bf16.mxu0 0
    %2006 = vmatpush1.bf16.msra.mxu0 0
    %2007 = vmatprep.subr.bf16.mxu0 0
    %2008 = vmatpush1.bf16.msra.mxu0 0
    %2009 = vmatprep.subr.bf16.mxu0 0
    %2010 = vmatpush1.bf16.msra.mxu0 0
    %2011 = vmatprep.subr.bf16.mxu0 0
    %2012 = vmatpush1.bf16.msra.mxu0 0
    %2013 = vmatprep.subr.bf16.mxu0 0
    %2014 = vmatpush1.bf16.msra.mxu0 0
    %2015 = vmatprep.subr.bf16.mxu0 0
    %2016 = vmatpush1.bf16.msra.mxu0 0
    %2017 = vmatprep.subr.bf16.mxu0 0
    %2018 = vmatpush1.bf16.msra.mxu0 0
    %2019 = vmatprep.subr.bf16.mxu0 0
    %2020 = vmatpush1.bf16.msra.mxu0 0
    %2021 = vmatprep.subr.bf16.mxu0 0
    %2022 = vmatpush1.bf16.msra.mxu0 0
    %2023 = vmatprep.mubr.bf16.mxu0 0
    %2024 = vmatmul.mubr.bf16.gmra.mrb[0].mxu0 %v1971
    %v2025 = vpop.f32.mrb[0].mxu0
    %v2026 = vadd.f32 %v1862, %v2025
    %v2027 = vpop.f32.mrb[0].mxu0
    %v2028 = vadd.f32 %v1864, %v2027
    %v2029 = vpop.f32.mrb[0].mxu0
    %v2030 = vpop.f32.mrb[0].mxu0
    %2031 = vdwg.mxu0
    %2032 = vmatprep.subr.bf16.mxu0 %v1983
    %2033 = vmatpush1.bf16.msra.mxu0 %v1980
    %2034 = vmatprep.subr.bf16.mxu0 0
    %2035 = vmatpush1.bf16.msra.mxu0 0
    %2036 = vmatprep.subr.bf16.mxu0 0
    %2037 = vmatpush1.bf16.msra.mxu0 0
    %2038 = vmatprep.subr.bf16.mxu0 0
    %2039 = vmatpush1.bf16.msra.mxu0 0
    %2040 = vmatprep.subr.bf16.mxu0 0
    %2041 = vmatpush1.bf16.msra.mxu0 0
    %2042 = vmatprep.subr.bf16.mxu0 0
    %2043 = vmatpush1.bf16.msra.mxu0 0
    %2044 = vmatprep.subr.bf16.mxu0 0
    %2045 = vmatpush1.bf16.msra.mxu0 0
    %2046 = vmatprep.subr.bf16.mxu0 0
    %2047 = vmatpush1.bf16.msra.mxu0 0
    %2048 = vmatprep.subr.bf16.mxu0 0
    %2049 = vmatpush1.bf16.msra.mxu0 0
    %2050 = vmatprep.subr.bf16.mxu0 0
    %2051 = vmatpush1.bf16.msra.mxu0 0
    %2052 = vmatprep.subr.bf16.mxu0 0
    %2053 = vmatpush1.bf16.msra.mxu0 0
    %2054 = vmatprep.subr.bf16.mxu0 0
    %2055 = vmatpush1.bf16.msra.mxu0 0
    %2056 = vmatprep.subr.bf16.mxu0 0
    %2057 = vmatpush1.bf16.msra.mxu0 0
    %2058 = vmatprep.subr.bf16.mxu0 0
    %2059 = vmatpush1.bf16.msra.mxu0 0
    %2060 = vmatprep.subr.bf16.mxu0 0
    %2061 = vmatpush1.bf16.msra.mxu0 0
    %2062 = vmatprep.subr.bf16.mxu0 0
    %2063 = vmatpush1.bf16.msra.mxu0 0
    %2064 = vmatprep.mubr.bf16.mxu0 0
    %2065 = vmatmul.mubr.bf16.gmra.mrb[0].mxu0 %v1971
    %v2066 = vpop.f32.mrb[0].mxu0
    %v2067 = vadd.f32 %v1903, %v2066
    %v2068 = vpop.f32.mrb[0].mxu0
    %v2069 = vadd.f32 %v1905, %v2068
    %v2070 = vpop.f32.mrb[0].mxu0
    %v2071 = vpop.f32.mrb[0].mxu0
    %2072 = vdwg.mxu0
    %2073 = vmatprep.subr.bf16.mxu0 %v1989
    %2074 = vmatpush1.bf16.msra.mxu0 %v1986
    %2075 = vmatprep.subr.bf16.mxu0 0
    %2076 = vmatpush1.bf16.msra.mxu0 0
    %2077 = vmatprep.subr.bf16.mxu0 0
    %2078 = vmatpush1.bf16.msra.mxu0 0
    %2079 = vmatprep.subr.bf16.mxu0 0
    %2080 = vmatpush1.bf16.msra.mxu0 0
    %2081 = vmatprep.subr.bf16.mxu0 0
    %2082 = vmatpush1.bf16.msra.mxu0 0
    %2083 = vmatprep.subr.bf16.mxu0 0
    %2084 = vmatpush1.bf16.msra.mxu0 0
    %2085 = vmatprep.subr.bf16.mxu0 0
    %2086 = vmatpush1.bf16.msra.mxu0 0
    %2087 = vmatprep.subr.bf16.mxu0 0
    %2088 = vmatpush1.bf16.msra.mxu0 0
    %2089 = vmatprep.subr.bf16.mxu0 0
    %2090 = vmatpush1.bf16.msra.mxu0 0
    %2091 = vmatprep.subr.bf16.mxu0 0
    %2092 = vmatpush1.bf16.msra.mxu0 0
    %2093 = vmatprep.subr.bf16.mxu0 0
    %2094 = vmatpush1.bf16.msra.mxu0 0
    %2095 = vmatprep.subr.bf16.mxu0 0
    %2096 = vmatpush1.bf16.msra.mxu0 0
    %2097 = vmatprep.subr.bf16.mxu0 0
    %2098 = vmatpush1.bf16.msra.mxu0 0
    %2099 = vmatprep.subr.bf16.mxu0 0
    %2100 = vmatpush1.bf16.msra.mxu0 0
    %2101 = vmatprep.subr.bf16.mxu0 0
    %2102 = vmatpush1.bf16.msra.mxu0 0
    %2103 = vmatprep.subr.bf16.mxu0 0
    %2104 = vmatpush1.bf16.msra.mxu0 0
    %2105 = vmatprep.mubr.bf16.mxu0 0
    %2106 = vmatmul.mubr.bf16.gmra.mrb[0].mxu0 %v1971
    %v2107 = vpop.f32.mrb[0].mxu0
    %v2108 = vadd.f32 %v1944, %v2107
    %v2109 = vpop.f32.mrb[0].mxu0
    %v2110 = vadd.f32 %v1946, %v2109
    %v2111 = vpop.f32.mrb[0].mxu0
    %v2112 = vpop.f32.mrb[0].mxu0
    %2113 = vdwg.mxu0
    %2114 = vrot.lane.b32.xlu0 %v1765, 112
    %v2115 = vpop.permute.xlu0 %2114
    %2116 = vrot.lane.b32.xlu0 %v1779, 17
    %v2117 = vpop.permute.xlu0 %2116
    %2118 = vrot.lane.b32.xlu0 %v1780, 17
    %v2119 = vpop.permute.xlu0 %2118
    %2120 = vrot.lane.b32.xlu0 %v1781, 17
    %v2121 = vpop.permute.xlu0 %2120
    %2122 = vrot.lane.b32.xlu0 %v1782, 17
    %v2123 = vpop.permute.xlu0 %2122
    %2124 = vrot.lane.b32.xlu0 %v1783, 17
    %v2125 = vpop.permute.xlu0 %2124
    %2126 = vrot.lane.b32.xlu0 %v1784, 17
    %v2127 = vpop.permute.xlu0 %2126
    %2128 = vrot.lane.b32.xlu0 %v1785, 17
    %v2129 = vpop.permute.xlu0 %2128
    %v2130 = vsel %vm418, %v2117, %v2119
    %v2131 = vsel %vm418, %v2119, %v2121
    %v2132 = vsel %vm418, %v2121, %v2123
    %v2133 = vsel %vm418, %v2123, %v2125
    %v2134 = vsel %vm418, %v2125, %v2127
    %v2135 = vsel %vm418, %v2127, %v2129
    %v2137 = vsel %vm91, %v2115, 0
    %v2140 = vsel %vm95, %v2130, 0
    %v2143 = vsel %vm95, %v2131, 0
    %v2146 = vsel %vm95, %v2132, 0
    %v2149 = vsel %vm95, %v2133, 0
    %v2152 = vsel %vm95, %v2134, 0
    %v2155 = vsel %vm95, %v2135, 0
    %2157 = vmatprep.subr.bf16.mxu0 %v2143
    %2158 = vmatpush1.bf16.msra.mxu0 %v2140
    %2159 = vmatprep.subr.bf16.mxu0 0
    %2160 = vmatpush1.bf16.msra.mxu0 0
    %2161 = vmatprep.subr.bf16.mxu0 0
    %2162 = vmatpush1.bf16.msra.mxu0 0
    %2163 = vmatprep.subr.bf16.mxu0 0
    %2164 = vmatpush1.bf16.msra.mxu0 0
    %2165 = vmatprep.subr.bf16.mxu0 0
    %2166 = vmatpush1.bf16.msra.mxu0 0
    %2167 = vmatprep.subr.bf16.mxu0 0
    %2168 = vmatpush1.bf16.msra.mxu0 0
    %2169 = vmatprep.subr.bf16.mxu0 0
    %2170 = vmatpush1.bf16.msra.mxu0 0
    %2171 = vmatprep.subr.bf16.mxu0 0
    %2172 = vmatpush1.bf16.msra.mxu0 0
    %2173 = vmatprep.subr.bf16.mxu0 0
    %2174 = vmatpush1.bf16.msra.mxu0 0
    %2175 = vmatprep.subr.bf16.mxu0 0
    %2176 = vmatpush1.bf16.msra.mxu0 0
    %2177 = vmatprep.subr.bf16.mxu0 0
    %2178 = vmatpush1.bf16.msra.mxu0 0
    %2179 = vmatprep.subr.bf16.mxu0 0
    %2180 = vmatpush1.bf16.msra.mxu0 0
    %2181 = vmatprep.subr.bf16.mxu0 0
    %2182 = vmatpush1.bf16.msra.mxu0 0
    %2183 = vmatprep.subr.bf16.mxu0 0
    %2184 = vmatpush1.bf16.msra.mxu0 0
    %2185 = vmatprep.subr.bf16.mxu0 0
    %2186 = vmatpush1.bf16.msra.mxu0 0
    %2187 = vmatprep.subr.bf16.mxu0 0
    %2188 = vmatpush1.bf16.msra.mxu0 0
    %2189 = vmatprep.mubr.bf16.mxu0 0
    %2190 = vmatmul.mubr.bf16.gmra.mrb[0].mxu0 %v2137
    %v2191 = vpop.f32.mrb[0].mxu0
    %v2192 = vadd.f32 0.0, %v2191
    %v2193 = vpop.f32.mrb[0].mxu0
    %v2194 = vadd.f32 0.0, %v2193
    %v2195 = vpop.f32.mrb[0].mxu0
    %v2196 = vpop.f32.mrb[0].mxu0
    %2197 = vdwg.mxu0
    %2198 = vmatprep.subr.bf16.mxu0 %v2149
    %2199 = vmatpush1.bf16.msra.mxu0 %v2146
    %2200 = vmatprep.subr.bf16.mxu0 0
    %2201 = vmatpush1.bf16.msra.mxu0 0
    %2202 = vmatprep.subr.bf16.mxu0 0
    %2203 = vmatpush1.bf16.msra.mxu0 0
    %2204 = vmatprep.subr.bf16.mxu0 0
    %2205 = vmatpush1.bf16.msra.mxu0 0
    %2206 = vmatprep.subr.bf16.mxu0 0
    %2207 = vmatpush1.bf16.msra.mxu0 0
    %2208 = vmatprep.subr.bf16.mxu0 0
    %2209 = vmatpush1.bf16.msra.mxu0 0
    %2210 = vmatprep.subr.bf16.mxu0 0
    %2211 = vmatpush1.bf16.msra.mxu0 0
    %2212 = vmatprep.subr.bf16.mxu0 0
    %2213 = vmatpush1.bf16.msra.mxu0 0
    %2214 = vmatprep.subr.bf16.mxu0 0
    %2215 = vmatpush1.bf16.msra.mxu0 0
    %2216 = vmatprep.subr.bf16.mxu0 0
    %2217 = vmatpush1.bf16.msra.mxu0 0
    %2218 = vmatprep.subr.bf16.mxu0 0
    %2219 = vmatpush1.bf16.msra.mxu0 0
    %2220 = vmatprep.subr.bf16.mxu0 0
    %2221 = vmatpush1.bf16.msra.mxu0 0
    %2222 = vmatprep.subr.bf16.mxu0 0
    %2223 = vmatpush1.bf16.msra.mxu0 0
    %2224 = vmatprep.subr.bf16.mxu0 0
    %2225 = vmatpush1.bf16.msra.mxu0 0
    %2226 = vmatprep.subr.bf16.mxu0 0
    %2227 = vmatpush1.bf16.msra.mxu0 0
    %2228 = vmatprep.subr.bf16.mxu0 0
    %2229 = vmatpush1.bf16.msra.mxu0 0
    %2230 = vmatprep.mubr.bf16.mxu0 0
    %2231 = vmatmul.mubr.bf16.gmra.mrb[0].mxu0 %v2137
    %v2232 = vpop.f32.mrb[0].mxu0
    %v2233 = vadd.f32 0.0, %v2232
    %v2234 = vpop.f32.mrb[0].mxu0
    %v2235 = vadd.f32 0.0, %v2234
    %v2236 = vpop.f32.mrb[0].mxu0
    %v2237 = vpop.f32.mrb[0].mxu0
    %2238 = vdwg.mxu0
    %2239 = vmatprep.subr.bf16.mxu0 %v2155
    %2240 = vmatpush1.bf16.msra.mxu0 %v2152
    %2241 = vmatprep.subr.bf16.mxu0 0
    %2242 = vmatpush1.bf16.msra.mxu0 0
    %2243 = vmatprep.subr.bf16.mxu0 0
    %2244 = vmatpush1.bf16.msra.mxu0 0
    %2245 = vmatprep.subr.bf16.mxu0 0
    %2246 = vmatpush1.bf16.msra.mxu0 0
    %2247 = vmatprep.subr.bf16.mxu0 0
    %2248 = vmatpush1.bf16.msra.mxu0 0
    %2249 = vmatprep.subr.bf16.mxu0 0
    %2250 = vmatpush1.bf16.msra.mxu0 0
    %2251 = vmatprep.subr.bf16.mxu0 0
    %2252 = vmatpush1.bf16.msra.mxu0 0
    %2253 = vmatprep.subr.bf16.mxu0 0
    %2254 = vmatpush1.bf16.msra.mxu0 0
    %2255 = vmatprep.subr.bf16.mxu0 0
    %2256 = vmatpush1.bf16.msra.mxu0 0
    %2257 = vmatprep.subr.bf16.mxu0 0
    %2258 = vmatpush1.bf16.msra.mxu0 0
    %2259 = vmatprep.subr.bf16.mxu0 0
    %2260 = vmatpush1.bf16.msra.mxu0 0
    %2261 = vmatprep.subr.bf16.mxu0 0
    %2262 = vmatpush1.bf16.msra.mxu0 0
    %2263 = vmatprep.subr.bf16.mxu0 0
    %2264 = vmatpush1.bf16.msra.mxu0 0
    %2265 = vmatprep.subr.bf16.mxu0 0
    %2266 = vmatpush1.bf16.msra.mxu0 0
    %2267 = vmatprep.subr.bf16.mxu0 0
    %2268 = vmatpush1.bf16.msra.mxu0 0
    %2269 = vmatprep.subr.bf16.mxu0 0
    %2270 = vmatpush1.bf16.msra.mxu0 0
    %2271 = vmatprep.mubr.bf16.mxu0 0
    %2272 = vmatmul.mubr.bf16.gmra.mrb[0].mxu0 %v2137
    %v2273 = vpop.f32.mrb[0].mxu0
    %v2274 = vadd.f32 0.0, %v2273
    %v2275 = vpop.f32.mrb[0].mxu0
    %v2276 = vadd.f32 0.0, %v2275
    %v2277 = vpop.f32.mrb[0].mxu0
    %v2278 = vpop.f32.mrb[0].mxu0
    %2279 = vdwg.mxu0
    %v2280 = vadd.f32 %v2026, %v2192
    %v2281 = vadd.f32 %v2028, %v2194
    %v2282 = vadd.f32 %v2067, %v2233
    %v2283 = vadd.f32 %v2069, %v2235
    %v2284 = vadd.f32 %v2108, %v2274
    %v2285 = vadd.f32 %v2110, %v2276
    %2286 = vrot.lane.b32.xlu0 %v1765, 104
    %v2287 = vpop.permute.xlu0 %2286
    %2288 = vrot.lane.b32.xlu0 %v1779, 1
    %v2289 = vpop.permute.xlu0 %2288
    %2290 = vrot.lane.b32.xlu0 %v1780, 1
    %v2291 = vpop.permute.xlu0 %2290
    %2292 = vrot.lane.b32.xlu0 %v1781, 1
    %v2293 = vpop.permute.xlu0 %2292
    %2294 = vrot.lane.b32.xlu0 %v1782, 1
    %v2295 = vpop.permute.xlu0 %2294
    %2296 = vrot.lane.b32.xlu0 %v1783, 1
    %v2297 = vpop.permute.xlu0 %2296
    %2298 = vrot.lane.b32.xlu0 %v1784, 1
    %v2299 = vpop.permute.xlu0 %2298
    %2300 = vrot.lane.b32.xlu0 %v1785, 1
    %v2301 = vpop.permute.xlu0 %2300
    %v2302 = vsel %vm591, %v2289, %v2291
    %v2303 = vsel %vm591, %v2291, %v2293
    %v2304 = vsel %vm591, %v2293, %v2295
    %v2305 = vsel %vm591, %v2295, %v2297
    %v2306 = vsel %vm591, %v2297, %v2299
    %v2307 = vsel %vm591, %v2299, %v2301
    %v2309 = vsel %vm91, %v2287, 0
    %v2312 = vsel %vm95, %v2302, 0
    %v2315 = vsel %vm95, %v2303, 0
    %v2318 = vsel %vm95, %v2304, 0
    %v2321 = vsel %vm95, %v2305, 0
    %v2324 = vsel %vm95, %v2306, 0
    %v2327 = vsel %vm95, %v2307, 0
    %2329 = vmatprep.subr.bf16.mxu0 %v2315
    %2330 = vmatpush1.bf16.msra.mxu0 %v2312
    %2331 = vmatprep.subr.bf16.mxu0 0
    %2332 = vmatpush1.bf16.msra.mxu0 0
    %2333 = vmatprep.subr.bf16.mxu0 0
    %2334 = vmatpush1.bf16.msra.mxu0 0
    %2335 = vmatprep.subr.bf16.mxu0 0
    %2336 = vmatpush1.bf16.msra.mxu0 0
    %2337 = vmatprep.subr.bf16.mxu0 0
    %2338 = vmatpush1.bf16.msra.mxu0 0
    %2339 = vmatprep.subr.bf16.mxu0 0
    %2340 = vmatpush1.bf16.msra.mxu0 0
    %2341 = vmatprep.subr.bf16.mxu0 0
    %2342 = vmatpush1.bf16.msra.mxu0 0
    %2343 = vmatprep.subr.bf16.mxu0 0
    %2344 = vmatpush1.bf16.msra.mxu0 0
    %2345 = vmatprep.subr.bf16.mxu0 0
    %2346 = vmatpush1.bf16.msra.mxu0 0
    %2347 = vmatprep.subr.bf16.mxu0 0
    %2348 = vmatpush1.bf16.msra.mxu0 0
    %2349 = vmatprep.subr.bf16.mxu0 0
    %2350 = vmatpush1.bf16.msra.mxu0 0
    %2351 = vmatprep.subr.bf16.mxu0 0
    %2352 = vmatpush1.bf16.msra.mxu0 0
    %2353 = vmatprep.subr.bf16.mxu0 0
    %2354 = vmatpush1.bf16.msra.mxu0 0
    %2355 = vmatprep.subr.bf16.mxu0 0
    %2356 = vmatpush1.bf16.msra.mxu0 0
    %2357 = vmatprep.subr.bf16.mxu0 0
    %2358 = vmatpush1.bf16.msra.mxu0 0
    %2359 = vmatprep.subr.bf16.mxu0 0
    %2360 = vmatpush1.bf16.msra.mxu0 0
    %2361 = vmatprep.mubr.bf16.mxu0 0
    %2362 = vmatmul.mubr.bf16.gmra.mrb[0].mxu0 %v2309
    %v2363 = vpop.f32.mrb[0].mxu0
    %v2364 = vadd.f32 0.0, %v2363
    %v2365 = vpop.f32.mrb[0].mxu0
    %v2366 = vadd.f32 0.0, %v2365
    %v2367 = vpop.f32.mrb[0].mxu0
    %v2368 = vpop.f32.mrb[0].mxu0
    %2369 = vdwg.mxu0
    %2370 = vmatprep.subr.bf16.mxu0 %v2321
    %2371 = vmatpush1.bf16.msra.mxu0 %v2318
    %2372 = vmatprep.subr.bf16.mxu0 0
    %2373 = vmatpush1.bf16.msra.mxu0 0
    %2374 = vmatprep.subr.bf16.mxu0 0
    %2375 = vmatpush1.bf16.msra.mxu0 0
    %2376 = vmatprep.subr.bf16.mxu0 0
    %2377 = vmatpush1.bf16.msra.mxu0 0
    %2378 = vmatprep.subr.bf16.mxu0 0
    %2379 = vmatpush1.bf16.msra.mxu0 0
    %2380 = vmatprep.subr.bf16.mxu0 0
    %2381 = vmatpush1.bf16.msra.mxu0 0
    %2382 = vmatprep.subr.bf16.mxu0 0
    %2383 = vmatpush1.bf16.msra.mxu0 0
    %2384 = vmatprep.subr.bf16.mxu0 0
    %2385 = vmatpush1.bf16.msra.mxu0 0
    %2386 = vmatprep.subr.bf16.mxu0 0
    %2387 = vmatpush1.bf16.msra.mxu0 0
    %2388 = vmatprep.subr.bf16.mxu0 0
    %2389 = vmatpush1.bf16.msra.mxu0 0
    %2390 = vmatprep.subr.bf16.mxu0 0
    %2391 = vmatpush1.bf16.msra.mxu0 0
    %2392 = vmatprep.subr.bf16.mxu0 0
    %2393 = vmatpush1.bf16.msra.mxu0 0
    %2394 = vmatprep.subr.bf16.mxu0 0
    %2395 = vmatpush1.bf16.msra.mxu0 0
    %2396 = vmatprep.subr.bf16.mxu0 0
    %2397 = vmatpush1.bf16.msra.mxu0 0
    %2398 = vmatprep.subr.bf16.mxu0 0
    %2399 = vmatpush1.bf16.msra.mxu0 0
    %2400 = vmatprep.subr.bf16.mxu0 0
    %2401 = vmatpush1.bf16.msra.mxu0 0
    %2402 = vmatprep.mubr.bf16.mxu0 0
    %2403 = vmatmul.mubr.bf16.gmra.mrb[0].mxu0 %v2309
    %v2404 = vpop.f32.mrb[0].mxu0
    %v2405 = vadd.f32 0.0, %v2404
    %v2406 = vpop.f32.mrb[0].mxu0
    %v2407 = vadd.f32 0.0, %v2406
    %v2408 = vpop.f32.mrb[0].mxu0
    %v2409 = vpop.f32.mrb[0].mxu0
    %2410 = vdwg.mxu0
    %2411 = vmatprep.subr.bf16.mxu0 %v2327
    %2412 = vmatpush1.bf16.msra.mxu0 %v2324
    %2413 = vmatprep.subr.bf16.mxu0 0
    %2414 = vmatpush1.bf16.msra.mxu0 0
    %2415 = vmatprep.subr.bf16.mxu0 0
    %2416 = vmatpush1.bf16.msra.mxu0 0
    %2417 = vmatprep.subr.bf16.mxu0 0
    %2418 = vmatpush1.bf16.msra.mxu0 0
    %2419 = vmatprep.subr.bf16.mxu0 0
    %2420 = vmatpush1.bf16.msra.mxu0 0
    %2421 = vmatprep.subr.bf16.mxu0 0
    %2422 = vmatpush1.bf16.msra.mxu0 0
    %2423 = vmatprep.subr.bf16.mxu0 0
    %2424 = vmatpush1.bf16.msra.mxu0 0
    %2425 = vmatprep.subr.bf16.mxu0 0
    %2426 = vmatpush1.bf16.msra.mxu0 0
    %2427 = vmatprep.subr.bf16.mxu0 0
    %2428 = vmatpush1.bf16.msra.mxu0 0
    %2429 = vmatprep.subr.bf16.mxu0 0
    %2430 = vmatpush1.bf16.msra.mxu0 0
    %2431 = vmatprep.subr.bf16.mxu0 0
    %2432 = vmatpush1.bf16.msra.mxu0 0
    %2433 = vmatprep.subr.bf16.mxu0 0
    %2434 = vmatpush1.bf16.msra.mxu0 0
    %2435 = vmatprep.subr.bf16.mxu0 0
    %2436 = vmatpush1.bf16.msra.mxu0 0
    %2437 = vmatprep.subr.bf16.mxu0 0
    %2438 = vmatpush1.bf16.msra.mxu0 0
    %2439 = vmatprep.subr.bf16.mxu0 0
    %2440 = vmatpush1.bf16.msra.mxu0 0
    %2441 = vmatprep.subr.bf16.mxu0 0
    %2442 = vmatpush1.bf16.msra.mxu0 0
    %2443 = vmatprep.mubr.bf16.mxu0 0
    %2444 = vmatmul.mubr.bf16.gmra.mrb[0].mxu0 %v2309
    %v2445 = vpop.f32.mrb[0].mxu0
    %v2446 = vadd.f32 0.0, %v2445
    %v2447 = vpop.f32.mrb[0].mxu0
    %v2448 = vadd.f32 0.0, %v2447
    %v2449 = vpop.f32.mrb[0].mxu0
    %v2450 = vpop.f32.mrb[0].mxu0
    %2451 = vdwg.mxu0
    %v2452 = vadd.f32 %v2280, %v2364
    %v2453 = vadd.f32 %v2281, %v2366
    %v2454 = vadd.f32 %v2282, %v2405
    %v2455 = vadd.f32 %v2283, %v2407
    %v2456 = vadd.f32 %v2284, %v2446
    %v2457 = vadd.f32 %v2285, %v2448
    %v2458 = vld [vmem:[#allocation2 + $0x4] sm:$0xff]
    %v2459 = vld [vmem:[#allocation2 + $0xc] sm:$0xff]
    %v2460 = vld [vmem:[#allocation2 + $0x14] sm:$0xff]
    %2461 = vrot.lane.b32.xlu0 %v1765, 96
    %v2462 = vpop.permute.xlu0 %2461
    %v2466 = vunpack.c.l.b16 %v2458
    %v2467 = vunpack.c.h.b16 %v2458
    %v2468 = vunpack.c.l.b16 %v2459
    %v2469 = vunpack.c.h.b16 %v2459
    %v2470 = vunpack.c.l.b16 %v2460
    %v2471 = vunpack.c.h.b16 %v2460
    %v2472 = vpack.c.b16 %v2466, %v2466
    %v2473 = vpack.c.b16 %v2467, %v2467
    %v2474 = vpack.c.b16 %v2468, %v2468
    %v2475 = vpack.c.b16 %v2469, %v2469
    %v2476 = vpack.c.b16 %v2470, %v2470
    %v2477 = vpack.c.b16 %v2471, %v2471
    %v2479 = vsel %vm91, %v2462, 0
    %v2482 = vsel %vm95, %v2472, 0
    %v2485 = vsel %vm95, %v2473, 0
    %v2488 = vsel %vm95, %v2474, 0
    %v2491 = vsel %vm95, %v2475, 0
    %v2494 = vsel %vm95, %v2476, 0
    %v2497 = vsel %vm95, %v2477, 0
    %2499 = vmatprep.subr.bf16.mxu0 %v2485
    %2500 = vmatpush1.bf16.msra.mxu0 %v2482
    %2501 = vmatprep.subr.bf16.mxu0 0
    %2502 = vmatpush1.bf16.msra.mxu0 0
    %2503 = vmatprep.subr.bf16.mxu0 0
    %2504 = vmatpush1.bf16.msra.mxu0 0
    %2505 = vmatprep.subr.bf16.mxu0 0
    %2506 = vmatpush1.bf16.msra.mxu0 0
    %2507 = vmatprep.subr.bf16.mxu0 0
    %2508 = vmatpush1.bf16.msra.mxu0 0
    %2509 = vmatprep.subr.bf16.mxu0 0
    %2510 = vmatpush1.bf16.msra.mxu0 0
    %2511 = vmatprep.subr.bf16.mxu0 0
    %2512 = vmatpush1.bf16.msra.mxu0 0
    %2513 = vmatprep.subr.bf16.mxu0 0
    %2514 = vmatpush1.bf16.msra.mxu0 0
    %2515 = vmatprep.subr.bf16.mxu0 0
    %2516 = vmatpush1.bf16.msra.mxu0 0
    %2517 = vmatprep.subr.bf16.mxu0 0
    %2518 = vmatpush1.bf16.msra.mxu0 0
    %2519 = vmatprep.subr.bf16.mxu0 0
    %2520 = vmatpush1.bf16.msra.mxu0 0
    %2521 = vmatprep.subr.bf16.mxu0 0
    %2522 = vmatpush1.bf16.msra.mxu0 0
    %2523 = vmatprep.subr.bf16.mxu0 0
    %2524 = vmatpush1.bf16.msra.mxu0 0
    %2525 = vmatprep.subr.bf16.mxu0 0
    %2526 = vmatpush1.bf16.msra.mxu0 0
    %2527 = vmatprep.subr.bf16.mxu0 0
    %2528 = vmatpush1.bf16.msra.mxu0 0
    %2529 = vmatprep.subr.bf16.mxu0 0
    %2530 = vmatpush1.bf16.msra.mxu0 0
    %2531 = vmatprep.mubr.bf16.mxu0 0
    %2532 = vmatmul.mubr.bf16.gmra.mrb[0].mxu0 %v2479
    %v2533 = vpop.f32.mrb[0].mxu0
    %v2534 = vadd.f32 0.0, %v2533
    %v2535 = vpop.f32.mrb[0].mxu0
    %v2536 = vadd.f32 0.0, %v2535
    %v2537 = vpop.f32.mrb[0].mxu0
    %v2538 = vpop.f32.mrb[0].mxu0
    %2539 = vdwg.mxu0
    %2540 = vmatprep.subr.bf16.mxu0 %v2491
    %2541 = vmatpush1.bf16.msra.mxu0 %v2488
    %2542 = vmatprep.subr.bf16.mxu0 0
    %2543 = vmatpush1.bf16.msra.mxu0 0
    %2544 = vmatprep.subr.bf16.mxu0 0
    %2545 = vmatpush1.bf16.msra.mxu0 0
    %2546 = vmatprep.subr.bf16.mxu0 0
    %2547 = vmatpush1.bf16.msra.mxu0 0
    %2548 = vmatprep.subr.bf16.mxu0 0
    %2549 = vmatpush1.bf16.msra.mxu0 0
    %2550 = vmatprep.subr.bf16.mxu0 0
    %2551 = vmatpush1.bf16.msra.mxu0 0
    %2552 = vmatprep.subr.bf16.mxu0 0
    %2553 = vmatpush1.bf16.msra.mxu0 0
    %2554 = vmatprep.subr.bf16.mxu0 0
    %2555 = vmatpush1.bf16.msra.mxu0 0
    %2556 = vmatprep.subr.bf16.mxu0 0
    %2557 = vmatpush1.bf16.msra.mxu0 0
    %2558 = vmatprep.subr.bf16.mxu0 0
    %2559 = vmatpush1.bf16.msra.mxu0 0
    %2560 = vmatprep.subr.bf16.mxu0 0
    %2561 = vmatpush1.bf16.msra.mxu0 0
    %2562 = vmatprep.subr.bf16.mxu0 0
    %2563 = vmatpush1.bf16.msra.mxu0 0
    %2564 = vmatprep.subr.bf16.mxu0 0
    %2565 = vmatpush1.bf16.msra.mxu0 0
    %2566 = vmatprep.subr.bf16.mxu0 0
    %2567 = vmatpush1.bf16.msra.mxu0 0
    %2568 = vmatprep.subr.bf16.mxu0 0
    %2569 = vmatpush1.bf16.msra.mxu0 0
    %2570 = vmatprep.subr.bf16.mxu0 0
    %2571 = vmatpush1.bf16.msra.mxu0 0
    %2572 = vmatprep.mubr.bf16.mxu0 0
    %2573 = vmatmul.mubr.bf16.gmra.mrb[0].mxu0 %v2479
    %v2574 = vpop.f32.mrb[0].mxu0
    %v2575 = vadd.f32 0.0, %v2574
    %v2576 = vpop.f32.mrb[0].mxu0
    %v2577 = vadd.f32 0.0, %v2576
    %v2578 = vpop.f32.mrb[0].mxu0
    %v2579 = vpop.f32.mrb[0].mxu0
    %2580 = vdwg.mxu0
    %2581 = vmatprep.subr.bf16.mxu0 %v2497
    %2582 = vmatpush1.bf16.msra.mxu0 %v2494
    %2583 = vmatprep.subr.bf16.mxu0 0
    %2584 = vmatpush1.bf16.msra.mxu0 0
    %2585 = vmatprep.subr.bf16.mxu0 0
    %2586 = vmatpush1.bf16.msra.mxu0 0
    %2587 = vmatprep.subr.bf16.mxu0 0
    %2588 = vmatpush1.bf16.msra.mxu0 0
    %2589 = vmatprep.subr.bf16.mxu0 0
    %2590 = vmatpush1.bf16.msra.mxu0 0
    %2591 = vmatprep.subr.bf16.mxu0 0
    %2592 = vmatpush1.bf16.msra.mxu0 0
    %2593 = vmatprep.subr.bf16.mxu0 0
    %2594 = vmatpush1.bf16.msra.mxu0 0
    %2595 = vmatprep.subr.bf16.mxu0 0
    %2596 = vmatpush1.bf16.msra.mxu0 0
    %2597 = vmatprep.subr.bf16.mxu0 0
    %2598 = vmatpush1.bf16.msra.mxu0 0
    %2599 = vmatprep.subr.bf16.mxu0 0
    %2600 = vmatpush1.bf16.msra.mxu0 0
    %2601 = vmatprep.subr.bf16.mxu0 0
    %2602 = vmatpush1.bf16.msra.mxu0 0
    %2603 = vmatprep.subr.bf16.mxu0 0
    %2604 = vmatpush1.bf16.msra.mxu0 0
    %2605 = vmatprep.subr.bf16.mxu0 0
    %2606 = vmatpush1.bf16.msra.mxu0 0
    %2607 = vmatprep.subr.bf16.mxu0 0
    %2608 = vmatpush1.bf16.msra.mxu0 0
    %2609 = vmatprep.subr.bf16.mxu0 0
    %2610 = vmatpush1.bf16.msra.mxu0 0
    %2611 = vmatprep.subr.bf16.mxu0 0
    %2612 = vmatpush1.bf16.msra.mxu0 0
    %2613 = vmatprep.mubr.bf16.mxu0 0
    %2614 = vmatmul.mubr.bf16.gmra.mrb[0].mxu0 %v2479
    %v2615 = vpop.f32.mrb[0].mxu0
    %v2616 = vadd.f32 0.0, %v2615
    %v2617 = vpop.f32.mrb[0].mxu0
    %v2618 = vadd.f32 0.0, %v2617
    %v2619 = vpop.f32.mrb[0].mxu0
    %v2620 = vpop.f32.mrb[0].mxu0
    %2621 = vdwg.mxu0
    %v2622 = vadd.f32 %v2452, %v2534
    %v2623 = vadd.f32 %v2453, %v2536
    %v2624 = vadd.f32 %v2454, %v2575
    %v2625 = vadd.f32 %v2455, %v2577
    %v2626 = vadd.f32 %v2456, %v2616
    %v2627 = vadd.f32 %v2457, %v2618
    %v2628 = vld [vmem:[#allocation2 + $0x4] sm:$0xff]
    %v2629 = vld [vmem:[#allocation2 + $0xc] sm:$0xff]
    %v2630 = vld [vmem:[#allocation2 + $0x14] sm:$0xff]
    %v2631 = vld [vmem:[#allocation2 + $0x1c] sm:$0xf]
    %2632 = vrot.lane.b32.xlu0 %v1765, 88
    %v2633 = vpop.permute.xlu0 %2632
    %v2638 = vunpack.c.l.b16 %v2628
    %v2639 = vunpack.c.h.b16 %v2628
    %v2640 = vunpack.c.l.b16 %v2629
    %v2641 = vunpack.c.h.b16 %v2629
    %v2642 = vunpack.c.l.b16 %v2630
    %v2643 = vunpack.c.h.b16 %v2630
    %v2644 = vunpack.c.l.b16 %v2631
    %v2645 = vpack.c.b16 %v2638, %v2638
    %v2646 = vpack.c.b16 %v2639, %v2639
    %v2647 = vpack.c.b16 %v2640, %v2640
    %v2648 = vpack.c.b16 %v2641, %v2641
    %v2649 = vpack.c.b16 %v2642, %v2642
    %v2650 = vpack.c.b16 %v2643, %v2643
    %v2651 = vpack.c.b16 %v2644, %v2644
    %2652 = vrot.lane.b32.xlu0 %v2645, 127
    %v2653 = vpop.permute.xlu0 %2652
    %2654 = vrot.lane.b32.xlu0 %v2646, 127
    %v2655 = vpop.permute.xlu0 %2654
    %2656 = vrot.lane.b32.xlu0 %v2647, 127
    %v2657 = vpop.permute.xlu0 %2656
    %2658 = vrot.lane.b32.xlu0 %v2648, 127
    %v2659 = vpop.permute.xlu0 %2658
    %2660 = vrot.lane.b32.xlu0 %v2649, 127
    %v2661 = vpop.permute.xlu0 %2660
    %2662 = vrot.lane.b32.xlu0 %v2650, 127
    %v2663 = vpop.permute.xlu0 %2662
    %2664 = vrot.lane.b32.xlu0 %v2651, 127
    %v2665 = vpop.permute.xlu0 %2664
    %v2666 = vsel %vm956, %v2653, %v2655
    %v2667 = vsel %vm956, %v2655, %v2657
    %v2668 = vsel %vm956, %v2657, %v2659
    %v2669 = vsel %vm956, %v2659, %v2661
    %v2670 = vsel %vm956, %v2661, %v2663
    %v2671 = vsel %vm956, %v2663, %v2665
    %v2673 = vsel %vm91, %v2633, 0
    %v2676 = vsel %vm95, %v2666, 0
    %v2679 = vsel %vm95, %v2667, 0
    %v2682 = vsel %vm95, %v2668, 0
    %v2685 = vsel %vm95, %v2669, 0
    %v2688 = vsel %vm95, %v2670, 0
    %v2691 = vsel %vm95, %v2671, 0
    %2693 = vmatprep.subr.bf16.mxu0 %v2679
    %2694 = vmatpush1.bf16.msra.mxu0 %v2676
    %2695 = vmatprep.subr.bf16.mxu0 0
    %2696 = vmatpush1.bf16.msra.mxu0 0
    %2697 = vmatprep.subr.bf16.mxu0 0
    %2698 = vmatpush1.bf16.msra.mxu0 0
    %2699 = vmatprep.subr.bf16.mxu0 0
    %2700 = vmatpush1.bf16.msra.mxu0 0
    %2701 = vmatprep.subr.bf16.mxu0 0
    %2702 = vmatpush1.bf16.msra.mxu0 0
    %2703 = vmatprep.subr.bf16.mxu0 0
    %2704 = vmatpush1.bf16.msra.mxu0 0
    %2705 = vmatprep.subr.bf16.mxu0 0
    %2706 = vmatpush1.bf16.msra.mxu0 0
    %2707 = vmatprep.subr.bf16.mxu0 0
    %2708 = vmatpush1.bf16.msra.mxu0 0
    %2709 = vmatprep.subr.bf16.mxu0 0
    %2710 = vmatpush1.bf16.msra.mxu0 0
    %2711 = vmatprep.subr.bf16.mxu0 0
    %2712 = vmatpush1.bf16.msra.mxu0 0
    %2713 = vmatprep.subr.bf16.mxu0 0
    %2714 = vmatpush1.bf16.msra.mxu0 0
    %2715 = vmatprep.subr.bf16.mxu0 0
    %2716 = vmatpush1.bf16.msra.mxu0 0
    %2717 = vmatprep.subr.bf16.mxu0 0
    %2718 = vmatpush1.bf16.msra.mxu0 0
    %2719 = vmatprep.subr.bf16.mxu0 0
    %2720 = vmatpush1.bf16.msra.mxu0 0
    %2721 = vmatprep.subr.bf16.mxu0 0
    %2722 = vmatpush1.bf16.msra.mxu0 0
    %2723 = vmatprep.subr.bf16.mxu0 0
    %2724 = vmatpush1.bf16.msra.mxu0 0
    %2725 = vmatprep.mubr.bf16.mxu0 0
    %2726 = vmatmul.mubr.bf16.gmra.mrb[0].mxu0 %v2673
    %v2727 = vpop.f32.mrb[0].mxu0
    %v2728 = vadd.f32 0.0, %v2727
    %v2729 = vpop.f32.mrb[0].mxu0
    %v2730 = vadd.f32 0.0, %v2729
    %v2731 = vpop.f32.mrb[0].mxu0
    %v2732 = vpop.f32.mrb[0].mxu0
    %2733 = vdwg.mxu0
    %2734 = vmatprep.subr.bf16.mxu0 %v2685
    %2735 = vmatpush1.bf16.msra.mxu0 %v2682
    %2736 = vmatprep.subr.bf16.mxu0 0
    %2737 = vmatpush1.bf16.msra.mxu0 0
    %2738 = vmatprep.subr.bf16.mxu0 0
    %2739 = vmatpush1.bf16.msra.mxu0 0
    %2740 = vmatprep.subr.bf16.mxu0 0
    %2741 = vmatpush1.bf16.msra.mxu0 0
    %2742 = vmatprep.subr.bf16.mxu0 0
    %2743 = vmatpush1.bf16.msra.mxu0 0
    %2744 = vmatprep.subr.bf16.mxu0 0
    %2745 = vmatpush1.bf16.msra.mxu0 0
    %2746 = vmatprep.subr.bf16.mxu0 0
    %2747 = vmatpush1.bf16.msra.mxu0 0
    %2748 = vmatprep.subr.bf16.mxu0 0
    %2749 = vmatpush1.bf16.msra.mxu0 0
    %2750 = vmatprep.subr.bf16.mxu0 0
    %2751 = vmatpush1.bf16.msra.mxu0 0
    %2752 = vmatprep.subr.bf16.mxu0 0
    %2753 = vmatpush1.bf16.msra.mxu0 0
    %2754 = vmatprep.subr.bf16.mxu0 0
    %2755 = vmatpush1.bf16.msra.mxu0 0
    %2756 = vmatprep.subr.bf16.mxu0 0
    %2757 = vmatpush1.bf16.msra.mxu0 0
    %2758 = vmatprep.subr.bf16.mxu0 0
    %2759 = vmatpush1.bf16.msra.mxu0 0
    %2760 = vmatprep.subr.bf16.mxu0 0
    %2761 = vmatpush1.bf16.msra.mxu0 0
    %2762 = vmatprep.subr.bf16.mxu0 0
    %2763 = vmatpush1.bf16.msra.mxu0 0
    %2764 = vmatprep.subr.bf16.mxu0 0
    %2765 = vmatpush1.bf16.msra.mxu0 0
    %2766 = vmatprep.mubr.bf16.mxu0 0
    %2767 = vmatmul.mubr.bf16.gmra.mrb[0].mxu0 %v2673
    %v2768 = vpop.f32.mrb[0].mxu0
    %v2769 = vadd.f32 0.0, %v2768
    %v2770 = vpop.f32.mrb[0].mxu0
    %v2771 = vadd.f32 0.0, %v2770
    %v2772 = vpop.f32.mrb[0].mxu0
    %v2773 = vpop.f32.mrb[0].mxu0
    %2774 = vdwg.mxu0
    %2775 = vmatprep.subr.bf16.mxu0 %v2691
    %2776 = vmatpush1.bf16.msra.mxu0 %v2688
    %2777 = vmatprep.subr.bf16.mxu0 0
    %2778 = vmatpush1.bf16.msra.mxu0 0
    %2779 = vmatprep.subr.bf16.mxu0 0
    %2780 = vmatpush1.bf16.msra.mxu0 0
    %2781 = vmatprep.subr.bf16.mxu0 0
    %2782 = vmatpush1.bf16.msra.mxu0 0
    %2783 = vmatprep.subr.bf16.mxu0 0
    %2784 = vmatpush1.bf16.msra.mxu0 0
    %2785 = vmatprep.subr.bf16.mxu0 0
    %2786 = vmatpush1.bf16.msra.mxu0 0
    %2787 = vmatprep.subr.bf16.mxu0 0
    %2788 = vmatpush1.bf16.msra.mxu0 0
    %2789 = vmatprep.subr.bf16.mxu0 0
    %2790 = vmatpush1.bf16.msra.mxu0 0
    %2791 = vmatprep.subr.bf16.mxu0 0
    %2792 = vmatpush1.bf16.msra.mxu0 0
    %2793 = vmatprep.subr.bf16.mxu0 0
    %2794 = vmatpush1.bf16.msra.mxu0 0
    %2795 = vmatprep.subr.bf16.mxu0 0
    %2796 = vmatpush1.bf16.msra.mxu0 0
    %2797 = vmatprep.subr.bf16.mxu0 0
    %2798 = vmatpush1.bf16.msra.mxu0 0
    %2799 = vmatprep.subr.bf16.mxu0 0
    %2800 = vmatpush1.bf16.msra.mxu0 0
    %2801 = vmatprep.subr.bf16.mxu0 0
    %2802 = vmatpush1.bf16.msra.mxu0 0
    %2803 = vmatprep.subr.bf16.mxu0 0
    %2804 = vmatpush1.bf16.msra.mxu0 0
    %2805 = vmatprep.subr.bf16.mxu0 0
    %2806 = vmatpush1.bf16.msra.mxu0 0
    %2807 = vmatprep.mubr.bf16.mxu0 0
    %2808 = vmatmul.mubr.bf16.gmra.mrb[0].mxu0 %v2673
    %v2809 = vpop.f32.mrb[0].mxu0
    %v2810 = vadd.f32 0.0, %v2809
    %v2811 = vpop.f32.mrb[0].mxu0
    %v2812 = vadd.f32 0.0, %v2811
    %v2813 = vpop.f32.mrb[0].mxu0
    %v2814 = vpop.f32.mrb[0].mxu0
    %2815 = vdwg.mxu0
    %v2816 = vadd.f32 %v2622, %v2728
    %v2817 = vadd.f32 %v2623, %v2730
    %v2818 = vadd.f32 %v2624, %v2769
    %v2819 = vadd.f32 %v2625, %v2771
    %v2820 = vadd.f32 %v2626, %v2810
    %v2821 = vadd.f32 %v2627, %v2812
    %2822 = vrot.lane.b32.xlu0 %v1765, 80
    %v2823 = vpop.permute.xlu0 %2822
    %2824 = vrot.lane.b32.xlu0 %v2645, 111
    %v2825 = vpop.permute.xlu0 %2824
    %2826 = vrot.lane.b32.xlu0 %v2646, 111
    %v2827 = vpop.permute.xlu0 %2826
    %2828 = vrot.lane.b32.xlu0 %v2647, 111
    %v2829 = vpop.permute.xlu0 %2828
    %2830 = vrot.lane.b32.xlu0 %v2648, 111
    %v2831 = vpop.permute.xlu0 %2830
    %2832 = vrot.lane.b32.xlu0 %v2649, 111
    %v2833 = vpop.permute.xlu0 %2832
    %2834 = vrot.lane.b32.xlu0 %v2650, 111
    %v2835 = vpop.permute.xlu0 %2834
    %2836 = vrot.lane.b32.xlu0 %v2651, 111
    %v2837 = vpop.permute.xlu0 %2836
    %v2838 = vsel %vm1129, %v2825, %v2827
    %v2839 = vsel %vm1129, %v2827, %v2829
    %v2840 = vsel %vm1129, %v2829, %v2831
    %v2841 = vsel %vm1129, %v2831, %v2833
    %v2842 = vsel %vm1129, %v2833, %v2835
    %v2843 = vsel %vm1129, %v2835, %v2837
    %v2845 = vsel %vm91, %v2823, 0
    %v2848 = vsel %vm95, %v2838, 0
    %v2851 = vsel %vm95, %v2839, 0
    %v2854 = vsel %vm95, %v2840, 0
    %v2857 = vsel %vm95, %v2841, 0
    %v2860 = vsel %vm95, %v2842, 0
    %v2863 = vsel %vm95, %v2843, 0
    %2865 = vmatprep.subr.bf16.mxu0 %v2851
    %2866 = vmatpush1.bf16.msra.mxu0 %v2848
    %2867 = vmatprep.subr.bf16.mxu0 0
    %2868 = vmatpush1.bf16.msra.mxu0 0
    %2869 = vmatprep.subr.bf16.mxu0 0
    %2870 = vmatpush1.bf16.msra.mxu0 0
    %2871 = vmatprep.subr.bf16.mxu0 0
    %2872 = vmatpush1.bf16.msra.mxu0 0
    %2873 = vmatprep.subr.bf16.mxu0 0
    %2874 = vmatpush1.bf16.msra.mxu0 0
    %2875 = vmatprep.subr.bf16.mxu0 0
    %2876 = vmatpush1.bf16.msra.mxu0 0
    %2877 = vmatprep.subr.bf16.mxu0 0
    %2878 = vmatpush1.bf16.msra.mxu0 0
    %2879 = vmatprep.subr.bf16.mxu0 0
    %2880 = vmatpush1.bf16.msra.mxu0 0
    %2881 = vmatprep.subr.bf16.mxu0 0
    %2882 = vmatpush1.bf16.msra.mxu0 0
    %2883 = vmatprep.subr.bf16.mxu0 0
    %2884 = vmatpush1.bf16.msra.mxu0 0
    %2885 = vmatprep.subr.bf16.mxu0 0
    %2886 = vmatpush1.bf16.msra.mxu0 0
    %2887 = vmatprep.subr.bf16.mxu0 0
    %2888 = vmatpush1.bf16.msra.mxu0 0
    %2889 = vmatprep.subr.bf16.mxu0 0
    %2890 = vmatpush1.bf16.msra.mxu0 0
    %2891 = vmatprep.subr.bf16.mxu0 0
    %2892 = vmatpush1.bf16.msra.mxu0 0
    %2893 = vmatprep.subr.bf16.mxu0 0
    %2894 = vmatpush1.bf16.msra.mxu0 0
    %2895 = vmatprep.subr.bf16.mxu0 0
    %2896 = vmatpush1.bf16.msra.mxu0 0
    %2897 = vmatprep.mubr.bf16.mxu0 0
    %2898 = vmatmul.mubr.bf16.gmra.mrb[0].mxu0 %v2845
    %v2899 = vpop.f32.mrb[0].mxu0
    %v2900 = vadd.f32 0.0, %v2899
    %v2901 = vpop.f32.mrb[0].mxu0
    %v2902 = vadd.f32 0.0, %v2901
    %v2903 = vpop.f32.mrb[0].mxu0
    %v2904 = vpop.f32.mrb[0].mxu0
    %2905 = vdwg.mxu0
    %2906 = vmatprep.subr.bf16.mxu0 %v2857
    %2907 = vmatpush1.bf16.msra.mxu0 %v2854
    %2908 = vmatprep.subr.bf16.mxu0 0
    %2909 = vmatpush1.bf16.msra.mxu0 0
    %2910 = vmatprep.subr.bf16.mxu0 0
    %2911 = vmatpush1.bf16.msra.mxu0 0
    %2912 = vmatprep.subr.bf16.mxu0 0
    %2913 = vmatpush1.bf16.msra.mxu0 0
    %2914 = vmatprep.subr.bf16.mxu0 0
    %2915 = vmatpush1.bf16.msra.mxu0 0
    %2916 = vmatprep.subr.bf16.mxu0 0
    %2917 = vmatpush1.bf16.msra.mxu0 0
    %2918 = vmatprep.subr.bf16.mxu0 0
    %2919 = vmatpush1.bf16.msra.mxu0 0
    %2920 = vmatprep.subr.bf16.mxu0 0
    %2921 = vmatpush1.bf16.msra.mxu0 0
    %2922 = vmatprep.subr.bf16.mxu0 0
    %2923 = vmatpush1.bf16.msra.mxu0 0
    %2924 = vmatprep.subr.bf16.mxu0 0
    %2925 = vmatpush1.bf16.msra.mxu0 0
    %2926 = vmatprep.subr.bf16.mxu0 0
    %2927 = vmatpush1.bf16.msra.mxu0 0
    %2928 = vmatprep.subr.bf16.mxu0 0
    %2929 = vmatpush1.bf16.msra.mxu0 0
    %2930 = vmatprep.subr.bf16.mxu0 0
    %2931 = vmatpush1.bf16.msra.mxu0 0
    %2932 = vmatprep.subr.bf16.mxu0 0
    %2933 = vmatpush1.bf16.msra.mxu0 0
    %2934 = vmatprep.subr.bf16.mxu0 0
    %2935 = vmatpush1.bf16.msra.mxu0 0
    %2936 = vmatprep.subr.bf16.mxu0 0
    %2937 = vmatpush1.bf16.msra.mxu0 0
    %2938 = vmatprep.mubr.bf16.mxu0 0
    %2939 = vmatmul.mubr.bf16.gmra.mrb[0].mxu0 %v2845
    %v2940 = vpop.f32.mrb[0].mxu0
    %v2941 = vadd.f32 0.0, %v2940
    %v2942 = vpop.f32.mrb[0].mxu0
    %v2943 = vadd.f32 0.0, %v2942
    %v2944 = vpop.f32.mrb[0].mxu0
    %v2945 = vpop.f32.mrb[0].mxu0
    %2946 = vdwg.mxu0
    %2947 = vmatprep.subr.bf16.mxu0 %v2863
    %2948 = vmatpush1.bf16.msra.mxu0 %v2860
    %2949 = vmatprep.subr.bf16.mxu0 0
    %2950 = vmatpush1.bf16.msra.mxu0 0
    %2951 = vmatprep.subr.bf16.mxu0 0
    %2952 = vmatpush1.bf16.msra.mxu0 0
    %2953 = vmatprep.subr.bf16.mxu0 0
    %2954 = vmatpush1.bf16.msra.mxu0 0
    %2955 = vmatprep.subr.bf16.mxu0 0
    %2956 = vmatpush1.bf16.msra.mxu0 0
    %2957 = vmatprep.subr.bf16.mxu0 0
    %2958 = vmatpush1.bf16.msra.mxu0 0
    %2959 = vmatprep.subr.bf16.mxu0 0
    %2960 = vmatpush1.bf16.msra.mxu0 0
    %2961 = vmatprep.subr.bf16.mxu0 0
    %2962 = vmatpush1.bf16.msra.mxu0 0
    %2963 = vmatprep.subr.bf16.mxu0 0
    %2964 = vmatpush1.bf16.msra.mxu0 0
    %2965 = vmatprep.subr.bf16.mxu0 0
    %2966 = vmatpush1.bf16.msra.mxu0 0
    %2967 = vmatprep.subr.bf16.mxu0 0
    %2968 = vmatpush1.bf16.msra.mxu0 0
    %2969 = vmatprep.subr.bf16.mxu0 0
    %2970 = vmatpush1.bf16.msra.mxu0 0
    %2971 = vmatprep.subr.bf16.mxu0 0
    %2972 = vmatpush1.bf16.msra.mxu0 0
    %2973 = vmatprep.subr.bf16.mxu0 0
    %2974 = vmatpush1.bf16.msra.mxu0 0
    %2975 = vmatprep.subr.bf16.mxu0 0
    %2976 = vmatpush1.bf16.msra.mxu0 0
    %2977 = vmatprep.subr.bf16.mxu0 0
    %2978 = vmatpush1.bf16.msra.mxu0 0
    %2979 = vmatprep.mubr.bf16.mxu0 0
    %2980 = vmatmul.mubr.bf16.gmra.mrb[0].mxu0 %v2845
    %v2981 = vpop.f32.mrb[0].mxu0
    %v2982 = vadd.f32 0.0, %v2981
    %v2983 = vpop.f32.mrb[0].mxu0
    %v2984 = vadd.f32 0.0, %v2983
    %v2985 = vpop.f32.mrb[0].mxu0
    %v2986 = vpop.f32.mrb[0].mxu0
    %2987 = vdwg.mxu0
    %v2988 = vadd.f32 %v2816, %v2900
    %v2989 = vadd.f32 %v2817, %v2902
    %v2990 = vadd.f32 %v2818, %v2941
    %v2991 = vadd.f32 %v2819, %v2943
    %v2992 = vadd.f32 %v2820, %v2982
    %v2993 = vadd.f32 %v2821, %v2984
    %2994 = vrot.lane.b32.xlu0 %v1765, 72
    %v2995 = vpop.permute.xlu0 %2994
    %2996 = vrot.lane.b32.xlu0 %v2645, 110
    %v2997 = vpop.permute.xlu0 %2996
    %2998 = vrot.lane.b32.xlu0 %v2646, 110
    %v2999 = vpop.permute.xlu0 %2998
    %3000 = vrot.lane.b32.xlu0 %v2647, 110
    %v3001 = vpop.permute.xlu0 %3000
    %3002 = vrot.lane.b32.xlu0 %v2648, 110
    %v3003 = vpop.permute.xlu0 %3002
    %3004 = vrot.lane.b32.xlu0 %v2649, 110
    %v3005 = vpop.permute.xlu0 %3004
    %3006 = vrot.lane.b32.xlu0 %v2650, 110
    %v3007 = vpop.permute.xlu0 %3006
    %3008 = vrot.lane.b32.xlu0 %v2651, 110
    %v3009 = vpop.permute.xlu0 %3008
    %v3010 = vsel %vm1302, %v2997, %v2999
    %v3011 = vsel %vm1302, %v2999, %v3001
    %v3012 = vsel %vm1302, %v3001, %v3003
    %v3013 = vsel %vm1302, %v3003, %v3005
    %v3014 = vsel %vm1302, %v3005, %v3007
    %v3015 = vsel %vm1302, %v3007, %v3009
    %v3017 = vsel %vm91, %v2995, 0
    %v3020 = vsel %vm95, %v3010, 0
    %v3023 = vsel %vm95, %v3011, 0
    %v3026 = vsel %vm95, %v3012, 0
    %v3029 = vsel %vm95, %v3013, 0
    %v3032 = vsel %vm95, %v3014, 0
    %v3035 = vsel %vm95, %v3015, 0
    %3037 = vmatprep.subr.bf16.mxu0 %v3023
    %3038 = vmatpush1.bf16.msra.mxu0 %v3020
    %3039 = vmatprep.subr.bf16.mxu0 0
    %3040 = vmatpush1.bf16.msra.mxu0 0
    %3041 = vmatprep.subr.bf16.mxu0 0
    %3042 = vmatpush1.bf16.msra.mxu0 0
    %3043 = vmatprep.subr.bf16.mxu0 0
    %3044 = vmatpush1.bf16.msra.mxu0 0
    %3045 = vmatprep.subr.bf16.mxu0 0
    %3046 = vmatpush1.bf16.msra.mxu0 0
    %3047 = vmatprep.subr.bf16.mxu0 0
    %3048 = vmatpush1.bf16.msra.mxu0 0
    %3049 = vmatprep.subr.bf16.mxu0 0
    %3050 = vmatpush1.bf16.msra.mxu0 0
    %3051 = vmatprep.subr.bf16.mxu0 0
    %3052 = vmatpush1.bf16.msra.mxu0 0
    %3053 = vmatprep.subr.bf16.mxu0 0
    %3054 = vmatpush1.bf16.msra.mxu0 0
    %3055 = vmatprep.subr.bf16.mxu0 0
    %3056 = vmatpush1.bf16.msra.mxu0 0
    %3057 = vmatprep.subr.bf16.mxu0 0
    %3058 = vmatpush1.bf16.msra.mxu0 0
    %3059 = vmatprep.subr.bf16.mxu0 0
    %3060 = vmatpush1.bf16.msra.mxu0 0
    %3061 = vmatprep.subr.bf16.mxu0 0
    %3062 = vmatpush1.bf16.msra.mxu0 0
    %3063 = vmatprep.subr.bf16.mxu0 0
    %3064 = vmatpush1.bf16.msra.mxu0 0
    %3065 = vmatprep.subr.bf16.mxu0 0
    %3066 = vmatpush1.bf16.msra.mxu0 0
    %3067 = vmatprep.subr.bf16.mxu0 0
    %3068 = vmatpush1.bf16.msra.mxu0 0
    %3069 = vmatprep.mubr.bf16.mxu0 0
    %3070 = vmatmul.mubr.bf16.gmra.mrb[0].mxu0 %v3017
    %v3071 = vpop.f32.mrb[0].mxu0
    %v3072 = vadd.f32 0.0, %v3071
    %v3073 = vpop.f32.mrb[0].mxu0
    %v3074 = vadd.f32 0.0, %v3073
    %v3075 = vpop.f32.mrb[0].mxu0
    %v3076 = vpop.f32.mrb[0].mxu0
    %3077 = vdwg.mxu0
    %3078 = vmatprep.subr.bf16.mxu0 %v3029
    %3079 = vmatpush1.bf16.msra.mxu0 %v3026
    %3080 = vmatprep.subr.bf16.mxu0 0
    %3081 = vmatpush1.bf16.msra.mxu0 0
    %3082 = vmatprep.subr.bf16.mxu0 0
    %3083 = vmatpush1.bf16.msra.mxu0 0
    %3084 = vmatprep.subr.bf16.mxu0 0
    %3085 = vmatpush1.bf16.msra.mxu0 0
    %3086 = vmatprep.subr.bf16.mxu0 0
    %3087 = vmatpush1.bf16.msra.mxu0 0
    %3088 = vmatprep.subr.bf16.mxu0 0
    %3089 = vmatpush1.bf16.msra.mxu0 0
    %3090 = vmatprep.subr.bf16.mxu0 0
    %3091 = vmatpush1.bf16.msra.mxu0 0
    %3092 = vmatprep.subr.bf16.mxu0 0
    %3093 = vmatpush1.bf16.msra.mxu0 0
    %3094 = vmatprep.subr.bf16.mxu0 0
    %3095 = vmatpush1.bf16.msra.mxu0 0
    %3096 = vmatprep.subr.bf16.mxu0 0
    %3097 = vmatpush1.bf16.msra.mxu0 0
    %3098 = vmatprep.subr.bf16.mxu0 0
    %3099 = vmatpush1.bf16.msra.mxu0 0
    %3100 = vmatprep.subr.bf16.mxu0 0
    %3101 = vmatpush1.bf16.msra.mxu0 0
    %3102 = vmatprep.subr.bf16.mxu0 0
    %3103 = vmatpush1.bf16.msra.mxu0 0
    %3104 = vmatprep.subr.bf16.mxu0 0
    %3105 = vmatpush1.bf16.msra.mxu0 0
    %3106 = vmatprep.subr.bf16.mxu0 0
    %3107 = vmatpush1.bf16.msra.mxu0 0
    %3108 = vmatprep.subr.bf16.mxu0 0
    %3109 = vmatpush1.bf16.msra.mxu0 0
    %3110 = vmatprep.mubr.bf16.mxu0 0
    %3111 = vmatmul.mubr.bf16.gmra.mrb[0].mxu0 %v3017
    %v3112 = vpop.f32.mrb[0].mxu0
    %v3113 = vadd.f32 0.0, %v3112
    %v3114 = vpop.f32.mrb[0].mxu0
    %v3115 = vadd.f32 0.0, %v3114
    %v3116 = vpop.f32.mrb[0].mxu0
    %v3117 = vpop.f32.mrb[0].mxu0
    %3118 = vdwg.mxu0
    %3119 = vmatprep.subr.bf16.mxu0 %v3035
    %3120 = vmatpush1.bf16.msra.mxu0 %v3032
    %3121 = vmatprep.subr.bf16.mxu0 0
    %3122 = vmatpush1.bf16.msra.mxu0 0
    %3123 = vmatprep.subr.bf16.mxu0 0
    %3124 = vmatpush1.bf16.msra.mxu0 0
    %3125 = vmatprep.subr.bf16.mxu0 0
    %3126 = vmatpush1.bf16.msra.mxu0 0
    %3127 = vmatprep.subr.bf16.mxu0 0
    %3128 = vmatpush1.bf16.msra.mxu0 0
    %3129 = vmatprep.subr.bf16.mxu0 0
    %3130 = vmatpush1.bf16.msra.mxu0 0
    %3131 = vmatprep.subr.bf16.mxu0 0
    %3132 = vmatpush1.bf16.msra.mxu0 0
    %3133 = vmatprep.subr.bf16.mxu0 0
    %3134 = vmatpush1.bf16.msra.mxu0 0
    %3135 = vmatprep.subr.bf16.mxu0 0
    %3136 = vmatpush1.bf16.msra.mxu0 0
    %3137 = vmatprep.subr.bf16.mxu0 0
    %3138 = vmatpush1.bf16.msra.mxu0 0
    %3139 = vmatprep.subr.bf16.mxu0 0
    %3140 = vmatpush1.bf16.msra.mxu0 0
    %3141 = vmatprep.subr.bf16.mxu0 0
    %3142 = vmatpush1.bf16.msra.mxu0 0
    %3143 = vmatprep.subr.bf16.mxu0 0
    %3144 = vmatpush1.bf16.msra.mxu0 0
    %3145 = vmatprep.subr.bf16.mxu0 0
    %3146 = vmatpush1.bf16.msra.mxu0 0
    %3147 = vmatprep.subr.bf16.mxu0 0
    %3148 = vmatpush1.bf16.msra.mxu0 0
    %3149 = vmatprep.subr.bf16.mxu0 0
    %3150 = vmatpush1.bf16.msra.mxu0 0
    %3151 = vmatprep.mubr.bf16.mxu0 0
    %3152 = vmatmul.mubr.bf16.gmra.mrb[0].mxu0 %v3017
    %v3153 = vpop.f32.mrb[0].mxu0
    %v3154 = vadd.f32 0.0, %v3153
    %v3155 = vpop.f32.mrb[0].mxu0
    %v3156 = vadd.f32 0.0, %v3155
    %v3157 = vpop.f32.mrb[0].mxu0
    %v3158 = vpop.f32.mrb[0].mxu0
    %3159 = vdwg.mxu0
    %v3160 = vadd.f32 %v2988, %v3072
    %v3161 = vadd.f32 %v2989, %v3074
    %v3162 = vadd.f32 %v2990, %v3113
    %v3163 = vadd.f32 %v2991, %v3115
    %v3164 = vadd.f32 %v2992, %v3154
    %v3165 = vadd.f32 %v2993, %v3156
    %3166 = vrot.lane.b32.xlu0 %v1765, 64
    %v3167 = vpop.permute.xlu0 %3166
    %3168 = vrot.lane.b32.xlu0 %v2645, 109
    %v3169 = vpop.permute.xlu0 %3168
    %3170 = vrot.lane.b32.xlu0 %v2646, 109
    %v3171 = vpop.permute.xlu0 %3170
    %3172 = vrot.lane.b32.xlu0 %v2647, 109
    %v3173 = vpop.permute.xlu0 %3172
    %3174 = vrot.lane.b32.xlu0 %v2648, 109
    %v3175 = vpop.permute.xlu0 %3174
    %3176 = vrot.lane.b32.xlu0 %v2649, 109
    %v3177 = vpop.permute.xlu0 %3176
    %3178 = vrot.lane.b32.xlu0 %v2650, 109
    %v3179 = vpop.permute.xlu0 %3178
    %3180 = vrot.lane.b32.xlu0 %v2651, 109
    %v3181 = vpop.permute.xlu0 %3180
    %v3182 = vsel %vm1475, %v3169, %v3171
    %v3183 = vsel %vm1475, %v3171, %v3173
    %v3184 = vsel %vm1475, %v3173, %v3175
    %v3185 = vsel %vm1475, %v3175, %v3177
    %v3186 = vsel %vm1475, %v3177, %v3179
    %v3187 = vsel %vm1475, %v3179, %v3181
    %v3189 = vsel %vm91, %v3167, 0
    %v3192 = vsel %vm95, %v3182, 0
    %v3195 = vsel %vm95, %v3183, 0
    %v3198 = vsel %vm95, %v3184, 0
    %v3201 = vsel %vm95, %v3185, 0
    %v3204 = vsel %vm95, %v3186, 0
    %v3207 = vsel %vm95, %v3187, 0
    %3209 = vmatprep.subr.bf16.mxu0 %v3195
    %3210 = vmatpush1.bf16.msra.mxu0 %v3192
    %3211 = vmatprep.subr.bf16.mxu0 0
    %3212 = vmatpush1.bf16.msra.mxu0 0
    %3213 = vmatprep.subr.bf16.mxu0 0
    %3214 = vmatpush1.bf16.msra.mxu0 0
    %3215 = vmatprep.subr.bf16.mxu0 0
    %3216 = vmatpush1.bf16.msra.mxu0 0
    %3217 = vmatprep.subr.bf16.mxu0 0
    %3218 = vmatpush1.bf16.msra.mxu0 0
    %3219 = vmatprep.subr.bf16.mxu0 0
    %3220 = vmatpush1.bf16.msra.mxu0 0
    %3221 = vmatprep.subr.bf16.mxu0 0
    %3222 = vmatpush1.bf16.msra.mxu0 0
    %3223 = vmatprep.subr.bf16.mxu0 0
    %3224 = vmatpush1.bf16.msra.mxu0 0
    %3225 = vmatprep.subr.bf16.mxu0 0
    %3226 = vmatpush1.bf16.msra.mxu0 0
    %3227 = vmatprep.subr.bf16.mxu0 0
    %3228 = vmatpush1.bf16.msra.mxu0 0
    %3229 = vmatprep.subr.bf16.mxu0 0
    %3230 = vmatpush1.bf16.msra.mxu0 0
    %3231 = vmatprep.subr.bf16.mxu0 0
    %3232 = vmatpush1.bf16.msra.mxu0 0
    %3233 = vmatprep.subr.bf16.mxu0 0
    %3234 = vmatpush1.bf16.msra.mxu0 0
    %3235 = vmatprep.subr.bf16.mxu0 0
    %3236 = vmatpush1.bf16.msra.mxu0 0
    %3237 = vmatprep.subr.bf16.mxu0 0
    %3238 = vmatpush1.bf16.msra.mxu0 0
    %3239 = vmatprep.subr.bf16.mxu0 0
    %3240 = vmatpush1.bf16.msra.mxu0 0
    %3241 = vmatprep.mubr.bf16.mxu0 0
    %3242 = vmatmul.mubr.bf16.gmra.mrb[0].mxu0 %v3189
    %v3243 = vpop.f32.mrb[0].mxu0
    %v3244 = vadd.f32 0.0, %v3243
    %v3245 = vpop.f32.mrb[0].mxu0
    %v3246 = vadd.f32 0.0, %v3245
    %v3247 = vpop.f32.mrb[0].mxu0
    %v3248 = vpop.f32.mrb[0].mxu0
    %3249 = vdwg.mxu0
    %3250 = vmatprep.subr.bf16.mxu0 %v3201
    %3251 = vmatpush1.bf16.msra.mxu0 %v3198
    %3252 = vmatprep.subr.bf16.mxu0 0
    %3253 = vmatpush1.bf16.msra.mxu0 0
    %3254 = vmatprep.subr.bf16.mxu0 0
    %3255 = vmatpush1.bf16.msra.mxu0 0
    %3256 = vmatprep.subr.bf16.mxu0 0
    %3257 = vmatpush1.bf16.msra.mxu0 0
    %3258 = vmatprep.subr.bf16.mxu0 0
    %3259 = vmatpush1.bf16.msra.mxu0 0
    %3260 = vmatprep.subr.bf16.mxu0 0
    %3261 = vmatpush1.bf16.msra.mxu0 0
    %3262 = vmatprep.subr.bf16.mxu0 0
    %3263 = vmatpush1.bf16.msra.mxu0 0
    %3264 = vmatprep.subr.bf16.mxu0 0
    %3265 = vmatpush1.bf16.msra.mxu0 0
    %3266 = vmatprep.subr.bf16.mxu0 0
    %3267 = vmatpush1.bf16.msra.mxu0 0
    %3268 = vmatprep.subr.bf16.mxu0 0
    %3269 = vmatpush1.bf16.msra.mxu0 0
    %3270 = vmatprep.subr.bf16.mxu0 0
    %3271 = vmatpush1.bf16.msra.mxu0 0
    %3272 = vmatprep.subr.bf16.mxu0 0
    %3273 = vmatpush1.bf16.msra.mxu0 0
    %3274 = vmatprep.subr.bf16.mxu0 0
    %3275 = vmatpush1.bf16.msra.mxu0 0
    %3276 = vmatprep.subr.bf16.mxu0 0
    %3277 = vmatpush1.bf16.msra.mxu0 0
    %3278 = vmatprep.subr.bf16.mxu0 0
    %3279 = vmatpush1.bf16.msra.mxu0 0
    %3280 = vmatprep.subr.bf16.mxu0 0
    %3281 = vmatpush1.bf16.msra.mxu0 0
    %3282 = vmatprep.mubr.bf16.mxu0 0
    %3283 = vmatmul.mubr.bf16.gmra.mrb[0].mxu0 %v3189
    %v3284 = vpop.f32.mrb[0].mxu0
    %v3285 = vadd.f32 0.0, %v3284
    %v3286 = vpop.f32.mrb[0].mxu0
    %v3287 = vadd.f32 0.0, %v3286
    %v3288 = vpop.f32.mrb[0].mxu0
    %v3289 = vpop.f32.mrb[0].mxu0
    %3290 = vdwg.mxu0
    %3291 = vmatprep.subr.bf16.mxu0 %v3207
    %3292 = vmatpush1.bf16.msra.mxu0 %v3204
    %3293 = vmatprep.subr.bf16.mxu0 0
    %3294 = vmatpush1.bf16.msra.mxu0 0
    %3295 = vmatprep.subr.bf16.mxu0 0
    %3296 = vmatpush1.bf16.msra.mxu0 0
    %3297 = vmatprep.subr.bf16.mxu0 0
    %3298 = vmatpush1.bf16.msra.mxu0 0
    %3299 = vmatprep.subr.bf16.mxu0 0
    %3300 = vmatpush1.bf16.msra.mxu0 0
    %3301 = vmatprep.subr.bf16.mxu0 0
    %3302 = vmatpush1.bf16.msra.mxu0 0
    %3303 = vmatprep.subr.bf16.mxu0 0
    %3304 = vmatpush1.bf16.msra.mxu0 0
    %3305 = vmatprep.subr.bf16.mxu0 0
    %3306 = vmatpush1.bf16.msra.mxu0 0
    %3307 = vmatprep.subr.bf16.mxu0 0
    %3308 = vmatpush1.bf16.msra.mxu0 0
    %3309 = vmatprep.subr.bf16.mxu0 0
    %3310 = vmatpush1.bf16.msra.mxu0 0
    %3311 = vmatprep.subr.bf16.mxu0 0
    %3312 = vmatpush1.bf16.msra.mxu0 0
    %3313 = vmatprep.subr.bf16.mxu0 0
    %3314 = vmatpush1.bf16.msra.mxu0 0
    %3315 = vmatprep.subr.bf16.mxu0 0
    %3316 = vmatpush1.bf16.msra.mxu0 0
    %3317 = vmatprep.subr.bf16.mxu0 0
    %3318 = vmatpush1.bf16.msra.mxu0 0
    %3319 = vmatprep.subr.bf16.mxu0 0
    %3320 = vmatpush1.bf16.msra.mxu0 0
    %3321 = vmatprep.subr.bf16.mxu0 0
    %3322 = vmatpush1.bf16.msra.mxu0 0
    %3323 = vmatprep.mubr.bf16.mxu0 0
    %3324 = vmatmul.mubr.bf16.gmra.mrb[0].mxu0 %v3189
    %v3325 = vpop.f32.mrb[0].mxu0
    %v3326 = vadd.f32 0.0, %v3325
    %v3327 = vpop.f32.mrb[0].mxu0
    %v3328 = vadd.f32 0.0, %v3327
    %v3329 = vpop.f32.mrb[0].mxu0
    %v3330 = vpop.f32.mrb[0].mxu0
    %3331 = vdwg.mxu0
    %v3332 = vadd.f32 %v3160, %v3244
    %v3333 = vadd.f32 %v3161, %v3246
    %v3334 = vadd.f32 %v3162, %v3285
    %v3335 = vadd.f32 %v3163, %v3287
    %v3336 = vadd.f32 %v3164, %v3326
    %v3337 = vadd.f32 %v3165, %v3328
    %v3338 = vld [vmem:[%s3] sm:$0xff]
    %v3339 = vmul.f32 %v3332, %v1636
    %v3340 = vmul.f32 %v3333, %v1640
    %v3341 = vmul.f32 %v3334, %v1644
    %v3342 = vmul.f32 %v3335, %v1648
    %v3343 = vmul.f32 %v3336, %v1652
    %v3344 = vmul.f32 %v3337, %v1656
    %v3345 = vadd.f32 %v3339, %v3340
    %v3346 = vadd.f32 %v3345, %v3341
    %v3347 = vadd.f32 %v3346, %v3342
    %v3348 = vadd.f32 %v3347, %v3343
    %v3349 = vadd.f32 %v3348, %v3344
    %3350 = vadd.xlane.f32.xlu0 %v3349
    %v3351 = vpop.xlane.xlu0 %3350
    %v3352 = vmul.f32 %v3339, %v3339
    %v3353 = vmul.f32 %v3340, %v3340
    %v3354 = vmul.f32 %v3341, %v3341
    %v3355 = vmul.f32 %v3342, %v3342
    %v3356 = vmul.f32 %v3343, %v3343
    %v3357 = vmul.f32 %v3344, %v3344
    %v3358 = vadd.f32 %v3352, %v3353
    %v3359 = vadd.f32 %v3358, %v3354
    %v3360 = vadd.f32 %v3359, %v3355
    %v3361 = vadd.f32 %v3360, %v3356
    %v3362 = vadd.f32 %v3361, %v3357
    %3363 = vadd.xlane.f32.xlu0 %v3362
    %v3364 = vpop.xlane.xlu0 %3363
    %v3365 = vmul.f32 %v3351, 0.001953125
    %v3366 = vmul.f32 %v3364, 0.001953125
    %v3367 = vmul.f32 %v3365, %v3365
    %v3368 = vsub.f32 %v3366, %v3367
    %v3369 = vmax.f32 %v3368, 0.0
    %v3370 = vadd.f32 %v3369, 1e-05
    %v3371 = vrsqrt.pop %v3370
    %v3372 = vmul.f32 %v3338, %v3371
    %v3373 = vmul.f32 %v3365, %v3372
    %3375 = vrot.lane.b32.xlu0 %v3373, 1
    %v3376 = vpop.permute.xlu0 %3375
    %v3378 = vsub.f32 %v3338, %v3376
    %3380 = vset.pattern.permute.xlu0 2
    %3381 = vperm.xlu0 %3380, %v3372
    %v3382 = vpop.permute.xlu0 %3381
    %v3384 = vmul.f32 %v3332, %v3382
    %v3385 = vmul.f32 %v3333, %v3382
    %v3386 = vmul.f32 %v3334, %v3382
    %v3387 = vmul.f32 %v3335, %v3382
    %v3388 = vmul.f32 %v3336, %v3382
    %v3389 = vmul.f32 %v3337, %v3382
    %3391 = vset.pattern.permute.xlu0 3
    %3392 = vperm.xlu0 %3391, %v3378
    %v3393 = vpop.permute.xlu0 %3392
    %v3395 = vadd.f32 %v3384, %v3393
    %v3396 = vadd.f32 %v3385, %v3393
    %v3397 = vadd.f32 %v3386, %v3393
    %v3398 = vadd.f32 %v3387, %v3393
    %v3399 = vadd.f32 %v3388, %v3393
    %v3400 = vadd.f32 %v3389, %v3393
    %v3401 = vmax.f32 %v3395, 0.0
    %v3402 = vmax.f32 %v3396, 0.0
    %v3403 = vmax.f32 %v3397, 0.0
    %v3404 = vmax.f32 %v3398, 0.0
    %v3405 = vmax.f32 %v3399, 0.0
    %v3406 = vmax.f32 %v3400, 0.0
    %3407 = vst [vmem:[#allocation6] sm:$0xff] %v3401
    %3408 = vst [vmem:[#allocation6 + $0x8] sm:$0xff] %v3402
    %3409 = vst [vmem:[#allocation6 + $0x10] sm:$0xff] %v3403
    %3410 = vst [vmem:[#allocation6 + $0x18] sm:$0xff] %v3404
    %3411 = vst [vmem:[#allocation6 + $0x20] sm:$0xff] %v3405
    %3412 = vst [vmem:[#allocation6 + $0x28] sm:$0xff] %v3406
    // Predicated region
    $region22: #{tpu_custom_call.1} parent=1 // pred_check
      _
    $region23: #{tpu_custom_call.1} parent=1 // pred_check_branch
      %3414 = sbr.rel (0) target = $region25
    $region24: #{tpu_custom_call.1} parent=1 // pred_region
      %s3416 = ssub.s32 768, 768
      %3417 = vsyncadd [#allocation5], %s3416
      %s3419 = sshll.u32 [#allocation6], 4
      %s3420 = int_to_ptr.vmem [resolvable:$true] %s3419
      %3422 = dma.vmem_to_hbm [thread:$0]  %s3420, 768, %s4, [#allocation5]
    $region25: #{tpu_custom_call.1} parent=1 // pred_fallthru
      _
    // Predicated region
    $region26: #{tpu_custom_call.1} parent=1 // pred_check
      _
    $region27: #{tpu_custom_call.1} parent=1 // pred_check_branch
      %3424 = sbr.rel (0) target = $region29
    $region28: #{tpu_custom_call.1} parent=1 // pred_region
      %3425 = dma.done [#allocation5], 768
    $region29: #{tpu_custom_call.1} parent=1 // pred_fallthru
      _
    %3426 = vsyncpa [#allocation4], 1
    %3427 = vsyncpa [#allocation5], 1

</llo_original>
